<compile_context>
chip_gen: v7x
topology: tpu7x:2x2x1
jax: 0.10.0
libtpu: 0.0.40
codegen_flags: <defaults>
</compile_context>

<pallas_src>
import jax
import jax.numpy as jnp
from jax.experimental import pallas as pl
from jax.experimental.pallas import tpu as pltpu


def _round_up(x, m):
    return ((x + m - 1) // m) * m


def _resident_spec(arr):
    """BlockSpec covering the whole (small) array; constant block index, so it
    stays VMEM-resident across the row-tile grid."""
    zeros = (0,) * arr.ndim
    return pl.BlockSpec(arr.shape, lambda i, _z=zeros: _z)


# ----------------------------------------------------------------------------
# Pallas kernels
# ----------------------------------------------------------------------------
def _latent_kernel(lat_ref, w0, b0, w1, b1, w2, b2, w3, b3, w1l, b1l, o_ref):
    """layers2 MLP on the flattened latent, then folds the result into the
    effective bias of layers1[0]:  out = layers2(latent) @ W1_lat + b1.
    Weights arrive in bf16; accumulation and bias math stay f32."""
    def ff(h, w, b, relu=True):
        y = jnp.dot(h.astype(jnp.bfloat16), w[...],
                    preferred_element_type=jnp.float32) + b[...]
        return jnp.maximum(y, 0.0) if relu else y

    h = lat_ref[...]                     # (8, 3072) bf16 (rows 1..7 padding)
    h = ff(h, w0, b0)
    h = ff(h, w1, b1)
    h = ff(h, w2, b2)
    h = ff(h, w3, b3)
    o_ref[...] = ff(h, w1l, b1l, relu=False)


def _nerf_point_kernel(pos_ref, dir_ref, wslab_ref, bslab_ref,
                       wrgb_ref, tail_ref, o_ref):
    """Fully fused per-point NeRF MLP on a [TM, *] row tile.

    wslab_ref : (9, 128, D) bf16 — K-padded weights, statically sliced
                [l0_0..l0_3, merged l1_0, l1_1..l1_3, fc_feature]
    bslab_ref : (9, D) f32 biases (row 4 = latent-folded layers1[0] bias)
    wrgb_ref  : (D + dir_in, D//2) bf16 — merged rgb_layers[0] weight
    tail_ref  : (3, D//2) f32 — [rgb bias | fc_rgb weight row | fc_rgb bias]
    """
    bf16 = jnp.bfloat16
    P = pos_ref.shape[1]
    D = bslab_ref.shape[1]

    bias = bslab_ref[...]                # (9, D) f32, tiny, vreg-resident
    tail = tail_ref[...]                 # (3, D//2) f32

    def ff(h, idx, k, relu=True):
        w = wslab_ref[idx, 0:k, :]       # static slice of the weight slab
        y = jnp.dot(h.astype(bf16), w, preferred_element_type=jnp.float32)
        y = y + bias[idx:idx + 1, :]     # f32 bias add / ReLU on the VPU
        return jnp.maximum(y, 0.0) if relu else y

    pos = pos_ref[...]                   # (TM, P) f32

    # layers0: 4 x (Linear + ReLU)
    h = ff(pos, 0, P)
    h = ff(h, 1, D)
    h = ff(h, 2, D)
    h = ff(h, 3, D)

    # layers1[0]: cat([x, pos_enc, latent]) @ W + b
    #   == [x, pos_enc] @ [Wx; Wp]  +  (latent @ W_lat + b)   (latent folded
    #   into bias row 4).  Single K=D+P dot instead of two split dots.
    h = ff(jnp.concatenate([h, pos], axis=-1), 4, D + P)
    h = ff(h, 5, D)
    h = ff(h, 6, D)
    h = ff(h, 7, D)

    # fc_feature (no activation)
    feat = ff(h, 8, D, relu=False)

    # rgb_layers[0]: cat([feat, dir_enc]) @ [Wf; Wd] + b, single merged dot
    cat = jnp.concatenate([feat, dir_ref[...]], axis=-1)
    r = jnp.dot(cat.astype(bf16), wrgb_ref[...],
                preferred_element_type=jnp.float32)
    r = jnp.maximum(r + tail[0:1, :], 0.0)

    # fc_rgb: output width 1 -> VPU mul + lane reduction (f32), not an N=1
    # MXU matmul.
    o_ref[...] = (jnp.sum(r * tail[1:2, :], axis=-1, keepdims=True)
                  + tail[2:3, 0:1])


# ----------------------------------------------------------------------------
# Wrappers
# ----------------------------------------------------------------------------
def latent_to_bias(params, latent, D):
    """Run layers2 on the flattened latent and fold it into the effective
    bias row of layers1's first Linear.  Returns [1, D] f32."""
    lat = latent.reshape(1, -1).astype(jnp.bfloat16)        # [1, 128*24]
    lat8 = jnp.pad(lat, ((0, 7), (0, 0)))                   # pad rows to 8

    ops = []
    for layer in params["l2"]:
        ops += [layer["w"].astype(jnp.bfloat16),
                layer["b"].reshape(1, -1).astype(jnp.float32)]
    ops += [params["l1_wl"].astype(jnp.bfloat16),
            params["l1_b0"].reshape(1, -1).astype(jnp.float32)]

    out = pl.pallas_call(
        _latent_kernel,
        out_shape=jax.ShapeDtypeStruct((8, D), jnp.float32),
        grid=(1,),
        in_specs=[_resident_spec(lat8)] + [_resident_spec(o) for o in ops],
        out_specs=pl.BlockSpec((8, D), lambda i: (0, 0)),
    )(lat8, *ops)
    return out[:1]                                           # [1, D]


def nerf_points(params, pos2, dir2, b1_eff, tm=2048):
    """Fused per-point MLP over a [M, *] slab of rays/samples."""
    M, P = pos2.shape
    Dd = dir2.shape[1]
    D = params["l1_wx"].shape[1]
    Dh = params["rgb_wf"].shape[1]

    TM = min(tm, _round_up(M, 8))        # big row tile, multiple of 8
    grid = pl.cdiv(M, TM)                # ragged last block handled by Pallas

    bf16 = jnp.bfloat16
    KMAX = 128

    # Pack the nine D-wide layers into one K-padded bf16 weight slab and one
    # f32 bias slab (row 4 carries the latent-folded layers1[0] bias).
    w_list = [params["l0"][i]["w"] for i in range(4)]
    w_list += [jnp.concatenate([params["l1_wx"], params["l1_wp"]], axis=0)]
    w_list += [params["l1"][i]["w"] for i in range(3)]
    w_list += [params["fc_feature"]["w"]]
    wslab = jnp.stack([jnp.pad(w, ((0, KMAX - w.shape[0]), (0, 0)))
                       for w in w_list]).astype(bf16)        # (9, 128, D)

    b_list = [params["l0"][i]["b"].reshape(1, -1) for i in range(4)]
    b_list += [b1_eff]
    b_list += [params["l1"][i]["b"].reshape(1, -1) for i in range(3)]
    b_list += [params["fc_feature"]["b"].reshape(1, -1)]
    bslab = jnp.concatenate(b_list, axis=0).astype(jnp.float32)   # (9, D)

    wrgb = jnp.concatenate([params["rgb_wf"], params["rgb_wd"]],
                           axis=0).astype(bf16)              # (D+Dd, Dh)
    tail = jnp.stack([params["rgb_b"].astype(jnp.float32),
                      params["fc_rgb_w"].reshape(-1).astype(jnp.float32),
                      jnp.broadcast_to(params["fc_rgb_b"].astype(jnp.float32),
                                       (Dh,))])              # (3, Dh)

    # Advisory cost estimate so XLA overlaps this call with surrounding ops.
    kn = (P * D + 3 * D * D            # layers0
          + (D + P) * D + 3 * D * D    # layers1
          + D * D                      # fc_feature
          + (D + Dd) * Dh + Dh)        # rgb head
    flops = 2 * M * kn
    bytes_accessed = (M * (P + Dd + 1) * 4
                      + wslab.size * 2 + bslab.size * 4
                      + wrgb.size * 2 + tail.size * 4)

    out = pl.pallas_call(
        _nerf_point_kernel,
        out_shape=jax.ShapeDtypeStruct((M, 1), jnp.float32),
        grid=(grid,),
        in_specs=[pl.BlockSpec((TM, P), lambda i: (i, 0)),
                  pl.BlockSpec((TM, Dd), lambda i: (i, 0)),
                  _resident_spec(wslab),
                  _resident_spec(bslab),
                  _resident_spec(wrgb),
                  _resident_spec(tail)],
        out_specs=pl.BlockSpec((TM, 1), lambda i: (i, 0)),
        # TODO(synk): on v7x, verify the row grid shards across both
        # TensorCores; if not, switch this axis to pltpu.CORE_PARALLEL.
        compiler_params=pltpu.CompilerParams(
            dimension_semantics=("parallel",)),
        cost_estimate=pl.CostEstimate(flops=flops, transcendentals=0,
                                      bytes_accessed=bytes_accessed),
    )(pos2, dir2, wslab, bslab, wrgb, tail)
    return out


# ----------------------------------------------------------------------------
# Parameters (deterministic synthetic init) and forward pass
# ----------------------------------------------------------------------------
def init_params(key, pos_in_dims=32, dir_in_dims=16, D=64):
    keys = iter(jax.random.split(key, 64))

    def nrm(shape, scale=0.05):
        return jax.random.normal(next(keys), shape, jnp.float32) * scale

    def zeros(n):
        return jnp.zeros((n,), jnp.float32)

    p = {}
    # layers0: pos_in -> D -> D -> D -> D (ReLU each)
    p["l0"] = [dict(w=nrm((pos_in_dims, D)), b=zeros(D))] + \
              [dict(w=nrm((D, D)), b=zeros(D)) for _ in range(3)]
    # layers1 first Linear(D + pos_in + D, D), stored split along its input:
    # [x part | pos_enc part | latent part]
    p["l1_wx"] = nrm((D, D))
    p["l1_wp"] = nrm((pos_in_dims, D))
    p["l1_wl"] = nrm((D, D))
    p["l1_b0"] = zeros(D)
    # layers1 remaining: 3 x Linear(D, D) + ReLU
    p["l1"] = [dict(w=nrm((D, D)), b=zeros(D)) for _ in range(3)]
    # layers2: Linear(128*24, 4D) -> 2D -> D -> D (ReLU each)
    dims2 = [128 * 24, 4 * D, 2 * D, D, D]
    p["l2"] = [dict(w=nrm((dims2[i], dims2[i + 1])), b=zeros(dims2[i + 1]))
               for i in range(4)]
    # heads
    p["fc_feature"] = dict(w=nrm((D, D)), b=zeros(D))
    # rgb_layers first Linear(D + dir_in, D//2), stored split [feat | dir]
    p["rgb_wf"] = nrm((D, D // 2))
    p["rgb_wd"] = nrm((dir_in_dims, D // 2))
    p["rgb_b"] = zeros(D // 2)
    p["fc_rgb_w"] = nrm((D // 2, 1))
    p["fc_rgb_b"] = jnp.array([0.02], jnp.float32)   # matches module init
    # TODO(synk): fc_density exists in the module but is never used in
    # forward(), so it is not instantiated here.
    return p


def official_nerf_vae_forward(params, pos_enc, dir_enc, latent):
    """Mirrors OfficialNerfVAE.forward: returns rgb of shape (H, W, N, 1)."""
    H, W, Ns, P = pos_enc.shape
    Dd = dir_enc.shape[-1]
    D = params["l1_wx"].shape[1]
    M = H * W * Ns

    pos2 = pos_enc.reshape(M, P).astype(jnp.float32)
    dir2 = dir_enc.reshape(M, Dd).astype(jnp.float32)

    # latent path (layers2) folded into the layers1[0] bias row
    b1_eff = latent_to_bias(params, latent, D)

    rgb2 = nerf_points(params, pos2, dir2, b1_eff)
    return rgb2.reshape(H, W, Ns, 1)


if __name__ == "__main__":
    key = jax.random.PRNGKey(0)
    k_params, k_pos, k_dir, k_lat = jax.random.split(key, 4)

    # Small shapes consistent with the module: layers2 input is hard-coded to
    # 128*24 = 3072 elements, so the latent tensor must carry 3072 values.
    H, W, Ns = 4, 4, 8
    pos_in_dims, dir_in_dims, D = 32, 16, 64

    pos_enc = jax.random.normal(k_pos, (H, W, Ns, pos_in_dims), jnp.float32)
    dir_enc = jax.random.normal(k_dir, (H, W, Ns, dir_in_dims), jnp.float32)
    latent = jax.random.normal(k_lat, (128, 24), jnp.float32)

    params = init_params(k_params, pos_in_dims, dir_in_dims, D)

    fwd = jax.jit(official_nerf_vae_forward)
    rgb = fwd(params, pos_enc, dir_enc, latent)
    jax.block_until_ready(rgb)

    assert rgb.shape == (H, W, Ns, 1)
    assert bool(jnp.all(jnp.isfinite(rgb)))
    print("KERNEL_OK")
</pallas_src>

<mosaic_0001>
module attributes {stable_mosaic.version = 11 : i64} {
  func.func @_latent_kernel(%arg0: i32, %arg1: memref<8x3072xbf16, #tpu.memory_space<vmem>>, %arg2: memref<3072x256xbf16, #tpu.memory_space<vmem>>, %arg3: memref<1x256xf32, #tpu.memory_space<vmem>>, %arg4: memref<256x128xbf16, #tpu.memory_space<vmem>>, %arg5: memref<1x128xf32, #tpu.memory_space<vmem>>, %arg6: memref<128x64xbf16, #tpu.memory_space<vmem>>, %arg7: memref<1x64xf32, #tpu.memory_space<vmem>>, %arg8: memref<64x64xbf16, #tpu.memory_space<vmem>>, %arg9: memref<1x64xf32, #tpu.memory_space<vmem>>, %arg10: memref<64x64xbf16, #tpu.memory_space<vmem>>, %arg11: memref<1x64xf32, #tpu.memory_space<vmem>>, %arg12: memref<8x64xf32, #tpu.memory_space<vmem>>) attributes {dimension_semantics = [#tpu.dimension_semantics<arbitrary>], iteration_bounds = array<i64: 1>, scalar_prefetch = 0 : i64, scratch_operands = 0 : i64, tpu.core_type = #tpu.core_type<tc>, window_params = [{pipeline_mode = #tpu.pipeline_mode<synchronous>, transform_indices = @transform_0, window_bounds = array<i64: 8, 3072>}, {pipeline_mode = #tpu.pipeline_mode<synchronous>, transform_indices = @transform_1, window_bounds = array<i64: 3072, 256>}, {pipeline_mode = #tpu.pipeline_mode<synchronous>, transform_indices = @transform_2, window_bounds = array<i64: 1, 256>}, {pipeline_mode = #tpu.pipeline_mode<synchronous>, transform_indices = @transform_3, window_bounds = array<i64: 256, 128>}, {pipeline_mode = #tpu.pipeline_mode<synchronous>, transform_indices = @transform_4, window_bounds = array<i64: 1, 128>}, {pipeline_mode = #tpu.pipeline_mode<synchronous>, transform_indices = @transform_5, window_bounds = array<i64: 128, 64>}, {pipeline_mode = #tpu.pipeline_mode<synchronous>, transform_indices = @transform_6, window_bounds = array<i64: 1, 64>}, {pipeline_mode = #tpu.pipeline_mode<synchronous>, transform_indices = @transform_7, window_bounds = array<i64: 64, 64>}, {pipeline_mode = #tpu.pipeline_mode<synchronous>, transform_indices = @transform_8, window_bounds = array<i64: 1, 64>}, {pipeline_mode = #tpu.pipeline_mode<synchronous>, transform_indices = @transform_9, window_bounds = array<i64: 64, 64>}, {pipeline_mode = #tpu.pipeline_mode<synchronous>, transform_indices = @transform_10, window_bounds = array<i64: 1, 64>}, {pipeline_mode = #tpu.pipeline_mode<synchronous>, transform_indices = @transform_11, window_bounds = array<i64: 8, 64>}]} {
    %c0 = arith.constant 0 : index
    %c0_0 = arith.constant 0 : index
    %0 = vector.load %arg1[%c0, %c0_0] : memref<8x3072xbf16, #tpu.memory_space<vmem>>, vector<8x3072xbf16>
    %c0_1 = arith.constant 0 : index
    %c0_2 = arith.constant 0 : index
    %1 = vector.load %arg2[%c0_1, %c0_2] : memref<3072x256xbf16, #tpu.memory_space<vmem>>, vector<3072x256xbf16>
    %cst = arith.constant dense<0.000000e+00> : vector<8x256xf32>
    %2 = tpu.matmul %0, %1, %cst {dimension_numbers = #tpu.dot_dimension_numbers<[1], [0], [0], [1], [0, 0, 1, 1], [], []>} : vector<8x3072xbf16>, vector<3072x256xbf16>, vector<8x256xf32> -> vector<8x256xf32>
    %c0_3 = arith.constant 0 : index
    %c0_4 = arith.constant 0 : index
    %3 = vector.load %arg3[%c0_3, %c0_4] : memref<1x256xf32, #tpu.memory_space<vmem>>, vector<1x256xf32>
    %4 = vector.broadcast %3 : vector<1x256xf32> to vector<8x256xf32>
    %5 = arith.addf %2, %4 : vector<8x256xf32>
    %cst_5 = arith.constant 0.000000e+00 : f32
    %6 = vector.broadcast %cst_5 : f32 to vector<8x256xf32>
    %7 = arith.maximumf %5, %6 : vector<8x256xf32>
    %8 = arith.truncf %7 : vector<8x256xf32> to vector<8x256xbf16>
    %c0_6 = arith.constant 0 : index
    %c0_7 = arith.constant 0 : index
    %9 = vector.load %arg4[%c0_6, %c0_7] : memref<256x128xbf16, #tpu.memory_space<vmem>>, vector<256x128xbf16>
    %cst_8 = arith.constant dense<0.000000e+00> : vector<8x128xf32>
    %10 = tpu.matmul %8, %9, %cst_8 {dimension_numbers = #tpu.dot_dimension_numbers<[1], [0], [0], [1], [0, 0, 1, 1], [], []>} : vector<8x256xbf16>, vector<256x128xbf16>, vector<8x128xf32> -> vector<8x128xf32>
    %c0_9 = arith.constant 0 : index
    %c0_10 = arith.constant 0 : index
    %11 = vector.load %arg5[%c0_9, %c0_10] : memref<1x128xf32, #tpu.memory_space<vmem>>, vector<1x128xf32>
    %12 = vector.broadcast %11 : vector<1x128xf32> to vector<8x128xf32>
    %13 = arith.addf %10, %12 : vector<8x128xf32>
    %cst_11 = arith.constant 0.000000e+00 : f32
    %14 = vector.broadcast %cst_11 : f32 to vector<8x128xf32>
    %15 = arith.maximumf %13, %14 : vector<8x128xf32>
    %16 = arith.truncf %15 : vector<8x128xf32> to vector<8x128xbf16>
    %c0_12 = arith.constant 0 : index
    %c0_13 = arith.constant 0 : index
    %17 = vector.load %arg6[%c0_12, %c0_13] : memref<128x64xbf16, #tpu.memory_space<vmem>>, vector<128x64xbf16>
    %cst_14 = arith.constant dense<0.000000e+00> : vector<8x64xf32>
    %18 = tpu.matmul %16, %17, %cst_14 {dimension_numbers = #tpu.dot_dimension_numbers<[1], [0], [0], [1], [0, 0, 1, 1], [], []>} : vector<8x128xbf16>, vector<128x64xbf16>, vector<8x64xf32> -> vector<8x64xf32>
    %c0_15 = arith.constant 0 : index
    %c0_16 = arith.constant 0 : index
    %19 = vector.load %arg7[%c0_15, %c0_16] : memref<1x64xf32, #tpu.memory_space<vmem>>, vector<1x64xf32>
    %20 = vector.broadcast %19 : vector<1x64xf32> to vector<8x64xf32>
    %21 = arith.addf %18, %20 : vector<8x64xf32>
    %cst_17 = arith.constant 0.000000e+00 : f32
    %22 = vector.broadcast %cst_17 : f32 to vector<8x64xf32>
    %23 = arith.maximumf %21, %22 : vector<8x64xf32>
    %24 = arith.truncf %23 : vector<8x64xf32> to vector<8x64xbf16>
    %c0_18 = arith.constant 0 : index
    %c0_19 = arith.constant 0 : index
    %25 = vector.load %arg8[%c0_18, %c0_19] : memref<64x64xbf16, #tpu.memory_space<vmem>>, vector<64x64xbf16>
    %cst_20 = arith.constant dense<0.000000e+00> : vector<8x64xf32>
    %26 = tpu.matmul %24, %25, %cst_20 {dimension_numbers = #tpu.dot_dimension_numbers<[1], [0], [0], [1], [0, 0, 1, 1], [], []>} : vector<8x64xbf16>, vector<64x64xbf16>, vector<8x64xf32> -> vector<8x64xf32>
    %c0_21 = arith.constant 0 : index
    %c0_22 = arith.constant 0 : index
    %27 = vector.load %arg9[%c0_21, %c0_22] : memref<1x64xf32, #tpu.memory_space<vmem>>, vector<1x64xf32>
    %28 = vector.broadcast %27 : vector<1x64xf32> to vector<8x64xf32>
    %29 = arith.addf %26, %28 : vector<8x64xf32>
    %cst_23 = arith.constant 0.000000e+00 : f32
    %30 = vector.broadcast %cst_23 : f32 to vector<8x64xf32>
    %31 = arith.maximumf %29, %30 : vector<8x64xf32>
    %32 = arith.truncf %31 : vector<8x64xf32> to vector<8x64xbf16>
    %c0_24 = arith.constant 0 : index
    %c0_25 = arith.constant 0 : index
    %33 = vector.load %arg10[%c0_24, %c0_25] : memref<64x64xbf16, #tpu.memory_space<vmem>>, vector<64x64xbf16>
    %cst_26 = arith.constant dense<0.000000e+00> : vector<8x64xf32>
    %34 = tpu.matmul %32, %33, %cst_26 {dimension_numbers = #tpu.dot_dimension_numbers<[1], [0], [0], [1], [0, 0, 1, 1], [], []>} : vector<8x64xbf16>, vector<64x64xbf16>, vector<8x64xf32> -> vector<8x64xf32>
    %c0_27 = arith.constant 0 : index
    %c0_28 = arith.constant 0 : index
    %35 = vector.load %arg11[%c0_27, %c0_28] : memref<1x64xf32, #tpu.memory_space<vmem>>, vector<1x64xf32>
    %36 = vector.broadcast %35 : vector<1x64xf32> to vector<8x64xf32>
    %37 = arith.addf %34, %36 : vector<8x64xf32>
    %c0_29 = arith.constant 0 : index
    %c0_30 = arith.constant 0 : index
    %38 = vector.load %arg12[%c0_29, %c0_30] : memref<8x64xf32, #tpu.memory_space<vmem>>, vector<8x64xf32>
    tpu.vector_store %arg12[%c0_29, %c0_30], %37 {strides = array<i32>} : memref<8x64xf32, #tpu.memory_space<vmem>>, vector<8x64xf32>,
    return
  }
  func.func @transform_0(%arg0: i32) -> (i32, i32) {
    %c0_i32 = arith.constant 0 : i32
    %c0_i32_0 = arith.constant 0 : i32
    %c0_i32_1 = arith.constant 0 : i32
    return %c0_i32, %c0_i32_0 : i32, i32
  }
  func.func @transform_1(%arg0: i32) -> (i32, i32) {
    %c0_i32 = arith.constant 0 : i32
    %c0_i32_0 = arith.constant 0 : i32
    %c0_i32_1 = arith.constant 0 : i32
    return %c0_i32, %c0_i32_0 : i32, i32
  }
  func.func @transform_2(%arg0: i32) -> (i32, i32) {
    %c0_i32 = arith.constant 0 : i32
    %c0_i32_0 = arith.constant 0 : i32
    %c0_i32_1 = arith.constant 0 : i32
    return %c0_i32, %c0_i32_0 : i32, i32
  }
  func.func @transform_3(%arg0: i32) -> (i32, i32) {
    %c0_i32 = arith.constant 0 : i32
    %c0_i32_0 = arith.constant 0 : i32
    %c0_i32_1 = arith.constant 0 : i32
    return %c0_i32, %c0_i32_0 : i32, i32
  }
  func.func @transform_4(%arg0: i32) -> (i32, i32) {
    %c0_i32 = arith.constant 0 : i32
    %c0_i32_0 = arith.constant 0 : i32
    %c0_i32_1 = arith.constant 0 : i32
    return %c0_i32, %c0_i32_0 : i32, i32
  }
  func.func @transform_5(%arg0: i32) -> (i32, i32) {
    %c0_i32 = arith.constant 0 : i32
    %c0_i32_0 = arith.constant 0 : i32
    %c0_i32_1 = arith.constant 0 : i32
    return %c0_i32, %c0_i32_0 : i32, i32
  }
  func.func @transform_6(%arg0: i32) -> (i32, i32) {
    %c0_i32 = arith.constant 0 : i32
    %c0_i32_0 = arith.constant 0 : i32
    %c0_i32_1 = arith.constant 0 : i32
    return %c0_i32, %c0_i32_0 : i32, i32
  }
  func.func @transform_7(%arg0: i32) -> (i32, i32) {
    %c0_i32 = arith.constant 0 : i32
    %c0_i32_0 = arith.constant 0 : i32
    %c0_i32_1 = arith.constant 0 : i32
    return %c0_i32, %c0_i32_0 : i32, i32
  }
  func.func @transform_8(%arg0: i32) -> (i32, i32) {
    %c0_i32 = arith.constant 0 : i32
    %c0_i32_0 = arith.constant 0 : i32
    %c0_i32_1 = arith.constant 0 : i32
    return %c0_i32, %c0_i32_0 : i32, i32
  }
  func.func @transform_9(%arg0: i32) -> (i32, i32) {
    %c0_i32 = arith.constant 0 : i32
    %c0_i32_0 = arith.constant 0 : i32
    %c0_i32_1 = arith.constant 0 : i32
    return %c0_i32, %c0_i32_0 : i32, i32
  }
  func.func @transform_10(%arg0: i32) -> (i32, i32) {
    %c0_i32 = arith.constant 0 : i32
    %c0_i32_0 = arith.constant 0 : i32
    %c0_i32_1 = arith.constant 0 : i32
    return %c0_i32, %c0_i32_0 : i32, i32
  }
  func.func @transform_11(%arg0: i32) -> (i32, i32) {
    %c0_i32 = arith.constant 0 : i32
    %c0_i32_0 = arith.constant 0 : i32
    %c0_i32_1 = arith.constant 0 : i32
    return %c0_i32, %c0_i32_0 : i32, i32
  }
}

module attributes {stable_mosaic.version = 11 : i64} {
  func.func @_nerf_point_kernel(%arg0: i32, %arg1: memref<128x32xf32, #tpu.memory_space<vmem>>, %arg2: memref<128x16xf32, #tpu.memory_space<vmem>>, %arg3: memref<9x128x64xbf16, #tpu.memory_space<vmem>>, %arg4: memref<9x64xf32, #tpu.memory_space<vmem>>, %arg5: memref<80x32xbf16, #tpu.memory_space<vmem>>, %arg6: memref<3x32xf32, #tpu.memory_space<vmem>>, %arg7: memref<128x1xf32, #tpu.memory_space<vmem>>) attributes {dimension_semantics = [#tpu.dimension_semantics<parallel>], iteration_bounds = array<i64: 1>, scalar_prefetch = 0 : i64, scratch_operands = 0 : i64, tpu.core_type = #tpu.core_type<tc>, window_params = [{transform_indices = @transform_0, window_bounds = array<i64: 128, 32>}, {transform_indices = @transform_1, window_bounds = array<i64: 128, 16>}, {pipeline_mode = #tpu.pipeline_mode<synchronous>, transform_indices = @transform_2, window_bounds = array<i64: 9, 128, 64>}, {pipeline_mode = #tpu.pipeline_mode<synchronous>, transform_indices = @transform_3, window_bounds = array<i64: 9, 64>}, {pipeline_mode = #tpu.pipeline_mode<synchronous>, transform_indices = @transform_4, window_bounds = array<i64: 80, 32>}, {pipeline_mode = #tpu.pipeline_mode<synchronous>, transform_indices = @transform_5, window_bounds = array<i64: 3, 32>}, {transform_indices = @transform_6, window_bounds = array<i64: 128, 1>}]} {
    %c0 = arith.constant 0 : index
    %c0_0 = arith.constant 0 : index
    %0 = vector.load %arg4[%c0, %c0_0] : memref<9x64xf32, #tpu.memory_space<vmem>>, vector<9x64xf32>
    %c0_1 = arith.constant 0 : index
    %c0_2 = arith.constant 0 : index
    %1 = vector.load %arg6[%c0_1, %c0_2] : memref<3x32xf32, #tpu.memory_space<vmem>>, vector<3x32xf32>
    %c0_3 = arith.constant 0 : index
    %c0_4 = arith.constant 0 : index
    %2 = vector.load %arg1[%c0_3, %c0_4] : memref<128x32xf32, #tpu.memory_space<vmem>>, vector<128x32xf32>
    %c0_5 = arith.constant 0 : index
    %c0_6 = arith.constant 0 : index
    %c0_7 = arith.constant 0 : index
    %3 = vector.load %arg3[%c0_5, %c0_6, %c0_7] : memref<9x128x64xbf16, #tpu.memory_space<vmem>>, vector<1x32x64xbf16>
    %4 = vector.shape_cast %3 : vector<1x32x64xbf16> to vector<32x64xbf16>
    %5 = arith.truncf %2 : vector<128x32xf32> to vector<128x32xbf16>
    %cst = arith.constant dense<0.000000e+00> : vector<128x64xf32>
    %6 = tpu.matmul %5, %4, %cst {dimension_numbers = #tpu.dot_dimension_numbers<[1], [0], [0], [1], [0, 0, 1, 1], [], []>} : vector<128x32xbf16>, vector<32x64xbf16>, vector<128x64xf32> -> vector<128x64xf32>
    %7 = vector.extract_strided_slice %0 {offsets = [0, 0], sizes = [1, 64], strides = [1, 1]} : vector<9x64xf32> to vector<1x64xf32>
    %8 = vector.broadcast %7 : vector<1x64xf32> to vector<128x64xf32>
    %9 = arith.addf %6, %8 : vector<128x64xf32>
    %cst_8 = arith.constant 0.000000e+00 : f32
    %10 = vector.broadcast %cst_8 : f32 to vector<128x64xf32>
    %11 = arith.maximumf %9, %10 : vector<128x64xf32>
    %c1 = arith.constant 1 : index
    %c0_9 = arith.constant 0 : index
    %c0_10 = arith.constant 0 : index
    %12 = vector.load %arg3[%c1, %c0_9, %c0_10] : memref<9x128x64xbf16, #tpu.memory_space<vmem>>, vector<1x64x64xbf16>
    %13 = vector.shape_cast %12 : vector<1x64x64xbf16> to vector<64x64xbf16>
    %14 = arith.truncf %11 : vector<128x64xf32> to vector<128x64xbf16>
    %cst_11 = arith.constant dense<0.000000e+00> : vector<128x64xf32>
    %15 = tpu.matmul %14, %13, %cst_11 {dimension_numbers = #tpu.dot_dimension_numbers<[1], [0], [0], [1], [0, 0, 1, 1], [], []>} : vector<128x64xbf16>, vector<64x64xbf16>, vector<128x64xf32> -> vector<128x64xf32>
    %16 = vector.extract_strided_slice %0 {offsets = [1, 0], sizes = [1, 64], strides = [1, 1]} : vector<9x64xf32> to vector<1x64xf32>
    %17 = vector.broadcast %16 : vector<1x64xf32> to vector<128x64xf32>
    %18 = arith.addf %15, %17 : vector<128x64xf32>
    %cst_12 = arith.constant 0.000000e+00 : f32
    %19 = vector.broadcast %cst_12 : f32 to vector<128x64xf32>
    %20 = arith.maximumf %18, %19 : vector<128x64xf32>
    %c2 = arith.constant 2 : index
    %c0_13 = arith.constant 0 : index
    %c0_14 = arith.constant 0 : index
    %21 = vector.load %arg3[%c2, %c0_13, %c0_14] : memref<9x128x64xbf16, #tpu.memory_space<vmem>>, vector<1x64x64xbf16>
    %22 = vector.shape_cast %21 : vector<1x64x64xbf16> to vector<64x64xbf16>
    %23 = arith.truncf %20 : vector<128x64xf32> to vector<128x64xbf16>
    %cst_15 = arith.constant dense<0.000000e+00> : vector<128x64xf32>
    %24 = tpu.matmul %23, %22, %cst_15 {dimension_numbers = #tpu.dot_dimension_numbers<[1], [0], [0], [1], [0, 0, 1, 1], [], []>} : vector<128x64xbf16>, vector<64x64xbf16>, vector<128x64xf32> -> vector<128x64xf32>
    %25 = vector.extract_strided_slice %0 {offsets = [2, 0], sizes = [1, 64], strides = [1, 1]} : vector<9x64xf32> to vector<1x64xf32>
    %26 = vector.broadcast %25 : vector<1x64xf32> to vector<128x64xf32>
    %27 = arith.addf %24, %26 : vector<128x64xf32>
    %cst_16 = arith.constant 0.000000e+00 : f32
    %28 = vector.broadcast %cst_16 : f32 to vector<128x64xf32>
    %29 = arith.maximumf %27, %28 : vector<128x64xf32>
    %c3 = arith.constant 3 : index
    %c0_17 = arith.constant 0 : index
    %c0_18 = arith.constant 0 : index
    %30 = vector.load %arg3[%c3, %c0_17, %c0_18] : memref<9x128x64xbf16, #tpu.memory_space<vmem>>, vector<1x64x64xbf16>
    %31 = vector.shape_cast %30 : vector<1x64x64xbf16> to vector<64x64xbf16>
    %32 = arith.truncf %29 : vector<128x64xf32> to vector<128x64xbf16>
    %cst_19 = arith.constant dense<0.000000e+00> : vector<128x64xf32>
    %33 = tpu.matmul %32, %31, %cst_19 {dimension_numbers = #tpu.dot_dimension_numbers<[1], [0], [0], [1], [0, 0, 1, 1], [], []>} : vector<128x64xbf16>, vector<64x64xbf16>, vector<128x64xf32> -> vector<128x64xf32>
    %34 = vector.extract_strided_slice %0 {offsets = [3, 0], sizes = [1, 64], strides = [1, 1]} : vector<9x64xf32> to vector<1x64xf32>
    %35 = vector.broadcast %34 : vector<1x64xf32> to vector<128x64xf32>
    %36 = arith.addf %33, %35 : vector<128x64xf32>
    %cst_20 = arith.constant 0.000000e+00 : f32
    %37 = vector.broadcast %cst_20 : f32 to vector<128x64xf32>
    %38 = arith.maximumf %36, %37 : vector<128x64xf32>
    %39 = tpu.concatenate %38, %2 in 1 : vector<128x64xf32>, vector<128x32xf32> -> vector<128x96xf32>
    %c4 = arith.constant 4 : index
    %c0_21 = arith.constant 0 : index
    %c0_22 = arith.constant 0 : index
    %40 = vector.load %arg3[%c4, %c0_21, %c0_22] : memref<9x128x64xbf16, #tpu.memory_space<vmem>>, vector<1x96x64xbf16>
    %41 = vector.shape_cast %40 : vector<1x96x64xbf16> to vector<96x64xbf16>
    %42 = arith.truncf %39 : vector<128x96xf32> to vector<128x96xbf16>
    %cst_23 = arith.constant dense<0.000000e+00> : vector<128x64xf32>
    %43 = tpu.matmul %42, %41, %cst_23 {dimension_numbers = #tpu.dot_dimension_numbers<[1], [0], [0], [1], [0, 0, 1, 1], [], []>} : vector<128x96xbf16>, vector<96x64xbf16>, vector<128x64xf32> -> vector<128x64xf32>
    %44 = vector.extract_strided_slice %0 {offsets = [4, 0], sizes = [1, 64], strides = [1, 1]} : vector<9x64xf32> to vector<1x64xf32>
    %45 = vector.broadcast %44 : vector<1x64xf32> to vector<128x64xf32>
    %46 = arith.addf %43, %45 : vector<128x64xf32>
    %cst_24 = arith.constant 0.000000e+00 : f32
    %47 = vector.broadcast %cst_24 : f32 to vector<128x64xf32>
    %48 = arith.maximumf %46, %47 : vector<128x64xf32>
    %c5 = arith.constant 5 : index
    %c0_25 = arith.constant 0 : index
    %c0_26 = arith.constant 0 : index
    %49 = vector.load %arg3[%c5, %c0_25, %c0_26] : memref<9x128x64xbf16, #tpu.memory_space<vmem>>, vector<1x64x64xbf16>
    %50 = vector.shape_cast %49 : vector<1x64x64xbf16> to vector<64x64xbf16>
    %51 = arith.truncf %48 : vector<128x64xf32> to vector<128x64xbf16>
    %cst_27 = arith.constant dense<0.000000e+00> : vector<128x64xf32>
    %52 = tpu.matmul %51, %50, %cst_27 {dimension_numbers = #tpu.dot_dimension_numbers<[1], [0], [0], [1], [0, 0, 1, 1], [], []>} : vector<128x64xbf16>, vector<64x64xbf16>, vector<128x64xf32> -> vector<128x64xf32>
    %53 = vector.extract_strided_slice %0 {offsets = [5, 0], sizes = [1, 64], strides = [1, 1]} : vector<9x64xf32> to vector<1x64xf32>
    %54 = vector.broadcast %53 : vector<1x64xf32> to vector<128x64xf32>
    %55 = arith.addf %52, %54 : vector<128x64xf32>
    %cst_28 = arith.constant 0.000000e+00 : f32
    %56 = vector.broadcast %cst_28 : f32 to vector<128x64xf32>
    %57 = arith.maximumf %55, %56 : vector<128x64xf32>
    %c6 = arith.constant 6 : index
    %c0_29 = arith.constant 0 : index
    %c0_30 = arith.constant 0 : index
    %58 = vector.load %arg3[%c6, %c0_29, %c0_30] : memref<9x128x64xbf16, #tpu.memory_space<vmem>>, vector<1x64x64xbf16>
    %59 = vector.shape_cast %58 : vector<1x64x64xbf16> to vector<64x64xbf16>
    %60 = arith.truncf %57 : vector<128x64xf32> to vector<128x64xbf16>
    %cst_31 = arith.constant dense<0.000000e+00> : vector<128x64xf32>
    %61 = tpu.matmul %60, %59, %cst_31 {dimension_numbers = #tpu.dot_dimension_numbers<[1], [0], [0], [1], [0, 0, 1, 1], [], []>} : vector<128x64xbf16>, vector<64x64xbf16>, vector<128x64xf32> -> vector<128x64xf32>
    %62 = vector.extract_strided_slice %0 {offsets = [6, 0], sizes = [1, 64], strides = [1, 1]} : vector<9x64xf32> to vector<1x64xf32>
    %63 = vector.broadcast %62 : vector<1x64xf32> to vector<128x64xf32>
    %64 = arith.addf %61, %63 : vector<128x64xf32>
    %cst_32 = arith.constant 0.000000e+00 : f32
    %65 = vector.broadcast %cst_32 : f32 to vector<128x64xf32>
    %66 = arith.maximumf %64, %65 : vector<128x64xf32>
    %c7 = arith.constant 7 : index
    %c0_33 = arith.constant 0 : index
    %c0_34 = arith.constant 0 : index
    %67 = vector.load %arg3[%c7, %c0_33, %c0_34] : memref<9x128x64xbf16, #tpu.memory_space<vmem>>, vector<1x64x64xbf16>
    %68 = vector.shape_cast %67 : vector<1x64x64xbf16> to vector<64x64xbf16>
    %69 = arith.truncf %66 : vector<128x64xf32> to vector<128x64xbf16>
    %cst_35 = arith.constant dense<0.000000e+00> : vector<128x64xf32>
    %70 = tpu.matmul %69, %68, %cst_35 {dimension_numbers = #tpu.dot_dimension_numbers<[1], [0], [0], [1], [0, 0, 1, 1], [], []>} : vector<128x64xbf16>, vector<64x64xbf16>, vector<128x64xf32> -> vector<128x64xf32>
    %71 = vector.extract_strided_slice %0 {offsets = [7, 0], sizes = [1, 64], strides = [1, 1]} : vector<9x64xf32> to vector<1x64xf32>
    %72 = vector.broadcast %71 : vector<1x64xf32> to vector<128x64xf32>
    %73 = arith.addf %70, %72 : vector<128x64xf32>
    %cst_36 = arith.constant 0.000000e+00 : f32
    %74 = vector.broadcast %cst_36 : f32 to vector<128x64xf32>
    %75 = arith.maximumf %73, %74 : vector<128x64xf32>
    %c8 = arith.constant 8 : index
    %c0_37 = arith.constant 0 : index
    %c0_38 = arith.constant 0 : index
    %76 = vector.load %arg3[%c8, %c0_37, %c0_38] : memref<9x128x64xbf16, #tpu.memory_space<vmem>>, vector<1x64x64xbf16>
    %77 = vector.shape_cast %76 : vector<1x64x64xbf16> to vector<64x64xbf16>
    %78 = arith.truncf %75 : vector<128x64xf32> to vector<128x64xbf16>
    %cst_39 = arith.constant dense<0.000000e+00> : vector<128x64xf32>
    %79 = tpu.matmul %78, %77, %cst_39 {dimension_numbers = #tpu.dot_dimension_numbers<[1], [0], [0], [1], [0, 0, 1, 1], [], []>} : vector<128x64xbf16>, vector<64x64xbf16>, vector<128x64xf32> -> vector<128x64xf32>
    %80 = vector.extract_strided_slice %0 {offsets = [8, 0], sizes = [1, 64], strides = [1, 1]} : vector<9x64xf32> to vector<1x64xf32>
    %81 = vector.broadcast %80 : vector<1x64xf32> to vector<128x64xf32>
    %82 = arith.addf %79, %81 : vector<128x64xf32>
    %c0_40 = arith.constant 0 : index
    %c0_41 = arith.constant 0 : index
    %83 = vector.load %arg2[%c0_40, %c0_41] : memref<128x16xf32, #tpu.memory_space<vmem>>, vector<128x16xf32>
    %84 = tpu.concatenate %82, %83 in 1 : vector<128x64xf32>, vector<128x16xf32> -> vector<128x80xf32>
    %85 = arith.truncf %84 : vector<128x80xf32> to vector<128x80xbf16>
    %c0_42 = arith.constant 0 : index
    %c0_43 = arith.constant 0 : index
    %86 = vector.load %arg5[%c0_42, %c0_43] : memref<80x32xbf16, #tpu.memory_space<vmem>>, vector<80x32xbf16>
    %cst_44 = arith.constant dense<0.000000e+00> : vector<128x32xf32>
    %87 = tpu.matmul %85, %86, %cst_44 {dimension_numbers = #tpu.dot_dimension_numbers<[1], [0], [0], [1], [0, 0, 1, 1], [], []>} : vector<128x80xbf16>, vector<80x32xbf16>, vector<128x32xf32> -> vector<128x32xf32>
    %88 = vector.extract_strided_slice %1 {offsets = [0, 0], sizes = [1, 32], strides = [1, 1]} : vector<3x32xf32> to vector<1x32xf32>
    %89 = vector.broadcast %88 : vector<1x32xf32> to vector<128x32xf32>
    %90 = arith.addf %87, %89 : vector<128x32xf32>
    %cst_45 = arith.constant 0.000000e+00 : f32
    %91 = vector.broadcast %cst_45 : f32 to vector<128x32xf32>
    %92 = arith.maximumf %90, %91 : vector<128x32xf32>
    %93 = vector.extract_strided_slice %1 {offsets = [1, 0], sizes = [1, 32], strides = [1, 1]} : vector<3x32xf32> to vector<1x32xf32>
    %94 = vector.broadcast %93 : vector<1x32xf32> to vector<128x32xf32>
    %95 = arith.mulf %92, %94 : vector<128x32xf32>
    %cst_46 = arith.constant dense<0.000000e+00> : vector<128xf32>
    %96 = vector.multi_reduction <add>, %95, %cst_46 [1] : vector<128x32xf32> to vector<128xf32>
    %97 = vector.shape_cast %96 : vector<128xf32> to vector<128x1xf32>
    %98 = vector.extract_strided_slice %1 {offsets = [2, 0], sizes = [1, 1], strides = [1, 1]} : vector<3x32xf32> to vector<1x1xf32>
    %99 = vector.broadcast %98 : vector<1x1xf32> to vector<128x1xf32>
    %100 = arith.addf %97, %99 : vector<128x1xf32>
    %c0_47 = arith.constant 0 : index
    %c0_48 = arith.constant 0 : index
    %101 = vector.load %arg7[%c0_47, %c0_48] : memref<128x1xf32, #tpu.memory_space<vmem>>, vector<128x1xf32>
    tpu.vector_store %arg7[%c0_47, %c0_48], %100 {strides = array<i32>} : memref<128x1xf32, #tpu.memory_space<vmem>>, vector<128x1xf32>,
    return
  }
  func.func @transform_0(%arg0: i32) -> (i32, i32) {
    %c0_i32 = arith.constant 0 : i32
    %c0_i32_0 = arith.constant 0 : i32
    return %arg0, %c0_i32 : i32, i32
  }
  func.func @transform_1(%arg0: i32) -> (i32, i32) {
    %c0_i32 = arith.constant 0 : i32
    %c0_i32_0 = arith.constant 0 : i32
    return %arg0, %c0_i32 : i32, i32
  }
  func.func @transform_2(%arg0: i32) -> (i32, i32, i32) {
    %c0_i32 = arith.constant 0 : i32
    %c0_i32_0 = arith.constant 0 : i32
    %c0_i32_1 = arith.constant 0 : i32
    %c0_i32_2 = arith.constant 0 : i32
    return %c0_i32, %c0_i32_0, %c0_i32_1 : i32, i32, i32
  }
  func.func @transform_3(%arg0: i32) -> (i32, i32) {
    %c0_i32 = arith.constant 0 : i32
    %c0_i32_0 = arith.constant 0 : i32
    %c0_i32_1 = arith.constant 0 : i32
    return %c0_i32, %c0_i32_0 : i32, i32
  }
  func.func @transform_4(%arg0: i32) -> (i32, i32) {
    %c0_i32 = arith.constant 0 : i32
    %c0_i32_0 = arith.constant 0 : i32
    %c0_i32_1 = arith.constant 0 : i32
    return %c0_i32, %c0_i32_0 : i32, i32
  }
  func.func @transform_5(%arg0: i32) -> (i32, i32) {
    %c0_i32 = arith.constant 0 : i32
    %c0_i32_0 = arith.constant 0 : i32
    %c0_i32_1 = arith.constant 0 : i32
    return %c0_i32, %c0_i32_0 : i32, i32
  }
  func.func @transform_6(%arg0: i32) -> (i32, i32) {
    %c0_i32 = arith.constant 0 : i32
    %c0_i32_0 = arith.constant 0 : i32
    return %arg0, %c0_i32 : i32, i32
  }
}

</mosaic_0001>

<llo_original>
// kernel: official_nerf_vae_forward.3
$region0: #{official_nerf_vae_forward.3}
  #allocation0 [shape = 'u32[]', space=smem, size = 0x4, offset = 0x4, fixed_abs, tag = 'smem constant byte address 0x4 - core index']
  #allocation1 [shape = 'u32[144,128]{1,0:T(1,128)}', space=vmem, size = 0x12000, scoped, tag = 'internal scratch']
  %s0 = inlined_call_operand.vmem [shape: f32[128,32], index: 0, kind: input, shape index: {}]
  %s1 = inlined_call_operand.vmem [shape: f32[128,16], index: 1, kind: input, shape index: {}]
  %s2 = inlined_call_operand.vmem [shape: bf16[9,128,64], index: 2, kind: input, shape index: {}]
  %s3 = inlined_call_operand.vmem [shape: f32[9,64], index: 3, kind: input, shape index: {}]
  %s4 = inlined_call_operand.vmem [shape: bf16[80,32], index: 4, kind: input, shape index: {}]
  %s5 = inlined_call_operand.vmem [shape: f32[3,32], index: 5, kind: input, shape index: {}]
  %s6 = inlined_call_operand.vmem [shape: f32[128,1], index: 6, kind: output, shape index: {}]
  %s7 = sld [smem:[#allocation0]]
  $region34: #{official_nerf_vae_forward.3} parent=0
    _
  %s9 = ssub.s32 1, %s7
  %s10 = scalar_select 0, %s9, %s7
  // Predicated region
  $region2: #{official_nerf_vae_forward.3} parent=0 // pred_check
    _
  $region3: #{official_nerf_vae_forward.3} parent=0 // pred_check_branch
    %12 = sbr.rel (0) target = $region5
  $region4: #{official_nerf_vae_forward.3} parent=0 // pred_region
    _
  $region5: #{official_nerf_vae_forward.3} parent=0 // pred_fallthru
    _
  // Predicated region
  $region6: #{official_nerf_vae_forward.3} parent=0 // pred_check
    _
  $region7: #{official_nerf_vae_forward.3} parent=0 // pred_check_branch
    %14 = sbr.rel (0) target = $region9
  $region8: #{official_nerf_vae_forward.3} parent=0 // pred_region
    _
  $region9: #{official_nerf_vae_forward.3} parent=0 // pred_fallthru
    _
  // Predicated region
  $region10: #{official_nerf_vae_forward.3} parent=0 // pred_check
    _
  $region11: #{official_nerf_vae_forward.3} parent=0 // pred_check_branch
    %16 = sbr.rel (0) target = $region13
  $region12: #{official_nerf_vae_forward.3} parent=0 // pred_region
    _
  $region13: #{official_nerf_vae_forward.3} parent=0 // pred_fallthru
    _
  // Predicated region
  $region14: #{official_nerf_vae_forward.3} parent=0 // pred_check
    _
  $region15: #{official_nerf_vae_forward.3} parent=0 // pred_check_branch
    %18 = sbr.rel (0) target = $region17
  $region16: #{official_nerf_vae_forward.3} parent=0 // pred_region
    _
  $region17: #{official_nerf_vae_forward.3} parent=0 // pred_fallthru
    _
  // Predicated region
  $region18: #{official_nerf_vae_forward.3} parent=0 // pred_check
    _
  $region19: #{official_nerf_vae_forward.3} parent=0 // pred_check_branch
    %20 = sbr.rel (0) target = $region21
  $region20: #{official_nerf_vae_forward.3} parent=0 // pred_region
    _
  $region21: #{official_nerf_vae_forward.3} parent=0 // pred_fallthru
    _
  // Predicated region
  $region22: #{official_nerf_vae_forward.3} parent=0 // pred_check
    _
  $region23: #{official_nerf_vae_forward.3} parent=0 // pred_check_branch
    %22 = sbr.rel (0) target = $region25
  $region24: #{official_nerf_vae_forward.3} parent=0 // pred_region
    _
  $region25: #{official_nerf_vae_forward.3} parent=0 // pred_fallthru
    _
  %v24 = vld [vmem:[%s3] sm:$0xff]
  %v25 = vld [vmem:[%s3 + $0x8] sm:$0x1]
  %v26 = vld [vmem:[%s5] sm:$0x7]
  %v27 = vld [vmem:[%s0] sm:$0xff]
  %v28 = vld [vmem:[%s0 + $0x8] sm:$0xff]
  %v29 = vld [vmem:[%s0 + $0x10] sm:$0xff]
  %v30 = vld [vmem:[%s0 + $0x18] sm:$0xff]
  %v31 = vld [vmem:[%s0 + $0x20] sm:$0xff]
  %v32 = vld [vmem:[%s0 + $0x28] sm:$0xff]
  %v33 = vld [vmem:[%s0 + $0x30] sm:$0xff]
  %v34 = vld [vmem:[%s0 + $0x38] sm:$0xff]
  %v35 = vld [vmem:[%s0 + $0x40] sm:$0xff]
  %v36 = vld [vmem:[%s0 + $0x48] sm:$0xff]
  %v37 = vld [vmem:[%s0 + $0x50] sm:$0xff]
  %v38 = vld [vmem:[%s0 + $0x58] sm:$0xff]
  %v39 = vld [vmem:[%s0 + $0x60] sm:$0xff]
  %v40 = vld [vmem:[%s0 + $0x68] sm:$0xff]
  %v41 = vld [vmem:[%s0 + $0x70] sm:$0xff]
  %v42 = vld [vmem:[%s0 + $0x78] sm:$0xff]
  %v43 = vld [vmem:[%s2] sm:$0xf]
  %v44 = vld [vmem:[%s2 + $0x4] sm:$0xf]
  %v45 = vld [vmem:[%s2 + $0x8] sm:$0xf]
  %v46 = vld [vmem:[%s2 + $0xc] sm:$0xf]
  %v47 = vpack.c.bf16 %v28, %v27
  %v48 = vpack.c.bf16 %v30, %v29
  %v49 = vpack.c.bf16 %v32, %v31
  %v50 = vpack.c.bf16 %v34, %v33
  %v51 = vpack.c.bf16 %v36, %v35
  %v52 = vpack.c.bf16 %v38, %v37
  %v53 = vpack.c.bf16 %v40, %v39
  %v54 = vpack.c.bf16 %v42, %v41
  %v55 = vlaneseq
  %v56 = vshrl.u32 %v55, 7
  %v57 = vsub.s32 0, %v56
  %v58 = vrot.slane %v24, %v57
  %v63 = vunpack.c.l.b16 %v43
  %v64 = vunpack.c.l.b16 %v44
  %v65 = vunpack.c.l.b16 %v45
  %v66 = vunpack.c.l.b16 %v46
  %v67 = vpack.c.b16 %v64, %v63
  %v68 = vpack.c.b16 %v66, %v65
  %vm71 = vcmask 261120
  %v73 = vsel %vm71, %v47, 0
  %v76 = vsel %vm71, %v48, 0
  %v79 = vsel %vm71, %v49, 0
  %v82 = vsel %vm71, %v50, 0
  %v85 = vsel %vm71, %v51, 0
  %v88 = vsel %vm71, %v52, 0
  %v91 = vsel %vm71, %v53, 0
  %v94 = vsel %vm71, %v54, 0
  %96 = vmatprep.subr.bf16.mxu0 0
  %97 = vmatpush1.bf16.msra.mxu0 %v67
  %98 = vmatprep.subr.bf16.mxu0 0
  %99 = vmatpush1.bf16.msra.mxu0 %v68
  %100 = vmatprep.subr.bf16.mxu0 0
  %101 = vmatpush1.bf16.msra.mxu0 0
  %102 = vmatprep.subr.bf16.mxu0 0
  %103 = vmatpush1.bf16.msra.mxu0 0
  %104 = vmatprep.subr.bf16.mxu0 0
  %105 = vmatpush1.bf16.msra.mxu0 0
  %106 = vmatprep.subr.bf16.mxu0 0
  %107 = vmatpush1.bf16.msra.mxu0 0
  %108 = vmatprep.subr.bf16.mxu0 0
  %109 = vmatpush1.bf16.msra.mxu0 0
  %110 = vmatprep.subr.bf16.mxu0 0
  %111 = vmatpush1.bf16.msra.mxu0 0
  %112 = vmatprep.subr.bf16.mxu0 0
  %113 = vmatpush1.bf16.msra.mxu0 0
  %114 = vmatprep.subr.bf16.mxu0 0
  %115 = vmatpush1.bf16.msra.mxu0 0
  %116 = vmatprep.subr.bf16.mxu0 0
  %117 = vmatpush1.bf16.msra.mxu0 0
  %118 = vmatprep.subr.bf16.mxu0 0
  %119 = vmatpush1.bf16.msra.mxu0 0
  %120 = vmatprep.subr.bf16.mxu0 0
  %121 = vmatpush1.bf16.msra.mxu0 0
  %122 = vmatprep.subr.bf16.mxu0 0
  %123 = vmatpush1.bf16.msra.mxu0 0
  %124 = vmatprep.subr.bf16.mxu0 0
  %125 = vmatpush1.bf16.msra.mxu0 0
  %126 = vmatprep.subr.bf16.mxu0 0
  %127 = vmatpush1.bf16.msra.mxu0 0
  %128 = vmatprep.mubr.bf16.mxu0 0
  %129 = vmatmul.mubr.bf16.gmra.mrb[0].mxu0 %v73
  %v130 = vpop.f32.mrb[0].mxu0
  %v131 = vadd.f32 %v58, %v130
  %v132 = vpop.f32.mrb[0].mxu0
  %v133 = vpop.f32.mrb[0].mxu0
  %v134 = vadd.f32 %v58, %v133
  %v135 = vpop.f32.mrb[0].mxu0
  %136 = vmatprep.mubr.bf16.mxu0 0
  %137 = vmatmul.mubr.bf16.gmra.mrb[0].mxu0 %v76
  %v138 = vpop.f32.mrb[0].mxu0
  %v139 = vadd.f32 %v58, %v138
  %v140 = vpop.f32.mrb[0].mxu0
  %v141 = vpop.f32.mrb[0].mxu0
  %v142 = vadd.f32 %v58, %v141
  %v143 = vpop.f32.mrb[0].mxu0
  %144 = vmatprep.mubr.bf16.mxu0 0
  %145 = vmatmul.mubr.bf16.gmra.mrb[0].mxu0 %v79
  %v146 = vpop.f32.mrb[0].mxu0
  %v147 = vadd.f32 %v58, %v146
  %v148 = vpop.f32.mrb[0].mxu0
  %v149 = vpop.f32.mrb[0].mxu0
  %v150 = vadd.f32 %v58, %v149
  %v151 = vpop.f32.mrb[0].mxu0
  %152 = vmatprep.mubr.bf16.mxu0 0
  %153 = vmatmul.mubr.bf16.gmra.mrb[0].mxu0 %v82
  %v154 = vpop.f32.mrb[0].mxu0
  %v155 = vadd.f32 %v58, %v154
  %v156 = vpop.f32.mrb[0].mxu0
  %v157 = vpop.f32.mrb[0].mxu0
  %v158 = vadd.f32 %v58, %v157
  %v159 = vpop.f32.mrb[0].mxu0
  %160 = vmatprep.mubr.bf16.mxu0 0
  %161 = vmatmul.mubr.bf16.gmra.mrb[0].mxu0 %v85
  %v162 = vpop.f32.mrb[0].mxu0
  %v163 = vadd.f32 %v58, %v162
  %v164 = vpop.f32.mrb[0].mxu0
  %v165 = vpop.f32.mrb[0].mxu0
  %v166 = vadd.f32 %v58, %v165
  %v167 = vpop.f32.mrb[0].mxu0
  %168 = vmatprep.mubr.bf16.mxu0 0
  %169 = vmatmul.mubr.bf16.gmra.mrb[0].mxu0 %v88
  %v170 = vpop.f32.mrb[0].mxu0
  %v171 = vadd.f32 %v58, %v170
  %v172 = vpop.f32.mrb[0].mxu0
  %v173 = vpop.f32.mrb[0].mxu0
  %v174 = vadd.f32 %v58, %v173
  %v175 = vpop.f32.mrb[0].mxu0
  %176 = vmatprep.mubr.bf16.mxu0 0
  %177 = vmatmul.mubr.bf16.gmra.mrb[0].mxu0 %v91
  %v178 = vpop.f32.mrb[0].mxu0
  %v179 = vadd.f32 %v58, %v178
  %v180 = vpop.f32.mrb[0].mxu0
  %v181 = vpop.f32.mrb[0].mxu0
  %v182 = vadd.f32 %v58, %v181
  %v183 = vpop.f32.mrb[0].mxu0
  %184 = vmatprep.mubr.bf16.mxu0 0
  %185 = vmatmul.mubr.bf16.gmra.mrb[0].mxu0 %v94
  %v186 = vpop.f32.mrb[0].mxu0
  %v187 = vadd.f32 %v58, %v186
  %v188 = vpop.f32.mrb[0].mxu0
  %v189 = vpop.f32.mrb[0].mxu0
  %v190 = vadd.f32 %v58, %v189
  %v191 = vpop.f32.mrb[0].mxu0
  %192 = vdwg.mxu0
  %v193 = vmax.f32 %v131, 0.0
  %v194 = vmax.f32 %v134, 0.0
  %v195 = vmax.f32 %v139, 0.0
  %v196 = vmax.f32 %v142, 0.0
  %v197 = vmax.f32 %v147, 0.0
  %v198 = vmax.f32 %v150, 0.0
  %v199 = vmax.f32 %v155, 0.0
  %v200 = vmax.f32 %v158, 0.0
  %v201 = vmax.f32 %v163, 0.0
  %v202 = vmax.f32 %v166, 0.0
  %v203 = vmax.f32 %v171, 0.0
  %v204 = vmax.f32 %v174, 0.0
  %v205 = vmax.f32 %v179, 0.0
  %v206 = vmax.f32 %v182, 0.0
  %v207 = vmax.f32 %v187, 0.0
  %v208 = vmax.f32 %v190, 0.0
  %s209 = scalar_lea.vmem %s2, 64
  %v210 = vld [vmem:[%s209] sm:$0xf]
  %v211 = vld [vmem:[%s209 + $0x4] sm:$0xf]
  %v212 = vld [vmem:[%s209 + $0x8] sm:$0xf]
  %v213 = vld [vmem:[%s209 + $0xc] sm:$0xf]
  %v214 = vld [vmem:[%s209 + $0x10] sm:$0xf]
  %v215 = vld [vmem:[%s209 + $0x14] sm:$0xf]
  %v216 = vld [vmem:[%s209 + $0x18] sm:$0xf]
  %v217 = vld [vmem:[%s209 + $0x1c] sm:$0xf]
  %v218 = vpack.c.bf16 %v194, %v193
  %v219 = vpack.c.bf16 %v196, %v195
  %v220 = vpack.c.bf16 %v198, %v197
  %v221 = vpack.c.bf16 %v200, %v199
  %v222 = vpack.c.bf16 %v202, %v201
  %v223 = vpack.c.bf16 %v204, %v203
  %v224 = vpack.c.bf16 %v206, %v205
  %v225 = vpack.c.bf16 %v208, %v207
  %v226 = vlaneseq
  %v227 = vshrl.u32 %v226, 7
  %v228 = vsub.s32 1, %v227
  %v229 = vrot.slane %v24, %v228
  %v238 = vunpack.c.l.b16 %v210
  %v239 = vunpack.c.l.b16 %v211
  %v240 = vunpack.c.l.b16 %v212
  %v241 = vunpack.c.l.b16 %v213
  %v242 = vunpack.c.l.b16 %v214
  %v243 = vunpack.c.l.b16 %v215
  %v244 = vunpack.c.l.b16 %v216
  %v245 = vunpack.c.l.b16 %v217
  %v246 = vpack.c.b16 %v239, %v238
  %v247 = vpack.c.b16 %v241, %v240
  %v248 = vpack.c.b16 %v243, %v242
  %v249 = vpack.c.b16 %v245, %v244
  %vm254 = vcmask 523264
  %v256 = vsel %vm254, %v218, 0
  %v259 = vsel %vm254, %v219, 0
  %v262 = vsel %vm254, %v220, 0
  %v265 = vsel %vm254, %v221, 0
  %v268 = vsel %vm254, %v222, 0
  %v271 = vsel %vm254, %v223, 0
  %v274 = vsel %vm254, %v224, 0
  %v277 = vsel %vm254, %v225, 0
  %279 = vmatprep.subr.bf16.mxu0 0
  %280 = vmatpush1.bf16.msra.mxu0 %v246
  %281 = vmatprep.subr.bf16.mxu0 0
  %282 = vmatpush1.bf16.msra.mxu0 %v247
  %283 = vmatprep.subr.bf16.mxu0 0
  %284 = vmatpush1.bf16.msra.mxu0 %v248
  %285 = vmatprep.subr.bf16.mxu0 0
  %286 = vmatpush1.bf16.msra.mxu0 %v249
  %287 = vmatprep.subr.bf16.mxu0 0
  %288 = vmatpush1.bf16.msra.mxu0 0
  %289 = vmatprep.subr.bf16.mxu0 0
  %290 = vmatpush1.bf16.msra.mxu0 0
  %291 = vmatprep.subr.bf16.mxu0 0
  %292 = vmatpush1.bf16.msra.mxu0 0
  %293 = vmatprep.subr.bf16.mxu0 0
  %294 = vmatpush1.bf16.msra.mxu0 0
  %295 = vmatprep.subr.bf16.mxu0 0
  %296 = vmatpush1.bf16.msra.mxu0 0
  %297 = vmatprep.subr.bf16.mxu0 0
  %298 = vmatpush1.bf16.msra.mxu0 0
  %299 = vmatprep.subr.bf16.mxu0 0
  %300 = vmatpush1.bf16.msra.mxu0 0
  %301 = vmatprep.subr.bf16.mxu0 0
  %302 = vmatpush1.bf16.msra.mxu0 0
  %303 = vmatprep.subr.bf16.mxu0 0
  %304 = vmatpush1.bf16.msra.mxu0 0
  %305 = vmatprep.subr.bf16.mxu0 0
  %306 = vmatpush1.bf16.msra.mxu0 0
  %307 = vmatprep.subr.bf16.mxu0 0
  %308 = vmatpush1.bf16.msra.mxu0 0
  %309 = vmatprep.subr.bf16.mxu0 0
  %310 = vmatpush1.bf16.msra.mxu0 0
  %311 = vmatprep.mubr.bf16.mxu0 0
  %312 = vmatmul.mubr.bf16.gmra.mrb[0].mxu0 %v256
  %v313 = vpop.f32.mrb[0].mxu0
  %v314 = vadd.f32 %v229, %v313
  %v315 = vpop.f32.mrb[0].mxu0
  %v316 = vpop.f32.mrb[0].mxu0
  %v317 = vadd.f32 %v229, %v316
  %v318 = vpop.f32.mrb[0].mxu0
  %319 = vmatprep.mubr.bf16.mxu0 0
  %320 = vmatmul.mubr.bf16.gmra.mrb[0].mxu0 %v259
  %v321 = vpop.f32.mrb[0].mxu0
  %v322 = vadd.f32 %v229, %v321
  %v323 = vpop.f32.mrb[0].mxu0
  %v324 = vpop.f32.mrb[0].mxu0
  %v325 = vadd.f32 %v229, %v324
  %v326 = vpop.f32.mrb[0].mxu0
  %327 = vmatprep.mubr.bf16.mxu0 0
  %328 = vmatmul.mubr.bf16.gmra.mrb[0].mxu0 %v262
  %v329 = vpop.f32.mrb[0].mxu0
  %v330 = vadd.f32 %v229, %v329
  %v331 = vpop.f32.mrb[0].mxu0
  %v332 = vpop.f32.mrb[0].mxu0
  %v333 = vadd.f32 %v229, %v332
  %v334 = vpop.f32.mrb[0].mxu0
  %335 = vmatprep.mubr.bf16.mxu0 0
  %336 = vmatmul.mubr.bf16.gmra.mrb[0].mxu0 %v265
  %v337 = vpop.f32.mrb[0].mxu0
  %v338 = vadd.f32 %v229, %v337
  %v339 = vpop.f32.mrb[0].mxu0
  %v340 = vpop.f32.mrb[0].mxu0
  %v341 = vadd.f32 %v229, %v340
  %v342 = vpop.f32.mrb[0].mxu0
  %343 = vmatprep.mubr.bf16.mxu0 0
  %344 = vmatmul.mubr.bf16.gmra.mrb[0].mxu0 %v268
  %v345 = vpop.f32.mrb[0].mxu0
  %v346 = vadd.f32 %v229, %v345
  %v347 = vpop.f32.mrb[0].mxu0
  %v348 = vpop.f32.mrb[0].mxu0
  %v349 = vadd.f32 %v229, %v348
  %v350 = vpop.f32.mrb[0].mxu0
  %351 = vmatprep.mubr.bf16.mxu0 0
  %352 = vmatmul.mubr.bf16.gmra.mrb[0].mxu0 %v271
  %v353 = vpop.f32.mrb[0].mxu0
  %v354 = vadd.f32 %v229, %v353
  %v355 = vpop.f32.mrb[0].mxu0
  %v356 = vpop.f32.mrb[0].mxu0
  %v357 = vadd.f32 %v229, %v356
  %v358 = vpop.f32.mrb[0].mxu0
  %359 = vmatprep.mubr.bf16.mxu0 0
  %360 = vmatmul.mubr.bf16.gmra.mrb[0].mxu0 %v274
  %v361 = vpop.f32.mrb[0].mxu0
  %v362 = vadd.f32 %v229, %v361
  %v363 = vpop.f32.mrb[0].mxu0
  %v364 = vpop.f32.mrb[0].mxu0
  %v365 = vadd.f32 %v229, %v364
  %v366 = vpop.f32.mrb[0].mxu0
  %367 = vmatprep.mubr.bf16.mxu0 0
  %368 = vmatmul.mubr.bf16.gmra.mrb[0].mxu0 %v277
  %v369 = vpop.f32.mrb[0].mxu0
  %v370 = vadd.f32 %v229, %v369
  %v371 = vpop.f32.mrb[0].mxu0
  %v372 = vpop.f32.mrb[0].mxu0
  %v373 = vadd.f32 %v229, %v372
  %v374 = vpop.f32.mrb[0].mxu0
  %375 = vdwg.mxu0
  %v376 = vmax.f32 %v314, 0.0
  %v377 = vmax.f32 %v317, 0.0
  %v378 = vmax.f32 %v322, 0.0
  %v379 = vmax.f32 %v325, 0.0
  %v380 = vmax.f32 %v330, 0.0
  %v381 = vmax.f32 %v333, 0.0
  %v382 = vmax.f32 %v338, 0.0
  %v383 = vmax.f32 %v341, 0.0
  %v384 = vmax.f32 %v346, 0.0
  %v385 = vmax.f32 %v349, 0.0
  %v386 = vmax.f32 %v354, 0.0
  %v387 = vmax.f32 %v357, 0.0
  %v388 = vmax.f32 %v362, 0.0
  %v389 = vmax.f32 %v365, 0.0
  %v390 = vmax.f32 %v370, 0.0
  %v391 = vmax.f32 %v373, 0.0
  %s392 = scalar_lea.vmem %s2, 128
  %v393 = vld [vmem:[%s392] sm:$0xf]
  %v394 = vld [vmem:[%s392 + $0x4] sm:$0xf]
  %v395 = vld [vmem:[%s392 + $0x8] sm:$0xf]
  %v396 = vld [vmem:[%s392 + $0xc] sm:$0xf]
  %v397 = vld [vmem:[%s392 + $0x10] sm:$0xf]
  %v398 = vld [vmem:[%s392 + $0x14] sm:$0xf]
  %v399 = vld [vmem:[%s392 + $0x18] sm:$0xf]
  %v400 = vld [vmem:[%s392 + $0x1c] sm:$0xf]
  %v401 = vpack.c.bf16 %v377, %v376
  %v402 = vpack.c.bf16 %v379, %v378
  %v403 = vpack.c.bf16 %v381, %v380
  %v404 = vpack.c.bf16 %v383, %v382
  %v405 = vpack.c.bf16 %v385, %v384
  %v406 = vpack.c.bf16 %v387, %v386
  %v407 = vpack.c.bf16 %v389, %v388
  %v408 = vpack.c.bf16 %v391, %v390
  %v409 = vlaneseq
  %v410 = vshrl.u32 %v409, 7
  %v411 = vsub.s32 2, %v410
  %v412 = vrot.slane %v24, %v411
  %v421 = vunpack.c.l.b16 %v393
  %v422 = vunpack.c.l.b16 %v394
  %v423 = vunpack.c.l.b16 %v395
  %v424 = vunpack.c.l.b16 %v396
  %v425 = vunpack.c.l.b16 %v397
  %v426 = vunpack.c.l.b16 %v398
  %v427 = vunpack.c.l.b16 %v399
  %v428 = vunpack.c.l.b16 %v400
  %v429 = vpack.c.b16 %v422, %v421
  %v430 = vpack.c.b16 %v424, %v423
  %v431 = vpack.c.b16 %v426, %v425
  %v432 = vpack.c.b16 %v428, %v427
  %v438 = vsel %vm254, %v401, 0
  %v441 = vsel %vm254, %v402, 0
  %v444 = vsel %vm254, %v403, 0
  %v447 = vsel %vm254, %v404, 0
  %v450 = vsel %vm254, %v405, 0
  %v453 = vsel %vm254, %v406, 0
  %v456 = vsel %vm254, %v407, 0
  %v459 = vsel %vm254, %v408, 0
  %461 = vmatprep.subr.bf16.mxu0 0
  %462 = vmatpush1.bf16.msra.mxu0 %v429
  %463 = vmatprep.subr.bf16.mxu0 0
  %464 = vmatpush1.bf16.msra.mxu0 %v430
  %465 = vmatprep.subr.bf16.mxu0 0
  %466 = vmatpush1.bf16.msra.mxu0 %v431
  %467 = vmatprep.subr.bf16.mxu0 0
  %468 = vmatpush1.bf16.msra.mxu0 %v432
  %469 = vmatprep.subr.bf16.mxu0 0
  %470 = vmatpush1.bf16.msra.mxu0 0
  %471 = vmatprep.subr.bf16.mxu0 0
  %472 = vmatpush1.bf16.msra.mxu0 0
  %473 = vmatprep.subr.bf16.mxu0 0
  %474 = vmatpush1.bf16.msra.mxu0 0
  %475 = vmatprep.subr.bf16.mxu0 0
  %476 = vmatpush1.bf16.msra.mxu0 0
  %477 = vmatprep.subr.bf16.mxu0 0
  %478 = vmatpush1.bf16.msra.mxu0 0
  %479 = vmatprep.subr.bf16.mxu0 0
  %480 = vmatpush1.bf16.msra.mxu0 0
  %481 = vmatprep.subr.bf16.mxu0 0
  %482 = vmatpush1.bf16.msra.mxu0 0
  %483 = vmatprep.subr.bf16.mxu0 0
  %484 = vmatpush1.bf16.msra.mxu0 0
  %485 = vmatprep.subr.bf16.mxu0 0
  %486 = vmatpush1.bf16.msra.mxu0 0
  %487 = vmatprep.subr.bf16.mxu0 0
  %488 = vmatpush1.bf16.msra.mxu0 0
  %489 = vmatprep.subr.bf16.mxu0 0
  %490 = vmatpush1.bf16.msra.mxu0 0
  %491 = vmatprep.subr.bf16.mxu0 0
  %492 = vmatpush1.bf16.msra.mxu0 0
  %493 = vmatprep.mubr.bf16.mxu0 0
  %494 = vmatmul.mubr.bf16.gmra.mrb[0].mxu0 %v438
  %v495 = vpop.f32.mrb[0].mxu0
  %v496 = vadd.f32 %v412, %v495
  %v497 = vpop.f32.mrb[0].mxu0
  %v498 = vpop.f32.mrb[0].mxu0
  %v499 = vadd.f32 %v412, %v498
  %v500 = vpop.f32.mrb[0].mxu0
  %501 = vmatprep.mubr.bf16.mxu0 0
  %502 = vmatmul.mubr.bf16.gmra.mrb[0].mxu0 %v441
  %v503 = vpop.f32.mrb[0].mxu0
  %v504 = vadd.f32 %v412, %v503
  %v505 = vpop.f32.mrb[0].mxu0
  %v506 = vpop.f32.mrb[0].mxu0
  %v507 = vadd.f32 %v412, %v506
  %v508 = vpop.f32.mrb[0].mxu0
  %509 = vmatprep.mubr.bf16.mxu0 0
  %510 = vmatmul.mubr.bf16.gmra.mrb[0].mxu0 %v444
  %v511 = vpop.f32.mrb[0].mxu0
  %v512 = vadd.f32 %v412, %v511
  %v513 = vpop.f32.mrb[0].mxu0
  %v514 = vpop.f32.mrb[0].mxu0
  %v515 = vadd.f32 %v412, %v514
  %v516 = vpop.f32.mrb[0].mxu0
  %517 = vmatprep.mubr.bf16.mxu0 0
  %518 = vmatmul.mubr.bf16.gmra.mrb[0].mxu0 %v447
  %v519 = vpop.f32.mrb[0].mxu0
  %v520 = vadd.f32 %v412, %v519
  %v521 = vpop.f32.mrb[0].mxu0
  %v522 = vpop.f32.mrb[0].mxu0
  %v523 = vadd.f32 %v412, %v522
  %v524 = vpop.f32.mrb[0].mxu0
  %525 = vmatprep.mubr.bf16.mxu0 0
  %526 = vmatmul.mubr.bf16.gmra.mrb[0].mxu0 %v450
  %v527 = vpop.f32.mrb[0].mxu0
  %v528 = vadd.f32 %v412, %v527
  %v529 = vpop.f32.mrb[0].mxu0
  %v530 = vpop.f32.mrb[0].mxu0
  %v531 = vadd.f32 %v412, %v530
  %v532 = vpop.f32.mrb[0].mxu0
  %533 = vmatprep.mubr.bf16.mxu0 0
  %534 = vmatmul.mubr.bf16.gmra.mrb[0].mxu0 %v453
  %v535 = vpop.f32.mrb[0].mxu0
  %v536 = vadd.f32 %v412, %v535
  %v537 = vpop.f32.mrb[0].mxu0
  %v538 = vpop.f32.mrb[0].mxu0
  %v539 = vadd.f32 %v412, %v538
  %v540 = vpop.f32.mrb[0].mxu0
  %541 = vmatprep.mubr.bf16.mxu0 0
  %542 = vmatmul.mubr.bf16.gmra.mrb[0].mxu0 %v456
  %v543 = vpop.f32.mrb[0].mxu0
  %v544 = vadd.f32 %v412, %v543
  %v545 = vpop.f32.mrb[0].mxu0
  %v546 = vpop.f32.mrb[0].mxu0
  %v547 = vadd.f32 %v412, %v546
  %v548 = vpop.f32.mrb[0].mxu0
  %549 = vmatprep.mubr.bf16.mxu0 0
  %550 = vmatmul.mubr.bf16.gmra.mrb[0].mxu0 %v459
  %v551 = vpop.f32.mrb[0].mxu0
  %v552 = vadd.f32 %v412, %v551
  %v553 = vpop.f32.mrb[0].mxu0
  %v554 = vpop.f32.mrb[0].mxu0
  %v555 = vadd.f32 %v412, %v554
  %v556 = vpop.f32.mrb[0].mxu0
  %557 = vdwg.mxu0
  %v558 = vmax.f32 %v496, 0.0
  %v559 = vmax.f32 %v499, 0.0
  %v560 = vmax.f32 %v504, 0.0
  %v561 = vmax.f32 %v507, 0.0
  %v562 = vmax.f32 %v512, 0.0
  %v563 = vmax.f32 %v515, 0.0
  %v564 = vmax.f32 %v520, 0.0
  %v565 = vmax.f32 %v523, 0.0
  %v566 = vmax.f32 %v528, 0.0
  %v567 = vmax.f32 %v531, 0.0
  %v568 = vmax.f32 %v536, 0.0
  %v569 = vmax.f32 %v539, 0.0
  %v570 = vmax.f32 %v544, 0.0
  %v571 = vmax.f32 %v547, 0.0
  %v572 = vmax.f32 %v552, 0.0
  %v573 = vmax.f32 %v555, 0.0
  %s574 = scalar_lea.vmem %s2, 192
  %v575 = vld [vmem:[%s574] sm:$0xf]
  %v576 = vld [vmem:[%s574 + $0x4] sm:$0xf]
  %v577 = vld [vmem:[%s574 + $0x8] sm:$0xf]
  %v578 = vld [vmem:[%s574 + $0xc] sm:$0xf]
  %v579 = vld [vmem:[%s574 + $0x10] sm:$0xf]
  %v580 = vld [vmem:[%s574 + $0x14] sm:$0xf]
  %v581 = vld [vmem:[%s574 + $0x18] sm:$0xf]
  %v582 = vld [vmem:[%s574 + $0x1c] sm:$0xf]
  %v583 = vpack.c.bf16 %v559, %v558
  %v584 = vpack.c.bf16 %v561, %v560
  %v585 = vpack.c.bf16 %v563, %v562
  %v586 = vpack.c.bf16 %v565, %v564
  %v587 = vpack.c.bf16 %v567, %v566
  %v588 = vpack.c.bf16 %v569, %v568
  %v589 = vpack.c.bf16 %v571, %v570
  %v590 = vpack.c.bf16 %v573, %v572
  %v591 = vlaneseq
  %v592 = vshrl.u32 %v591, 7
  %v593 = vsub.s32 3, %v592
  %v594 = vrot.slane %v24, %v593
  %v603 = vunpack.c.l.b16 %v575
  %v604 = vunpack.c.l.b16 %v576
  %v605 = vunpack.c.l.b16 %v577
  %v606 = vunpack.c.l.b16 %v578
  %v607 = vunpack.c.l.b16 %v579
  %v608 = vunpack.c.l.b16 %v580
  %v609 = vunpack.c.l.b16 %v581
  %v610 = vunpack.c.l.b16 %v582
  %v611 = vpack.c.b16 %v604, %v603
  %v612 = vpack.c.b16 %v606, %v605
  %v613 = vpack.c.b16 %v608, %v607
  %v614 = vpack.c.b16 %v610, %v609
  %v620 = vsel %vm254, %v583, 0
  %v623 = vsel %vm254, %v584, 0
  %v626 = vsel %vm254, %v585, 0
  %v629 = vsel %vm254, %v586, 0
  %v632 = vsel %vm254, %v587, 0
  %v635 = vsel %vm254, %v588, 0
  %v638 = vsel %vm254, %v589, 0
  %v641 = vsel %vm254, %v590, 0
  %643 = vmatprep.subr.bf16.mxu0 0
  %644 = vmatpush1.bf16.msra.mxu0 %v611
  %645 = vmatprep.subr.bf16.mxu0 0
  %646 = vmatpush1.bf16.msra.mxu0 %v612
  %647 = vmatprep.subr.bf16.mxu0 0
  %648 = vmatpush1.bf16.msra.mxu0 %v613
  %649 = vmatprep.subr.bf16.mxu0 0
  %650 = vmatpush1.bf16.msra.mxu0 %v614
  %651 = vmatprep.subr.bf16.mxu0 0
  %652 = vmatpush1.bf16.msra.mxu0 0
  %653 = vmatprep.subr.bf16.mxu0 0
  %654 = vmatpush1.bf16.msra.mxu0 0
  %655 = vmatprep.subr.bf16.mxu0 0
  %656 = vmatpush1.bf16.msra.mxu0 0
  %657 = vmatprep.subr.bf16.mxu0 0
  %658 = vmatpush1.bf16.msra.mxu0 0
  %659 = vmatprep.subr.bf16.mxu0 0
  %660 = vmatpush1.bf16.msra.mxu0 0
  %661 = vmatprep.subr.bf16.mxu0 0
  %662 = vmatpush1.bf16.msra.mxu0 0
  %663 = vmatprep.subr.bf16.mxu0 0
  %664 = vmatpush1.bf16.msra.mxu0 0
  %665 = vmatprep.subr.bf16.mxu0 0
  %666 = vmatpush1.bf16.msra.mxu0 0
  %667 = vmatprep.subr.bf16.mxu0 0
  %668 = vmatpush1.bf16.msra.mxu0 0
  %669 = vmatprep.subr.bf16.mxu0 0
  %670 = vmatpush1.bf16.msra.mxu0 0
  %671 = vmatprep.subr.bf16.mxu0 0
  %672 = vmatpush1.bf16.msra.mxu0 0
  %673 = vmatprep.subr.bf16.mxu0 0
  %674 = vmatpush1.bf16.msra.mxu0 0
  %675 = vmatprep.mubr.bf16.mxu0 0
  %676 = vmatmul.mubr.bf16.gmra.mrb[0].mxu0 %v620
  %v677 = vpop.f32.mrb[0].mxu0
  %v678 = vadd.f32 %v594, %v677
  %v679 = vpop.f32.mrb[0].mxu0
  %v680 = vpop.f32.mrb[0].mxu0
  %v681 = vadd.f32 %v594, %v680
  %v682 = vpop.f32.mrb[0].mxu0
  %683 = vmatprep.mubr.bf16.mxu0 0
  %684 = vmatmul.mubr.bf16.gmra.mrb[0].mxu0 %v623
  %v685 = vpop.f32.mrb[0].mxu0
  %v686 = vadd.f32 %v594, %v685
  %v687 = vpop.f32.mrb[0].mxu0
  %v688 = vpop.f32.mrb[0].mxu0
  %v689 = vadd.f32 %v594, %v688
  %v690 = vpop.f32.mrb[0].mxu0
  %691 = vmatprep.mubr.bf16.mxu0 0
  %692 = vmatmul.mubr.bf16.gmra.mrb[0].mxu0 %v626
  %v693 = vpop.f32.mrb[0].mxu0
  %v694 = vadd.f32 %v594, %v693
  %v695 = vpop.f32.mrb[0].mxu0
  %v696 = vpop.f32.mrb[0].mxu0
  %v697 = vadd.f32 %v594, %v696
  %v698 = vpop.f32.mrb[0].mxu0
  %699 = vmatprep.mubr.bf16.mxu0 0
  %700 = vmatmul.mubr.bf16.gmra.mrb[0].mxu0 %v629
  %v701 = vpop.f32.mrb[0].mxu0
  %v702 = vadd.f32 %v594, %v701
  %v703 = vpop.f32.mrb[0].mxu0
  %v704 = vpop.f32.mrb[0].mxu0
  %v705 = vadd.f32 %v594, %v704
  %v706 = vpop.f32.mrb[0].mxu0
  %707 = vmatprep.mubr.bf16.mxu0 0
  %708 = vmatmul.mubr.bf16.gmra.mrb[0].mxu0 %v632
  %v709 = vpop.f32.mrb[0].mxu0
  %v710 = vadd.f32 %v594, %v709
  %v711 = vpop.f32.mrb[0].mxu0
  %v712 = vpop.f32.mrb[0].mxu0
  %v713 = vadd.f32 %v594, %v712
  %v714 = vpop.f32.mrb[0].mxu0
  %715 = vmatprep.mubr.bf16.mxu0 0
  %716 = vmatmul.mubr.bf16.gmra.mrb[0].mxu0 %v635
  %v717 = vpop.f32.mrb[0].mxu0
  %v718 = vadd.f32 %v594, %v717
  %v719 = vpop.f32.mrb[0].mxu0
  %v720 = vpop.f32.mrb[0].mxu0
  %v721 = vadd.f32 %v594, %v720
  %v722 = vpop.f32.mrb[0].mxu0
  %723 = vmatprep.mubr.bf16.mxu0 0
  %724 = vmatmul.mubr.bf16.gmra.mrb[0].mxu0 %v638
  %v725 = vpop.f32.mrb[0].mxu0
  %v726 = vadd.f32 %v594, %v725
  %v727 = vpop.f32.mrb[0].mxu0
  %v728 = vpop.f32.mrb[0].mxu0
  %v729 = vadd.f32 %v594, %v728
  %v730 = vpop.f32.mrb[0].mxu0
  %731 = vmatprep.mubr.bf16.mxu0 0
  %732 = vmatmul.mubr.bf16.gmra.mrb[0].mxu0 %v641
  %v733 = vpop.f32.mrb[0].mxu0
  %v734 = vadd.f32 %v594, %v733
  %v735 = vpop.f32.mrb[0].mxu0
  %v736 = vpop.f32.mrb[0].mxu0
  %v737 = vadd.f32 %v594, %v736
  %v738 = vpop.f32.mrb[0].mxu0
  %739 = vdwg.mxu0
  %v740 = vmax.f32 %v678, 0.0
  %v741 = vmax.f32 %v681, 0.0
  %v742 = vmax.f32 %v686, 0.0
  %v743 = vmax.f32 %v689, 0.0
  %v744 = vmax.f32 %v694, 0.0
  %v745 = vmax.f32 %v697, 0.0
  %v746 = vmax.f32 %v702, 0.0
  %v747 = vmax.f32 %v705, 0.0
  %v748 = vmax.f32 %v710, 0.0
  %v749 = vmax.f32 %v713, 0.0
  %v750 = vmax.f32 %v718, 0.0
  %v751 = vmax.f32 %v721, 0.0
  %v752 = vmax.f32 %v726, 0.0
  %v753 = vmax.f32 %v729, 0.0
  %v754 = vmax.f32 %v734, 0.0
  %v755 = vmax.f32 %v737, 0.0
  %772 = vrot.lane.b32.xlu0 %v27, 64
  %v773 = vpop.permute.xlu0 %772
  %774 = vrot.lane.b32.xlu0 %v28, 64
  %v775 = vpop.permute.xlu0 %774
  %776 = vrot.lane.b32.xlu0 %v29, 64
  %v777 = vpop.permute.xlu0 %776
  %778 = vrot.lane.b32.xlu0 %v30, 64
  %v779 = vpop.permute.xlu0 %778
  %780 = vrot.lane.b32.xlu0 %v31, 64
  %v781 = vpop.permute.xlu0 %780
  %782 = vrot.lane.b32.xlu0 %v32, 64
  %v783 = vpop.permute.xlu0 %782
  %784 = vrot.lane.b32.xlu0 %v33, 64
  %v785 = vpop.permute.xlu0 %784
  %786 = vrot.lane.b32.xlu0 %v34, 64
  %v787 = vpop.permute.xlu0 %786
  %788 = vrot.lane.b32.xlu0 %v35, 64
  %v789 = vpop.permute.xlu0 %788
  %790 = vrot.lane.b32.xlu0 %v36, 64
  %v791 = vpop.permute.xlu0 %790
  %792 = vrot.lane.b32.xlu0 %v37, 64
  %v793 = vpop.permute.xlu0 %792
  %794 = vrot.lane.b32.xlu0 %v38, 64
  %v795 = vpop.permute.xlu0 %794
  %796 = vrot.lane.b32.xlu0 %v39, 64
  %v797 = vpop.permute.xlu0 %796
  %798 = vrot.lane.b32.xlu0 %v40, 64
  %v799 = vpop.permute.xlu0 %798
  %800 = vrot.lane.b32.xlu0 %v41, 64
  %v801 = vpop.permute.xlu0 %800
  %802 = vrot.lane.b32.xlu0 %v42, 64
  %v803 = vpop.permute.xlu0 %802
  %v820 = vsel %vm254, %v740, %v773
  %v821 = vsel %vm254, %v741, %v775
  %v822 = vsel %vm254, %v742, %v777
  %v823 = vsel %vm254, %v743, %v779
  %v824 = vsel %vm254, %v744, %v781
  %v825 = vsel %vm254, %v745, %v783
  %v826 = vsel %vm254, %v746, %v785
  %v827 = vsel %vm254, %v747, %v787
  %v828 = vsel %vm254, %v748, %v789
  %v829 = vsel %vm254, %v749, %v791
  %v830 = vsel %vm254, %v750, %v793
  %v831 = vsel %vm254, %v751, %v795
  %v832 = vsel %vm254, %v752, %v797
  %v833 = vsel %vm254, %v753, %v799
  %v834 = vsel %vm254, %v754, %v801
  %v835 = vsel %vm254, %v755, %v803
  %s836 = scalar_lea.vmem %s2, 256
  %v837 = vld [vmem:[%s836] sm:$0xf]
  %v838 = vld [vmem:[%s836 + $0x4] sm:$0xf]
  %v839 = vld [vmem:[%s836 + $0x8] sm:$0xf]
  %v840 = vld [vmem:[%s836 + $0xc] sm:$0xf]
  %v841 = vld [vmem:[%s836 + $0x10] sm:$0xf]
  %v842 = vld [vmem:[%s836 + $0x14] sm:$0xf]
  %v843 = vld [vmem:[%s836 + $0x18] sm:$0xf]
  %v844 = vld [vmem:[%s836 + $0x1c] sm:$0xf]
  %v845 = vld [vmem:[%s836 + $0x20] sm:$0xf]
  %v846 = vld [vmem:[%s836 + $0x24] sm:$0xf]
  %v847 = vld [vmem:[%s836 + $0x28] sm:$0xf]
  %v848 = vld [vmem:[%s836 + $0x2c] sm:$0xf]
  %v849 = vpack.c.bf16 %v821, %v820
  %v850 = vpack.c.bf16 %v823, %v822
  %v851 = vpack.c.bf16 %v825, %v824
  %v852 = vpack.c.bf16 %v827, %v826
  %v853 = vpack.c.bf16 %v829, %v828
  %v854 = vpack.c.bf16 %v831, %v830
  %v855 = vpack.c.bf16 %v833, %v832
  %v856 = vpack.c.bf16 %v835, %v834
  %v857 = vlaneseq
  %v858 = vshrl.u32 %v857, 7
  %v859 = vsub.s32 4, %v858
  %v860 = vrot.slane %v24, %v859
  %v873 = vunpack.c.l.b16 %v837
  %v874 = vunpack.c.l.b16 %v838
  %v875 = vunpack.c.l.b16 %v839
  %v876 = vunpack.c.l.b16 %v840
  %v877 = vunpack.c.l.b16 %v841
  %v878 = vunpack.c.l.b16 %v842
  %v879 = vunpack.c.l.b16 %v843
  %v880 = vunpack.c.l.b16 %v844
  %v881 = vunpack.c.l.b16 %v845
  %v882 = vunpack.c.l.b16 %v846
  %v883 = vunpack.c.l.b16 %v847
  %v884 = vunpack.c.l.b16 %v848
  %v885 = vpack.c.b16 %v874, %v873
  %v886 = vpack.c.b16 %v876, %v875
  %v887 = vpack.c.b16 %v878, %v877
  %v888 = vpack.c.b16 %v880, %v879
  %v889 = vpack.c.b16 %v882, %v881
  %v890 = vpack.c.b16 %v884, %v883
  %vm897 = vcmask 785408
  %v899 = vsel %vm897, %v849, 0
  %v902 = vsel %vm897, %v850, 0
  %v905 = vsel %vm897, %v851, 0
  %v908 = vsel %vm897, %v852, 0
  %v911 = vsel %vm897, %v853, 0
  %v914 = vsel %vm897, %v854, 0
  %v917 = vsel %vm897, %v855, 0
  %v920 = vsel %vm897, %v856, 0
  %922 = vmatprep.subr.bf16.mxu0 0
  %923 = vmatpush1.bf16.msra.mxu0 %v885
  %924 = vmatprep.subr.bf16.mxu0 0
  %925 = vmatpush1.bf16.msra.mxu0 %v886
  %926 = vmatprep.subr.bf16.mxu0 0
  %927 = vmatpush1.bf16.msra.mxu0 %v887
  %928 = vmatprep.subr.bf16.mxu0 0
  %929 = vmatpush1.bf16.msra.mxu0 %v888
  %930 = vmatprep.subr.bf16.mxu0 0
  %931 = vmatpush1.bf16.msra.mxu0 %v889
  %932 = vmatprep.subr.bf16.mxu0 0
  %933 = vmatpush1.bf16.msra.mxu0 %v890
  %934 = vmatprep.subr.bf16.mxu0 0
  %935 = vmatpush1.bf16.msra.mxu0 0
  %936 = vmatprep.subr.bf16.mxu0 0
  %937 = vmatpush1.bf16.msra.mxu0 0
  %938 = vmatprep.subr.bf16.mxu0 0
  %939 = vmatpush1.bf16.msra.mxu0 0
  %940 = vmatprep.subr.bf16.mxu0 0
  %941 = vmatpush1.bf16.msra.mxu0 0
  %942 = vmatprep.subr.bf16.mxu0 0
  %943 = vmatpush1.bf16.msra.mxu0 0
  %944 = vmatprep.subr.bf16.mxu0 0
  %945 = vmatpush1.bf16.msra.mxu0 0
  %946 = vmatprep.subr.bf16.mxu0 0
  %947 = vmatpush1.bf16.msra.mxu0 0
  %948 = vmatprep.subr.bf16.mxu0 0
  %949 = vmatpush1.bf16.msra.mxu0 0
  %950 = vmatprep.subr.bf16.mxu0 0
  %951 = vmatpush1.bf16.msra.mxu0 0
  %952 = vmatprep.subr.bf16.mxu0 0
  %953 = vmatpush1.bf16.msra.mxu0 0
  %954 = vmatprep.mubr.bf16.mxu0 0
  %955 = vmatmul.mubr.bf16.gmra.mrb[0].mxu0 %v899
  %v956 = vpop.f32.mrb[0].mxu0
  %v957 = vadd.f32 %v860, %v956
  %v958 = vpop.f32.mrb[0].mxu0
  %v959 = vpop.f32.mrb[0].mxu0
  %v960 = vadd.f32 %v860, %v959
  %v961 = vpop.f32.mrb[0].mxu0
  %962 = vmatprep.mubr.bf16.mxu0 0
  %963 = vmatmul.mubr.bf16.gmra.mrb[0].mxu0 %v902
  %v964 = vpop.f32.mrb[0].mxu0
  %v965 = vadd.f32 %v860, %v964
  %v966 = vpop.f32.mrb[0].mxu0
  %v967 = vpop.f32.mrb[0].mxu0
  %v968 = vadd.f32 %v860, %v967
  %v969 = vpop.f32.mrb[0].mxu0
  %970 = vmatprep.mubr.bf16.mxu0 0
  %971 = vmatmul.mubr.bf16.gmra.mrb[0].mxu0 %v905
  %v972 = vpop.f32.mrb[0].mxu0
  %v973 = vadd.f32 %v860, %v972
  %v974 = vpop.f32.mrb[0].mxu0
  %v975 = vpop.f32.mrb[0].mxu0
  %v976 = vadd.f32 %v860, %v975
  %v977 = vpop.f32.mrb[0].mxu0
  %978 = vmatprep.mubr.bf16.mxu0 0
  %979 = vmatmul.mubr.bf16.gmra.mrb[0].mxu0 %v908
  %v980 = vpop.f32.mrb[0].mxu0
  %v981 = vadd.f32 %v860, %v980
  %v982 = vpop.f32.mrb[0].mxu0
  %v983 = vpop.f32.mrb[0].mxu0
  %v984 = vadd.f32 %v860, %v983
  %v985 = vpop.f32.mrb[0].mxu0
  %986 = vmatprep.mubr.bf16.mxu0 0
  %987 = vmatmul.mubr.bf16.gmra.mrb[0].mxu0 %v911
  %v988 = vpop.f32.mrb[0].mxu0
  %v989 = vadd.f32 %v860, %v988
  %v990 = vpop.f32.mrb[0].mxu0
  %v991 = vpop.f32.mrb[0].mxu0
  %v992 = vadd.f32 %v860, %v991
  %v993 = vpop.f32.mrb[0].mxu0
  %994 = vmatprep.mubr.bf16.mxu0 0
  %995 = vmatmul.mubr.bf16.gmra.mrb[0].mxu0 %v914
  %v996 = vpop.f32.mrb[0].mxu0
  %v997 = vadd.f32 %v860, %v996
  %v998 = vpop.f32.mrb[0].mxu0
  %v999 = vpop.f32.mrb[0].mxu0
  %v1000 = vadd.f32 %v860, %v999
  %v1001 = vpop.f32.mrb[0].mxu0
  %1002 = vmatprep.mubr.bf16.mxu0 0
  %1003 = vmatmul.mubr.bf16.gmra.mrb[0].mxu0 %v917
  %v1004 = vpop.f32.mrb[0].mxu0
  %v1005 = vadd.f32 %v860, %v1004
  %v1006 = vpop.f32.mrb[0].mxu0
  %v1007 = vpop.f32.mrb[0].mxu0
  %v1008 = vadd.f32 %v860, %v1007
  %v1009 = vpop.f32.mrb[0].mxu0
  %1010 = vmatprep.mubr.bf16.mxu0 0
  %1011 = vmatmul.mubr.bf16.gmra.mrb[0].mxu0 %v920
  %v1012 = vpop.f32.mrb[0].mxu0
  %v1013 = vadd.f32 %v860, %v1012
  %v1014 = vpop.f32.mrb[0].mxu0
  %v1015 = vpop.f32.mrb[0].mxu0
  %v1016 = vadd.f32 %v860, %v1015
  %v1017 = vpop.f32.mrb[0].mxu0
  %1018 = vdwg.mxu0
  %v1019 = vmax.f32 %v957, 0.0
  %v1020 = vmax.f32 %v960, 0.0
  %v1021 = vmax.f32 %v965, 0.0
  %v1022 = vmax.f32 %v968, 0.0
  %v1023 = vmax.f32 %v973, 0.0
  %v1024 = vmax.f32 %v976, 0.0
  %v1025 = vmax.f32 %v981, 0.0
  %v1026 = vmax.f32 %v984, 0.0
  %v1027 = vmax.f32 %v989, 0.0
  %v1028 = vmax.f32 %v992, 0.0
  %v1029 = vmax.f32 %v997, 0.0
  %v1030 = vmax.f32 %v1000, 0.0
  %v1031 = vmax.f32 %v1005, 0.0
  %v1032 = vmax.f32 %v1008, 0.0
  %v1033 = vmax.f32 %v1013, 0.0
  %v1034 = vmax.f32 %v1016, 0.0
  %s1035 = scalar_lea.vmem %s2, 320
  %v1036 = vld [vmem:[%s1035] sm:$0xf]
  %v1037 = vld [vmem:[%s1035 + $0x4] sm:$0xf]
  %v1038 = vld [vmem:[%s1035 + $0x8] sm:$0xf]
  %v1039 = vld [vmem:[%s1035 + $0xc] sm:$0xf]
  %v1040 = vld [vmem:[%s1035 + $0x10] sm:$0xf]
  %v1041 = vld [vmem:[%s1035 + $0x14] sm:$0xf]
  %v1042 = vld [vmem:[%s1035 + $0x18] sm:$0xf]
  %v1043 = vld [vmem:[%s1035 + $0x1c] sm:$0xf]
  %v1044 = vpack.c.bf16 %v1020, %v1019
  %v1045 = vpack.c.bf16 %v1022, %v1021
  %v1046 = vpack.c.bf16 %v1024, %v1023
  %v1047 = vpack.c.bf16 %v1026, %v1025
  %v1048 = vpack.c.bf16 %v1028, %v1027
  %v1049 = vpack.c.bf16 %v1030, %v1029
  %v1050 = vpack.c.bf16 %v1032, %v1031
  %v1051 = vpack.c.bf16 %v1034, %v1033
  %v1052 = vlaneseq
  %v1053 = vshrl.u32 %v1052, 7
  %v1054 = vsub.s32 5, %v1053
  %v1055 = vrot.slane %v24, %v1054
  %v1064 = vunpack.c.l.b16 %v1036
  %v1065 = vunpack.c.l.b16 %v1037
  %v1066 = vunpack.c.l.b16 %v1038
  %v1067 = vunpack.c.l.b16 %v1039
  %v1068 = vunpack.c.l.b16 %v1040
  %v1069 = vunpack.c.l.b16 %v1041
  %v1070 = vunpack.c.l.b16 %v1042
  %v1071 = vunpack.c.l.b16 %v1043
  %v1072 = vpack.c.b16 %v1065, %v1064
  %v1073 = vpack.c.b16 %v1067, %v1066
  %v1074 = vpack.c.b16 %v1069, %v1068
  %v1075 = vpack.c.b16 %v1071, %v1070
  %v1081 = vsel %vm254, %v1044, 0
  %v1084 = vsel %vm254, %v1045, 0
  %v1087 = vsel %vm254, %v1046, 0
  %v1090 = vsel %vm254, %v1047, 0
  %v1093 = vsel %vm254, %v1048, 0
  %v1096 = vsel %vm254, %v1049, 0
  %v1099 = vsel %vm254, %v1050, 0
  %v1102 = vsel %vm254, %v1051, 0
  %1104 = vmatprep.subr.bf16.mxu0 0
  %1105 = vmatpush1.bf16.msra.mxu0 %v1072
  %1106 = vmatprep.subr.bf16.mxu0 0
  %1107 = vmatpush1.bf16.msra.mxu0 %v1073
  %1108 = vmatprep.subr.bf16.mxu0 0
  %1109 = vmatpush1.bf16.msra.mxu0 %v1074
  %1110 = vmatprep.subr.bf16.mxu0 0
  %1111 = vmatpush1.bf16.msra.mxu0 %v1075
  %1112 = vmatprep.subr.bf16.mxu0 0
  %1113 = vmatpush1.bf16.msra.mxu0 0
  %1114 = vmatprep.subr.bf16.mxu0 0
  %1115 = vmatpush1.bf16.msra.mxu0 0
  %1116 = vmatprep.subr.bf16.mxu0 0
  %1117 = vmatpush1.bf16.msra.mxu0 0
  %1118 = vmatprep.subr.bf16.mxu0 0
  %1119 = vmatpush1.bf16.msra.mxu0 0
  %1120 = vmatprep.subr.bf16.mxu0 0
  %1121 = vmatpush1.bf16.msra.mxu0 0
  %1122 = vmatprep.subr.bf16.mxu0 0
  %1123 = vmatpush1.bf16.msra.mxu0 0
  %1124 = vmatprep.subr.bf16.mxu0 0
  %1125 = vmatpush1.bf16.msra.mxu0 0
  %1126 = vmatprep.subr.bf16.mxu0 0
  %1127 = vmatpush1.bf16.msra.mxu0 0
  %1128 = vmatprep.subr.bf16.mxu0 0
  %1129 = vmatpush1.bf16.msra.mxu0 0
  %1130 = vmatprep.subr.bf16.mxu0 0
  %1131 = vmatpush1.bf16.msra.mxu0 0
  %1132 = vmatprep.subr.bf16.mxu0 0
  %1133 = vmatpush1.bf16.msra.mxu0 0
  %1134 = vmatprep.subr.bf16.mxu0 0
  %1135 = vmatpush1.bf16.msra.mxu0 0
  %1136 = vmatprep.mubr.bf16.mxu0 0
  %1137 = vmatmul.mubr.bf16.gmra.mrb[0].mxu0 %v1081
  %v1138 = vpop.f32.mrb[0].mxu0
  %v1139 = vadd.f32 %v1055, %v1138
  %v1140 = vpop.f32.mrb[0].mxu0
  %v1141 = vpop.f32.mrb[0].mxu0
  %v1142 = vadd.f32 %v1055, %v1141
  %v1143 = vpop.f32.mrb[0].mxu0
  %1144 = vmatprep.mubr.bf16.mxu0 0
  %1145 = vmatmul.mubr.bf16.gmra.mrb[0].mxu0 %v1084
  %v1146 = vpop.f32.mrb[0].mxu0
  %v1147 = vadd.f32 %v1055, %v1146
  %v1148 = vpop.f32.mrb[0].mxu0
  %v1149 = vpop.f32.mrb[0].mxu0
  %v1150 = vadd.f32 %v1055, %v1149
  %v1151 = vpop.f32.mrb[0].mxu0
  %1152 = vmatprep.mubr.bf16.mxu0 0
  %1153 = vmatmul.mubr.bf16.gmra.mrb[0].mxu0 %v1087
  %v1154 = vpop.f32.mrb[0].mxu0
  %v1155 = vadd.f32 %v1055, %v1154
  %v1156 = vpop.f32.mrb[0].mxu0
  %v1157 = vpop.f32.mrb[0].mxu0
  %v1158 = vadd.f32 %v1055, %v1157
  %v1159 = vpop.f32.mrb[0].mxu0
  %1160 = vmatprep.mubr.bf16.mxu0 0
  %1161 = vmatmul.mubr.bf16.gmra.mrb[0].mxu0 %v1090
  %v1162 = vpop.f32.mrb[0].mxu0
  %v1163 = vadd.f32 %v1055, %v1162
  %v1164 = vpop.f32.mrb[0].mxu0
  %v1165 = vpop.f32.mrb[0].mxu0
  %v1166 = vadd.f32 %v1055, %v1165
  %v1167 = vpop.f32.mrb[0].mxu0
  %1168 = vmatprep.mubr.bf16.mxu0 0
  %1169 = vmatmul.mubr.bf16.gmra.mrb[0].mxu0 %v1093
  %v1170 = vpop.f32.mrb[0].mxu0
  %v1171 = vadd.f32 %v1055, %v1170
  %v1172 = vpop.f32.mrb[0].mxu0
  %v1173 = vpop.f32.mrb[0].mxu0
  %v1174 = vadd.f32 %v1055, %v1173
  %v1175 = vpop.f32.mrb[0].mxu0
  %1176 = vmatprep.mubr.bf16.mxu0 0
  %1177 = vmatmul.mubr.bf16.gmra.mrb[0].mxu0 %v1096
  %v1178 = vpop.f32.mrb[0].mxu0
  %v1179 = vadd.f32 %v1055, %v1178
  %v1180 = vpop.f32.mrb[0].mxu0
  %v1181 = vpop.f32.mrb[0].mxu0
  %v1182 = vadd.f32 %v1055, %v1181
  %v1183 = vpop.f32.mrb[0].mxu0
  %1184 = vmatprep.mubr.bf16.mxu0 0
  %1185 = vmatmul.mubr.bf16.gmra.mrb[0].mxu0 %v1099
  %v1186 = vpop.f32.mrb[0].mxu0
  %v1187 = vadd.f32 %v1055, %v1186
  %v1188 = vpop.f32.mrb[0].mxu0
  %v1189 = vpop.f32.mrb[0].mxu0
  %v1190 = vadd.f32 %v1055, %v1189
  %v1191 = vpop.f32.mrb[0].mxu0
  %1192 = vmatprep.mubr.bf16.mxu0 0
  %1193 = vmatmul.mubr.bf16.gmra.mrb[0].mxu0 %v1102
  %v1194 = vpop.f32.mrb[0].mxu0
  %v1195 = vadd.f32 %v1055, %v1194
  %v1196 = vpop.f32.mrb[0].mxu0
  %v1197 = vpop.f32.mrb[0].mxu0
  %v1198 = vadd.f32 %v1055, %v1197
  %v1199 = vpop.f32.mrb[0].mxu0
  %1200 = vdwg.mxu0
  %v1201 = vmax.f32 %v1139, 0.0
  %v1202 = vmax.f32 %v1142, 0.0
  %v1203 = vmax.f32 %v1147, 0.0
  %v1204 = vmax.f32 %v1150, 0.0
  %v1205 = vmax.f32 %v1155, 0.0
  %v1206 = vmax.f32 %v1158, 0.0
  %v1207 = vmax.f32 %v1163, 0.0
  %v1208 = vmax.f32 %v1166, 0.0
  %v1209 = vmax.f32 %v1171, 0.0
  %v1210 = vmax.f32 %v1174, 0.0
  %v1211 = vmax.f32 %v1179, 0.0
  %v1212 = vmax.f32 %v1182, 0.0
  %v1213 = vmax.f32 %v1187, 0.0
  %v1214 = vmax.f32 %v1190, 0.0
  %v1215 = vmax.f32 %v1195, 0.0
  %v1216 = vmax.f32 %v1198, 0.0
  %s1217 = scalar_lea.vmem %s2, 384
  %v1218 = vld [vmem:[%s1217] sm:$0xf]
  %v1219 = vld [vmem:[%s1217 + $0x4] sm:$0xf]
  %v1220 = vld [vmem:[%s1217 + $0x8] sm:$0xf]
  %v1221 = vld [vmem:[%s1217 + $0xc] sm:$0xf]
  %v1222 = vld [vmem:[%s1217 + $0x10] sm:$0xf]
  %v1223 = vld [vmem:[%s1217 + $0x14] sm:$0xf]
  %v1224 = vld [vmem:[%s1217 + $0x18] sm:$0xf]
  %v1225 = vld [vmem:[%s1217 + $0x1c] sm:$0xf]
  %v1226 = vpack.c.bf16 %v1202, %v1201
  %v1227 = vpack.c.bf16 %v1204, %v1203
  %v1228 = vpack.c.bf16 %v1206, %v1205
  %v1229 = vpack.c.bf16 %v1208, %v1207
  %v1230 = vpack.c.bf16 %v1210, %v1209
  %v1231 = vpack.c.bf16 %v1212, %v1211
  %v1232 = vpack.c.bf16 %v1214, %v1213
  %v1233 = vpack.c.bf16 %v1216, %v1215
  %v1234 = vlaneseq
  %v1235 = vshrl.u32 %v1234, 7
  %v1236 = vsub.s32 6, %v1235
  %v1237 = vrot.slane %v24, %v1236
  %v1246 = vunpack.c.l.b16 %v1218
  %v1247 = vunpack.c.l.b16 %v1219
  %v1248 = vunpack.c.l.b16 %v1220
  %v1249 = vunpack.c.l.b16 %v1221
  %v1250 = vunpack.c.l.b16 %v1222
  %v1251 = vunpack.c.l.b16 %v1223
  %v1252 = vunpack.c.l.b16 %v1224
  %v1253 = vunpack.c.l.b16 %v1225
  %v1254 = vpack.c.b16 %v1247, %v1246
  %v1255 = vpack.c.b16 %v1249, %v1248
  %v1256 = vpack.c.b16 %v1251, %v1250
  %v1257 = vpack.c.b16 %v1253, %v1252
  %v1263 = vsel %vm254, %v1226, 0
  %v1266 = vsel %vm254, %v1227, 0
  %v1269 = vsel %vm254, %v1228, 0
  %v1272 = vsel %vm254, %v1229, 0
  %v1275 = vsel %vm254, %v1230, 0
  %v1278 = vsel %vm254, %v1231, 0
  %v1281 = vsel %vm254, %v1232, 0
  %v1284 = vsel %vm254, %v1233, 0
  %1286 = vmatprep.subr.bf16.mxu0 0
  %1287 = vmatpush1.bf16.msra.mxu0 %v1254
  %1288 = vmatprep.subr.bf16.mxu0 0
  %1289 = vmatpush1.bf16.msra.mxu0 %v1255
  %1290 = vmatprep.subr.bf16.mxu0 0
  %1291 = vmatpush1.bf16.msra.mxu0 %v1256
  %1292 = vmatprep.subr.bf16.mxu0 0
  %1293 = vmatpush1.bf16.msra.mxu0 %v1257
  %1294 = vmatprep.subr.bf16.mxu0 0
  %1295 = vmatpush1.bf16.msra.mxu0 0
  %1296 = vmatprep.subr.bf16.mxu0 0
  %1297 = vmatpush1.bf16.msra.mxu0 0
  %1298 = vmatprep.subr.bf16.mxu0 0
  %1299 = vmatpush1.bf16.msra.mxu0 0
  %1300 = vmatprep.subr.bf16.mxu0 0
  %1301 = vmatpush1.bf16.msra.mxu0 0
  %1302 = vmatprep.subr.bf16.mxu0 0
  %1303 = vmatpush1.bf16.msra.mxu0 0
  %1304 = vmatprep.subr.bf16.mxu0 0
  %1305 = vmatpush1.bf16.msra.mxu0 0
  %1306 = vmatprep.subr.bf16.mxu0 0
  %1307 = vmatpush1.bf16.msra.mxu0 0
  %1308 = vmatprep.subr.bf16.mxu0 0
  %1309 = vmatpush1.bf16.msra.mxu0 0
  %1310 = vmatprep.subr.bf16.mxu0 0
  %1311 = vmatpush1.bf16.msra.mxu0 0
  %1312 = vmatprep.subr.bf16.mxu0 0
  %1313 = vmatpush1.bf16.msra.mxu0 0
  %1314 = vmatprep.subr.bf16.mxu0 0
  %1315 = vmatpush1.bf16.msra.mxu0 0
  %1316 = vmatprep.subr.bf16.mxu0 0
  %1317 = vmatpush1.bf16.msra.mxu0 0
  %1318 = vmatprep.mubr.bf16.mxu0 0
  %1319 = vmatmul.mubr.bf16.gmra.mrb[0].mxu0 %v1263
  %v1320 = vpop.f32.mrb[0].mxu0
  %v1321 = vadd.f32 %v1237, %v1320
  %v1322 = vpop.f32.mrb[0].mxu0
  %v1323 = vpop.f32.mrb[0].mxu0
  %v1324 = vadd.f32 %v1237, %v1323
  %v1325 = vpop.f32.mrb[0].mxu0
  %1326 = vmatprep.mubr.bf16.mxu0 0
  %1327 = vmatmul.mubr.bf16.gmra.mrb[0].mxu0 %v1266
  %v1328 = vpop.f32.mrb[0].mxu0
  %v1329 = vadd.f32 %v1237, %v1328
  %v1330 = vpop.f32.mrb[0].mxu0
  %v1331 = vpop.f32.mrb[0].mxu0
  %v1332 = vadd.f32 %v1237, %v1331
  %v1333 = vpop.f32.mrb[0].mxu0
  %1334 = vmatprep.mubr.bf16.mxu0 0
  %1335 = vmatmul.mubr.bf16.gmra.mrb[0].mxu0 %v1269
  %v1336 = vpop.f32.mrb[0].mxu0
  %v1337 = vadd.f32 %v1237, %v1336
  %v1338 = vpop.f32.mrb[0].mxu0
  %v1339 = vpop.f32.mrb[0].mxu0
  %v1340 = vadd.f32 %v1237, %v1339
  %v1341 = vpop.f32.mrb[0].mxu0
  %1342 = vmatprep.mubr.bf16.mxu0 0
  %1343 = vmatmul.mubr.bf16.gmra.mrb[0].mxu0 %v1272
  %v1344 = vpop.f32.mrb[0].mxu0
  %v1345 = vadd.f32 %v1237, %v1344
  %v1346 = vpop.f32.mrb[0].mxu0
  %v1347 = vpop.f32.mrb[0].mxu0
  %v1348 = vadd.f32 %v1237, %v1347
  %v1349 = vpop.f32.mrb[0].mxu0
  %1350 = vmatprep.mubr.bf16.mxu0 0
  %1351 = vmatmul.mubr.bf16.gmra.mrb[0].mxu0 %v1275
  %v1352 = vpop.f32.mrb[0].mxu0
  %v1353 = vadd.f32 %v1237, %v1352
  %v1354 = vpop.f32.mrb[0].mxu0
  %v1355 = vpop.f32.mrb[0].mxu0
  %v1356 = vadd.f32 %v1237, %v1355
  %v1357 = vpop.f32.mrb[0].mxu0
  %1358 = vmatprep.mubr.bf16.mxu0 0
  %1359 = vmatmul.mubr.bf16.gmra.mrb[0].mxu0 %v1278
  %v1360 = vpop.f32.mrb[0].mxu0
  %v1361 = vadd.f32 %v1237, %v1360
  %v1362 = vpop.f32.mrb[0].mxu0
  %v1363 = vpop.f32.mrb[0].mxu0
  %v1364 = vadd.f32 %v1237, %v1363
  %v1365 = vpop.f32.mrb[0].mxu0
  %1366 = vmatprep.mubr.bf16.mxu0 0
  %1367 = vmatmul.mubr.bf16.gmra.mrb[0].mxu0 %v1281
  %v1368 = vpop.f32.mrb[0].mxu0
  %v1369 = vadd.f32 %v1237, %v1368
  %v1370 = vpop.f32.mrb[0].mxu0
  %v1371 = vpop.f32.mrb[0].mxu0
  %v1372 = vadd.f32 %v1237, %v1371
  %v1373 = vpop.f32.mrb[0].mxu0
  %1374 = vmatprep.mubr.bf16.mxu0 0
  %1375 = vmatmul.mubr.bf16.gmra.mrb[0].mxu0 %v1284
  %v1376 = vpop.f32.mrb[0].mxu0
  %v1377 = vadd.f32 %v1237, %v1376
  %v1378 = vpop.f32.mrb[0].mxu0
  %v1379 = vpop.f32.mrb[0].mxu0
  %v1380 = vadd.f32 %v1237, %v1379
  %v1381 = vpop.f32.mrb[0].mxu0
  %1382 = vdwg.mxu0
  %v1383 = vmax.f32 %v1321, 0.0
  %v1384 = vmax.f32 %v1324, 0.0
  %v1385 = vmax.f32 %v1329, 0.0
  %v1386 = vmax.f32 %v1332, 0.0
  %v1387 = vmax.f32 %v1337, 0.0
  %v1388 = vmax.f32 %v1340, 0.0
  %v1389 = vmax.f32 %v1345, 0.0
  %v1390 = vmax.f32 %v1348, 0.0
  %v1391 = vmax.f32 %v1353, 0.0
  %v1392 = vmax.f32 %v1356, 0.0
  %v1393 = vmax.f32 %v1361, 0.0
  %v1394 = vmax.f32 %v1364, 0.0
  %v1395 = vmax.f32 %v1369, 0.0
  %v1396 = vmax.f32 %v1372, 0.0
  %v1397 = vmax.f32 %v1377, 0.0
  %v1398 = vmax.f32 %v1380, 0.0
  %s1399 = scalar_lea.vmem %s2, 448
  %v1400 = vld [vmem:[%s1399] sm:$0xf]
  %v1401 = vld [vmem:[%s1399 + $0x4] sm:$0xf]
  %v1402 = vld [vmem:[%s1399 + $0x8] sm:$0xf]
  %v1403 = vld [vmem:[%s1399 + $0xc] sm:$0xf]
  %v1404 = vld [vmem:[%s1399 + $0x10] sm:$0xf]
  %v1405 = vld [vmem:[%s1399 + $0x14] sm:$0xf]
  %v1406 = vld [vmem:[%s1399 + $0x18] sm:$0xf]
  %v1407 = vld [vmem:[%s1399 + $0x1c] sm:$0xf]
  %v1408 = vpack.c.bf16 %v1384, %v1383
  %v1409 = vpack.c.bf16 %v1386, %v1385
  %v1410 = vpack.c.bf16 %v1388, %v1387
  %v1411 = vpack.c.bf16 %v1390, %v1389
  %v1412 = vpack.c.bf16 %v1392, %v1391
  %v1413 = vpack.c.bf16 %v1394, %v1393
  %v1414 = vpack.c.bf16 %v1396, %v1395
  %v1415 = vpack.c.bf16 %v1398, %v1397
  %v1416 = vlaneseq
  %v1417 = vshrl.u32 %v1416, 7
  %v1418 = vsub.s32 7, %v1417
  %v1419 = vrot.slane %v24, %v1418
  %v1428 = vunpack.c.l.b16 %v1400
  %v1429 = vunpack.c.l.b16 %v1401
  %v1430 = vunpack.c.l.b16 %v1402
  %v1431 = vunpack.c.l.b16 %v1403
  %v1432 = vunpack.c.l.b16 %v1404
  %v1433 = vunpack.c.l.b16 %v1405
  %v1434 = vunpack.c.l.b16 %v1406
  %v1435 = vunpack.c.l.b16 %v1407
  %v1436 = vpack.c.b16 %v1429, %v1428
  %v1437 = vpack.c.b16 %v1431, %v1430
  %v1438 = vpack.c.b16 %v1433, %v1432
  %v1439 = vpack.c.b16 %v1435, %v1434
  %v1445 = vsel %vm254, %v1408, 0
  %v1448 = vsel %vm254, %v1409, 0
  %v1451 = vsel %vm254, %v1410, 0
  %v1454 = vsel %vm254, %v1411, 0
  %v1457 = vsel %vm254, %v1412, 0
  %v1460 = vsel %vm254, %v1413, 0
  %v1463 = vsel %vm254, %v1414, 0
  %v1466 = vsel %vm254, %v1415, 0
  %1468 = vmatprep.subr.bf16.mxu0 0
  %1469 = vmatpush1.bf16.msra.mxu0 %v1436
  %1470 = vmatprep.subr.bf16.mxu0 0
  %1471 = vmatpush1.bf16.msra.mxu0 %v1437
  %1472 = vmatprep.subr.bf16.mxu0 0
  %1473 = vmatpush1.bf16.msra.mxu0 %v1438
  %1474 = vmatprep.subr.bf16.mxu0 0
  %1475 = vmatpush1.bf16.msra.mxu0 %v1439
  %1476 = vmatprep.subr.bf16.mxu0 0
  %1477 = vmatpush1.bf16.msra.mxu0 0
  %1478 = vmatprep.subr.bf16.mxu0 0
  %1479 = vmatpush1.bf16.msra.mxu0 0
  %1480 = vmatprep.subr.bf16.mxu0 0
  %1481 = vmatpush1.bf16.msra.mxu0 0
  %1482 = vmatprep.subr.bf16.mxu0 0
  %1483 = vmatpush1.bf16.msra.mxu0 0
  %1484 = vmatprep.subr.bf16.mxu0 0
  %1485 = vmatpush1.bf16.msra.mxu0 0
  %1486 = vmatprep.subr.bf16.mxu0 0
  %1487 = vmatpush1.bf16.msra.mxu0 0
  %1488 = vmatprep.subr.bf16.mxu0 0
  %1489 = vmatpush1.bf16.msra.mxu0 0
  %1490 = vmatprep.subr.bf16.mxu0 0
  %1491 = vmatpush1.bf16.msra.mxu0 0
  %1492 = vmatprep.subr.bf16.mxu0 0
  %1493 = vmatpush1.bf16.msra.mxu0 0
  %1494 = vmatprep.subr.bf16.mxu0 0
  %1495 = vmatpush1.bf16.msra.mxu0 0
  %1496 = vmatprep.subr.bf16.mxu0 0
  %1497 = vmatpush1.bf16.msra.mxu0 0
  %1498 = vmatprep.subr.bf16.mxu0 0
  %1499 = vmatpush1.bf16.msra.mxu0 0
  %1500 = vmatprep.mubr.bf16.mxu0 0
  %1501 = vmatmul.mubr.bf16.gmra.mrb[0].mxu0 %v1445
  %v1502 = vpop.f32.mrb[0].mxu0
  %v1503 = vadd.f32 %v1419, %v1502
  %v1504 = vpop.f32.mrb[0].mxu0
  %v1505 = vpop.f32.mrb[0].mxu0
  %v1506 = vadd.f32 %v1419, %v1505
  %v1507 = vpop.f32.mrb[0].mxu0
  %1508 = vmatprep.mubr.bf16.mxu0 0
  %1509 = vmatmul.mubr.bf16.gmra.mrb[0].mxu0 %v1448
  %v1510 = vpop.f32.mrb[0].mxu0
  %v1511 = vadd.f32 %v1419, %v1510
  %v1512 = vpop.f32.mrb[0].mxu0
  %v1513 = vpop.f32.mrb[0].mxu0
  %v1514 = vadd.f32 %v1419, %v1513
  %v1515 = vpop.f32.mrb[0].mxu0
  %1516 = vmatprep.mubr.bf16.mxu0 0
  %1517 = vmatmul.mubr.bf16.gmra.mrb[0].mxu0 %v1451
  %v1518 = vpop.f32.mrb[0].mxu0
  %v1519 = vadd.f32 %v1419, %v1518
  %v1520 = vpop.f32.mrb[0].mxu0
  %v1521 = vpop.f32.mrb[0].mxu0
  %v1522 = vadd.f32 %v1419, %v1521
  %v1523 = vpop.f32.mrb[0].mxu0
  %1524 = vmatprep.mubr.bf16.mxu0 0
  %1525 = vmatmul.mubr.bf16.gmra.mrb[0].mxu0 %v1454
  %v1526 = vpop.f32.mrb[0].mxu0
  %v1527 = vadd.f32 %v1419, %v1526
  %v1528 = vpop.f32.mrb[0].mxu0
  %v1529 = vpop.f32.mrb[0].mxu0
  %v1530 = vadd.f32 %v1419, %v1529
  %v1531 = vpop.f32.mrb[0].mxu0
  %1532 = vmatprep.mubr.bf16.mxu0 0
  %1533 = vmatmul.mubr.bf16.gmra.mrb[0].mxu0 %v1457
  %v1534 = vpop.f32.mrb[0].mxu0
  %v1535 = vadd.f32 %v1419, %v1534
  %v1536 = vpop.f32.mrb[0].mxu0
  %v1537 = vpop.f32.mrb[0].mxu0
  %v1538 = vadd.f32 %v1419, %v1537
  %v1539 = vpop.f32.mrb[0].mxu0
  %1540 = vmatprep.mubr.bf16.mxu0 0
  %1541 = vmatmul.mubr.bf16.gmra.mrb[0].mxu0 %v1460
  %v1542 = vpop.f32.mrb[0].mxu0
  %v1543 = vadd.f32 %v1419, %v1542
  %v1544 = vpop.f32.mrb[0].mxu0
  %v1545 = vpop.f32.mrb[0].mxu0
  %v1546 = vadd.f32 %v1419, %v1545
  %v1547 = vpop.f32.mrb[0].mxu0
  %1548 = vmatprep.mubr.bf16.mxu0 0
  %1549 = vmatmul.mubr.bf16.gmra.mrb[0].mxu0 %v1463
  %v1550 = vpop.f32.mrb[0].mxu0
  %v1551 = vadd.f32 %v1419, %v1550
  %v1552 = vpop.f32.mrb[0].mxu0
  %v1553 = vpop.f32.mrb[0].mxu0
  %v1554 = vadd.f32 %v1419, %v1553
  %v1555 = vpop.f32.mrb[0].mxu0
  %1556 = vmatprep.mubr.bf16.mxu0 0
  %1557 = vmatmul.mubr.bf16.gmra.mrb[0].mxu0 %v1466
  %v1558 = vpop.f32.mrb[0].mxu0
  %v1559 = vadd.f32 %v1419, %v1558
  %v1560 = vpop.f32.mrb[0].mxu0
  %v1561 = vpop.f32.mrb[0].mxu0
  %v1562 = vadd.f32 %v1419, %v1561
  %v1563 = vpop.f32.mrb[0].mxu0
  %1564 = vdwg.mxu0
  %v1565 = vmax.f32 %v1503, 0.0
  %v1566 = vmax.f32 %v1506, 0.0
  %v1567 = vmax.f32 %v1511, 0.0
  %v1568 = vmax.f32 %v1514, 0.0
  %v1569 = vmax.f32 %v1519, 0.0
  %v1570 = vmax.f32 %v1522, 0.0
  %v1571 = vmax.f32 %v1527, 0.0
  %v1572 = vmax.f32 %v1530, 0.0
  %v1573 = vmax.f32 %v1535, 0.0
  %v1574 = vmax.f32 %v1538, 0.0
  %v1575 = vmax.f32 %v1543, 0.0
  %v1576 = vmax.f32 %v1546, 0.0
  %v1577 = vmax.f32 %v1551, 0.0
  %v1578 = vmax.f32 %v1554, 0.0
  %v1579 = vmax.f32 %v1559, 0.0
  %v1580 = vmax.f32 %v1562, 0.0
  %s1581 = scalar_lea.vmem %s2, 512
  %v1582 = vld [vmem:[%s1581] sm:$0xf]
  %v1583 = vld [vmem:[%s1581 + $0x4] sm:$0xf]
  %v1584 = vld [vmem:[%s1581 + $0x8] sm:$0xf]
  %v1585 = vld [vmem:[%s1581 + $0xc] sm:$0xf]
  %v1586 = vld [vmem:[%s1581 + $0x10] sm:$0xf]
  %v1587 = vld [vmem:[%s1581 + $0x14] sm:$0xf]
  %v1588 = vld [vmem:[%s1581 + $0x18] sm:$0xf]
  %v1589 = vld [vmem:[%s1581 + $0x1c] sm:$0xf]
  %v1590 = vpack.c.bf16 %v1566, %v1565
  %v1591 = vpack.c.bf16 %v1568, %v1567
  %v1592 = vpack.c.bf16 %v1570, %v1569
  %v1593 = vpack.c.bf16 %v1572, %v1571
  %v1594 = vpack.c.bf16 %v1574, %v1573
  %v1595 = vpack.c.bf16 %v1576, %v1575
  %v1596 = vpack.c.bf16 %v1578, %v1577
  %v1597 = vpack.c.bf16 %v1580, %v1579
  %v1598 = vlaneseq
  %v1599 = vshrl.u32 %v1598, 7
  %v1600 = vsub.s32 0, %v1599
  %v1601 = vrot.slane %v25, %v1600
  %v1610 = vunpack.c.l.b16 %v1582
  %v1611 = vunpack.c.l.b16 %v1583
  %v1612 = vunpack.c.l.b16 %v1584
  %v1613 = vunpack.c.l.b16 %v1585
  %v1614 = vunpack.c.l.b16 %v1586
  %v1615 = vunpack.c.l.b16 %v1587
  %v1616 = vunpack.c.l.b16 %v1588
  %v1617 = vunpack.c.l.b16 %v1589
  %v1618 = vpack.c.b16 %v1611, %v1610
  %v1619 = vpack.c.b16 %v1613, %v1612
  %v1620 = vpack.c.b16 %v1615, %v1614
  %v1621 = vpack.c.b16 %v1617, %v1616
  %v1627 = vsel %vm254, %v1590, 0
  %v1630 = vsel %vm254, %v1591, 0
  %v1633 = vsel %vm254, %v1592, 0
  %v1636 = vsel %vm254, %v1593, 0
  %v1639 = vsel %vm254, %v1594, 0
  %v1642 = vsel %vm254, %v1595, 0
  %v1645 = vsel %vm254, %v1596, 0
  %v1648 = vsel %vm254, %v1597, 0
  %1650 = vmatprep.subr.bf16.mxu0 0
  %1651 = vmatpush1.bf16.msra.mxu0 %v1618
  %1652 = vmatprep.subr.bf16.mxu0 0
  %1653 = vmatpush1.bf16.msra.mxu0 %v1619
  %1654 = vmatprep.subr.bf16.mxu0 0
  %1655 = vmatpush1.bf16.msra.mxu0 %v1620
  %1656 = vmatprep.subr.bf16.mxu0 0
  %1657 = vmatpush1.bf16.msra.mxu0 %v1621
  %1658 = vmatprep.subr.bf16.mxu0 0
  %1659 = vmatpush1.bf16.msra.mxu0 0
  %1660 = vmatprep.subr.bf16.mxu0 0
  %1661 = vmatpush1.bf16.msra.mxu0 0
  %1662 = vmatprep.subr.bf16.mxu0 0
  %1663 = vmatpush1.bf16.msra.mxu0 0
  %1664 = vmatprep.subr.bf16.mxu0 0
  %1665 = vmatpush1.bf16.msra.mxu0 0
  %1666 = vmatprep.subr.bf16.mxu0 0
  %1667 = vmatpush1.bf16.msra.mxu0 0
  %1668 = vmatprep.subr.bf16.mxu0 0
  %1669 = vmatpush1.bf16.msra.mxu0 0
  %1670 = vmatprep.subr.bf16.mxu0 0
  %1671 = vmatpush1.bf16.msra.mxu0 0
  %1672 = vmatprep.subr.bf16.mxu0 0
  %1673 = vmatpush1.bf16.msra.mxu0 0
  %1674 = vmatprep.subr.bf16.mxu0 0
  %1675 = vmatpush1.bf16.msra.mxu0 0
  %1676 = vmatprep.subr.bf16.mxu0 0
  %1677 = vmatpush1.bf16.msra.mxu0 0
  %1678 = vmatprep.subr.bf16.mxu0 0
  %1679 = vmatpush1.bf16.msra.mxu0 0
  %1680 = vmatprep.subr.bf16.mxu0 0
  %1681 = vmatpush1.bf16.msra.mxu0 0
  %1682 = vmatprep.mubr.bf16.mxu0 0
  %1683 = vmatmul.mubr.bf16.gmra.mrb[0].mxu0 %v1627
  %v1684 = vpop.f32.mrb[0].mxu0
  %v1685 = vadd.f32 %v1601, %v1684
  %v1686 = vpop.f32.mrb[0].mxu0
  %v1687 = vpop.f32.mrb[0].mxu0
  %v1688 = vadd.f32 %v1601, %v1687
  %v1689 = vpop.f32.mrb[0].mxu0
  %1690 = vmatprep.mubr.bf16.mxu0 0
  %1691 = vmatmul.mubr.bf16.gmra.mrb[0].mxu0 %v1630
  %v1692 = vpop.f32.mrb[0].mxu0
  %v1693 = vadd.f32 %v1601, %v1692
  %v1694 = vpop.f32.mrb[0].mxu0
  %v1695 = vpop.f32.mrb[0].mxu0
  %v1696 = vadd.f32 %v1601, %v1695
  %v1697 = vpop.f32.mrb[0].mxu0
  %1698 = vmatprep.mubr.bf16.mxu0 0
  %1699 = vmatmul.mubr.bf16.gmra.mrb[0].mxu0 %v1633
  %v1700 = vpop.f32.mrb[0].mxu0
  %v1701 = vadd.f32 %v1601, %v1700
  %v1702 = vpop.f32.mrb[0].mxu0
  %v1703 = vpop.f32.mrb[0].mxu0
  %v1704 = vadd.f32 %v1601, %v1703
  %v1705 = vpop.f32.mrb[0].mxu0
  %1706 = vmatprep.mubr.bf16.mxu0 0
  %1707 = vmatmul.mubr.bf16.gmra.mrb[0].mxu0 %v1636
  %v1708 = vpop.f32.mrb[0].mxu0
  %v1709 = vadd.f32 %v1601, %v1708
  %v1710 = vpop.f32.mrb[0].mxu0
  %v1711 = vpop.f32.mrb[0].mxu0
  %v1712 = vadd.f32 %v1601, %v1711
  %v1713 = vpop.f32.mrb[0].mxu0
  %1714 = vmatprep.mubr.bf16.mxu0 0
  %1715 = vmatmul.mubr.bf16.gmra.mrb[0].mxu0 %v1639
  %v1716 = vpop.f32.mrb[0].mxu0
  %v1717 = vadd.f32 %v1601, %v1716
  %v1718 = vpop.f32.mrb[0].mxu0
  %v1719 = vpop.f32.mrb[0].mxu0
  %v1720 = vadd.f32 %v1601, %v1719
  %v1721 = vpop.f32.mrb[0].mxu0
  %1722 = vmatprep.mubr.bf16.mxu0 0
  %1723 = vmatmul.mubr.bf16.gmra.mrb[0].mxu0 %v1642
  %v1724 = vpop.f32.mrb[0].mxu0
  %v1725 = vadd.f32 %v1601, %v1724
  %v1726 = vpop.f32.mrb[0].mxu0
  %v1727 = vpop.f32.mrb[0].mxu0
  %v1728 = vadd.f32 %v1601, %v1727
  %v1729 = vpop.f32.mrb[0].mxu0
  %1730 = vmatprep.mubr.bf16.mxu0 0
  %1731 = vmatmul.mubr.bf16.gmra.mrb[0].mxu0 %v1645
  %v1732 = vpop.f32.mrb[0].mxu0
  %v1733 = vadd.f32 %v1601, %v1732
  %v1734 = vpop.f32.mrb[0].mxu0
  %v1735 = vpop.f32.mrb[0].mxu0
  %v1736 = vadd.f32 %v1601, %v1735
  %v1737 = vpop.f32.mrb[0].mxu0
  %1738 = vmatprep.mubr.bf16.mxu0 0
  %1739 = vmatmul.mubr.bf16.gmra.mrb[0].mxu0 %v1648
  %v1740 = vpop.f32.mrb[0].mxu0
  %v1741 = vadd.f32 %v1601, %v1740
  %v1742 = vpop.f32.mrb[0].mxu0
  %v1743 = vpop.f32.mrb[0].mxu0
  %v1744 = vadd.f32 %v1601, %v1743
  %v1745 = vpop.f32.mrb[0].mxu0
  %1746 = vdwg.mxu0
  %v1747 = vld [vmem:[%s1] sm:$0xff]
  %v1748 = vld [vmem:[%s1 + $0x8] sm:$0xff]
  %v1749 = vld [vmem:[%s1 + $0x10] sm:$0xff]
  %v1750 = vld [vmem:[%s1 + $0x18] sm:$0xff]
  %v1751 = vld [vmem:[%s1 + $0x20] sm:$0xff]
  %v1752 = vld [vmem:[%s1 + $0x28] sm:$0xff]
  %v1753 = vld [vmem:[%s1 + $0x30] sm:$0xff]
  %v1754 = vld [vmem:[%s1 + $0x38] sm:$0xff]
  %v1755 = vld [vmem:[%s1 + $0x40] sm:$0xff]
  %v1756 = vld [vmem:[%s1 + $0x48] sm:$0xff]
  %v1757 = vld [vmem:[%s1 + $0x50] sm:$0xff]
  %v1758 = vld [vmem:[%s1 + $0x58] sm:$0xff]
  %v1759 = vld [vmem:[%s1 + $0x60] sm:$0xff]
  %v1760 = vld [vmem:[%s1 + $0x68] sm:$0xff]
  %v1761 = vld [vmem:[%s1 + $0x70] sm:$0xff]
  %v1762 = vld [vmem:[%s1 + $0x78] sm:$0xff]
  %1779 = vrot.lane.b32.xlu0 %v1747, 64
  %v1780 = vpop.permute.xlu0 %1779
  %1781 = vrot.lane.b32.xlu0 %v1748, 64
  %v1782 = vpop.permute.xlu0 %1781
  %1783 = vrot.lane.b32.xlu0 %v1749, 64
  %v1784 = vpop.permute.xlu0 %1783
  %1785 = vrot.lane.b32.xlu0 %v1750, 64
  %v1786 = vpop.permute.xlu0 %1785
  %1787 = vrot.lane.b32.xlu0 %v1751, 64
  %v1788 = vpop.permute.xlu0 %1787
  %1789 = vrot.lane.b32.xlu0 %v1752, 64
  %v1790 = vpop.permute.xlu0 %1789
  %1791 = vrot.lane.b32.xlu0 %v1753, 64
  %v1792 = vpop.permute.xlu0 %1791
  %1793 = vrot.lane.b32.xlu0 %v1754, 64
  %v1794 = vpop.permute.xlu0 %1793
  %1795 = vrot.lane.b32.xlu0 %v1755, 64
  %v1796 = vpop.permute.xlu0 %1795
  %1797 = vrot.lane.b32.xlu0 %v1756, 64
  %v1798 = vpop.permute.xlu0 %1797
  %1799 = vrot.lane.b32.xlu0 %v1757, 64
  %v1800 = vpop.permute.xlu0 %1799
  %1801 = vrot.lane.b32.xlu0 %v1758, 64
  %v1802 = vpop.permute.xlu0 %1801
  %1803 = vrot.lane.b32.xlu0 %v1759, 64
  %v1804 = vpop.permute.xlu0 %1803
  %1805 = vrot.lane.b32.xlu0 %v1760, 64
  %v1806 = vpop.permute.xlu0 %1805
  %1807 = vrot.lane.b32.xlu0 %v1761, 64
  %v1808 = vpop.permute.xlu0 %1807
  %1809 = vrot.lane.b32.xlu0 %v1762, 64
  %v1810 = vpop.permute.xlu0 %1809
  %v1827 = vsel %vm254, %v1685, %v1780
  %v1828 = vsel %vm254, %v1688, %v1782
  %v1829 = vsel %vm254, %v1693, %v1784
  %v1830 = vsel %vm254, %v1696, %v1786
  %v1831 = vsel %vm254, %v1701, %v1788
  %v1832 = vsel %vm254, %v1704, %v1790
  %v1833 = vsel %vm254, %v1709, %v1792
  %v1834 = vsel %vm254, %v1712, %v1794
  %v1835 = vsel %vm254, %v1717, %v1796
  %v1836 = vsel %vm254, %v1720, %v1798
  %v1837 = vsel %vm254, %v1725, %v1800
  %v1838 = vsel %vm254, %v1728, %v1802
  %v1839 = vsel %vm254, %v1733, %v1804
  %v1840 = vsel %vm254, %v1736, %v1806
  %v1841 = vsel %vm254, %v1741, %v1808
  %v1842 = vsel %vm254, %v1744, %v1810
  %v1843 = vpack.c.bf16 %v1828, %v1827
  %v1844 = vpack.c.bf16 %v1830, %v1829
  %v1845 = vpack.c.bf16 %v1832, %v1831
  %v1846 = vpack.c.bf16 %v1834, %v1833
  %v1847 = vpack.c.bf16 %v1836, %v1835
  %v1848 = vpack.c.bf16 %v1838, %v1837
  %v1849 = vpack.c.bf16 %v1840, %v1839
  %v1850 = vpack.c.bf16 %v1842, %v1841
  %v1851 = vld [vmem:[%s4] sm:$0xf]
  %v1852 = vld [vmem:[%s4 + $0x4] sm:$0xf]
  %v1853 = vld [vmem:[%s4 + $0x8] sm:$0xf]
  %v1854 = vld [vmem:[%s4 + $0xc] sm:$0xf]
  %v1855 = vld [vmem:[%s4 + $0x10] sm:$0xf]
  %v1856 = vld [vmem:[%s4 + $0x14] sm:$0xf]
  %v1857 = vld [vmem:[%s4 + $0x18] sm:$0xf]
  %v1858 = vld [vmem:[%s4 + $0x1c] sm:$0xf]
  %v1859 = vld [vmem:[%s4 + $0x20] sm:$0xf]
  %v1860 = vld [vmem:[%s4 + $0x24] sm:$0xf]
  %v1861 = vlaneseq
  %v1862 = vshrl.u32 %v1861, 7
  %v1863 = vsub.s32 0, %v1862
  %v1864 = vrot.slane %v26, %v1863
  %v1875 = vunpack.c.l.b16 %v1851
  %v1876 = vunpack.c.l.b16 %v1852
  %v1877 = vunpack.c.l.b16 %v1853
  %v1878 = vunpack.c.l.b16 %v1854
  %v1879 = vunpack.c.l.b16 %v1855
  %v1880 = vunpack.c.l.b16 %v1856
  %v1881 = vunpack.c.l.b16 %v1857
  %v1882 = vunpack.c.l.b16 %v1858
  %v1883 = vunpack.c.l.b16 %v1859
  %v1884 = vunpack.c.l.b16 %v1860
  %v1885 = vpack.c.b16 %v1876, %v1875
  %v1886 = vpack.c.b16 %v1878, %v1877
  %v1887 = vpack.c.b16 %v1880, %v1879
  %v1888 = vpack.c.b16 %v1882, %v1881
  %v1889 = vpack.c.b16 %v1884, %v1883
  %vm1895 = vcmask 654336
  %v1897 = vsel %vm1895, %v1843, 0
  %v1900 = vsel %vm1895, %v1844, 0
  %v1903 = vsel %vm1895, %v1845, 0
  %v1906 = vsel %vm1895, %v1846, 0
  %v1909 = vsel %vm1895, %v1847, 0
  %v1912 = vsel %vm1895, %v1848, 0
  %v1915 = vsel %vm1895, %v1849, 0
  %v1918 = vsel %vm1895, %v1850, 0
  %1920 = vmatprep.subr.bf16.mxu0 0
  %1921 = vmatpush1.bf16.msra.mxu0 %v1885
  %1922 = vmatprep.subr.bf16.mxu0 0
  %1923 = vmatpush1.bf16.msra.mxu0 %v1886
  %1924 = vmatprep.subr.bf16.mxu0 0
  %1925 = vmatpush1.bf16.msra.mxu0 %v1887
  %1926 = vmatprep.subr.bf16.mxu0 0
  %1927 = vmatpush1.bf16.msra.mxu0 %v1888
  %1928 = vmatprep.subr.bf16.mxu0 0
  %1929 = vmatpush1.bf16.msra.mxu0 %v1889
  %1930 = vmatprep.subr.bf16.mxu0 0
  %1931 = vmatpush1.bf16.msra.mxu0 0
  %1932 = vmatprep.subr.bf16.mxu0 0
  %1933 = vmatpush1.bf16.msra.mxu0 0
  %1934 = vmatprep.subr.bf16.mxu0 0
  %1935 = vmatpush1.bf16.msra.mxu0 0
  %1936 = vmatprep.subr.bf16.mxu0 0
  %1937 = vmatpush1.bf16.msra.mxu0 0
  %1938 = vmatprep.subr.bf16.mxu0 0
  %1939 = vmatpush1.bf16.msra.mxu0 0
  %1940 = vmatprep.subr.bf16.mxu0 0
  %1941 = vmatpush1.bf16.msra.mxu0 0
  %1942 = vmatprep.subr.bf16.mxu0 0
  %1943 = vmatpush1.bf16.msra.mxu0 0
  %1944 = vmatprep.subr.bf16.mxu0 0
  %1945 = vmatpush1.bf16.msra.mxu0 0
  %1946 = vmatprep.subr.bf16.mxu0 0
  %1947 = vmatpush1.bf16.msra.mxu0 0
  %1948 = vmatprep.subr.bf16.mxu0 0
  %1949 = vmatpush1.bf16.msra.mxu0 0
  %1950 = vmatprep.subr.bf16.mxu0 0
  %1951 = vmatpush1.bf16.msra.mxu0 0
  %1952 = vmatprep.mubr.bf16.mxu0 0
  %1953 = vmatmul.mubr.bf16.gmra.mrb[0].mxu0 %v1897
  %v1954 = vpop.f32.mrb[0].mxu0
  %v1955 = vadd.f32 %v1864, %v1954
  %v1956 = vpop.f32.mrb[0].mxu0
  %v1957 = vpop.f32.mrb[0].mxu0
  %v1958 = vadd.f32 %v1864, %v1957
  %v1959 = vpop.f32.mrb[0].mxu0
  %1960 = vmatprep.mubr.bf16.mxu0 0
  %1961 = vmatmul.mubr.bf16.gmra.mrb[0].mxu0 %v1900
  %v1962 = vpop.f32.mrb[0].mxu0
  %v1963 = vadd.f32 %v1864, %v1962
  %v1964 = vpop.f32.mrb[0].mxu0
  %v1965 = vpop.f32.mrb[0].mxu0
  %v1966 = vadd.f32 %v1864, %v1965
  %v1967 = vpop.f32.mrb[0].mxu0
  %1968 = vmatprep.mubr.bf16.mxu0 0
  %1969 = vmatmul.mubr.bf16.gmra.mrb[0].mxu0 %v1903
  %v1970 = vpop.f32.mrb[0].mxu0
  %v1971 = vadd.f32 %v1864, %v1970
  %v1972 = vpop.f32.mrb[0].mxu0
  %v1973 = vpop.f32.mrb[0].mxu0
  %v1974 = vadd.f32 %v1864, %v1973
  %v1975 = vpop.f32.mrb[0].mxu0
  %1976 = vmatprep.mubr.bf16.mxu0 0
  %1977 = vmatmul.mubr.bf16.gmra.mrb[0].mxu0 %v1906
  %v1978 = vpop.f32.mrb[0].mxu0
  %v1979 = vadd.f32 %v1864, %v1978
  %v1980 = vpop.f32.mrb[0].mxu0
  %v1981 = vpop.f32.mrb[0].mxu0
  %v1982 = vadd.f32 %v1864, %v1981
  %v1983 = vpop.f32.mrb[0].mxu0
  %1984 = vmatprep.mubr.bf16.mxu0 0
  %1985 = vmatmul.mubr.bf16.gmra.mrb[0].mxu0 %v1909
  %v1986 = vpop.f32.mrb[0].mxu0
  %v1987 = vadd.f32 %v1864, %v1986
  %v1988 = vpop.f32.mrb[0].mxu0
  %v1989 = vpop.f32.mrb[0].mxu0
  %v1990 = vadd.f32 %v1864, %v1989
  %v1991 = vpop.f32.mrb[0].mxu0
  %1992 = vmatprep.mubr.bf16.mxu0 0
  %1993 = vmatmul.mubr.bf16.gmra.mrb[0].mxu0 %v1912
  %v1994 = vpop.f32.mrb[0].mxu0
  %v1995 = vadd.f32 %v1864, %v1994
  %v1996 = vpop.f32.mrb[0].mxu0
  %v1997 = vpop.f32.mrb[0].mxu0
  %v1998 = vadd.f32 %v1864, %v1997
  %v1999 = vpop.f32.mrb[0].mxu0
  %2000 = vmatprep.mubr.bf16.mxu0 0
  %2001 = vmatmul.mubr.bf16.gmra.mrb[0].mxu0 %v1915
  %v2002 = vpop.f32.mrb[0].mxu0
  %v2003 = vadd.f32 %v1864, %v2002
  %v2004 = vpop.f32.mrb[0].mxu0
  %v2005 = vpop.f32.mrb[0].mxu0
  %v2006 = vadd.f32 %v1864, %v2005
  %v2007 = vpop.f32.mrb[0].mxu0
  %2008 = vmatprep.mubr.bf16.mxu0 0
  %2009 = vmatmul.mubr.bf16.gmra.mrb[0].mxu0 %v1918
  %v2010 = vpop.f32.mrb[0].mxu0
  %v2011 = vadd.f32 %v1864, %v2010
  %v2012 = vpop.f32.mrb[0].mxu0
  %v2013 = vpop.f32.mrb[0].mxu0
  %v2014 = vadd.f32 %v1864, %v2013
  %v2015 = vpop.f32.mrb[0].mxu0
  %2016 = vdwg.mxu0
  %v2017 = vmax.f32 %v1955, 0.0
  %v2018 = vmax.f32 %v1958, 0.0
  %v2019 = vmax.f32 %v1963, 0.0
  %v2020 = vmax.f32 %v1966, 0.0
  %v2021 = vmax.f32 %v1971, 0.0
  %v2022 = vmax.f32 %v1974, 0.0
  %v2023 = vmax.f32 %v1979, 0.0
  %v2024 = vmax.f32 %v1982, 0.0
  %v2025 = vmax.f32 %v1987, 0.0
  %v2026 = vmax.f32 %v1990, 0.0
  %v2027 = vmax.f32 %v1995, 0.0
  %v2028 = vmax.f32 %v1998, 0.0
  %v2029 = vmax.f32 %v2003, 0.0
  %v2030 = vmax.f32 %v2006, 0.0
  %v2031 = vmax.f32 %v2011, 0.0
  %v2032 = vmax.f32 %v2014, 0.0
  %v2033 = vlaneseq
  %v2034 = vshrl.u32 %v2033, 7
  %v2035 = vsub.s32 1, %v2034
  %v2036 = vrot.slane %v26, %v2035
  %v2037 = vmul.f32 %v2017, %v2036
  %v2038 = vmul.f32 %v2018, %v2036
  %v2039 = vmul.f32 %v2019, %v2036
  %v2040 = vmul.f32 %v2020, %v2036
  %v2041 = vmul.f32 %v2021, %v2036
  %v2042 = vmul.f32 %v2022, %v2036
  %v2043 = vmul.f32 %v2023, %v2036
  %v2044 = vmul.f32 %v2024, %v2036
  %v2045 = vmul.f32 %v2025, %v2036
  %v2046 = vmul.f32 %v2026, %v2036
  %v2047 = vmul.f32 %v2027, %v2036
  %v2048 = vmul.f32 %v2028, %v2036
  %v2049 = vmul.f32 %v2029, %v2036
  %v2050 = vmul.f32 %v2030, %v2036
  %v2051 = vmul.f32 %v2031, %v2036
  %v2052 = vmul.f32 %v2032, %v2036
  %v2053 = vsel %vm71, %v2037, 0.0
  %2054 = vadd.xlane.f32.xlu0 %v2053
  %v2055 = vpop.xlane.xlu0 %2054
  %v2056 = vsel %vm71, %v2038, 0.0
  %2057 = vadd.xlane.f32.xlu0 %v2056
  %v2058 = vpop.xlane.xlu0 %2057
  %v2059 = vsel %vm71, %v2039, 0.0
  %2060 = vadd.xlane.f32.xlu0 %v2059
  %v2061 = vpop.xlane.xlu0 %2060
  %v2062 = vsel %vm71, %v2040, 0.0
  %2063 = vadd.xlane.f32.xlu0 %v2062
  %v2064 = vpop.xlane.xlu0 %2063
  %v2065 = vsel %vm71, %v2041, 0.0
  %2066 = vadd.xlane.f32.xlu0 %v2065
  %v2067 = vpop.xlane.xlu0 %2066
  %v2068 = vsel %vm71, %v2042, 0.0
  %2069 = vadd.xlane.f32.xlu0 %v2068
  %v2070 = vpop.xlane.xlu0 %2069
  %v2071 = vsel %vm71, %v2043, 0.0
  %2072 = vadd.xlane.f32.xlu0 %v2071
  %v2073 = vpop.xlane.xlu0 %2072
  %v2074 = vsel %vm71, %v2044, 0.0
  %2075 = vadd.xlane.f32.xlu0 %v2074
  %v2076 = vpop.xlane.xlu0 %2075
  %v2077 = vsel %vm71, %v2045, 0.0
  %2078 = vadd.xlane.f32.xlu0 %v2077
  %v2079 = vpop.xlane.xlu0 %2078
  %v2080 = vsel %vm71, %v2046, 0.0
  %2081 = vadd.xlane.f32.xlu0 %v2080
  %v2082 = vpop.xlane.xlu0 %2081
  %v2083 = vsel %vm71, %v2047, 0.0
  %2084 = vadd.xlane.f32.xlu0 %v2083
  %v2085 = vpop.xlane.xlu0 %2084
  %v2086 = vsel %vm71, %v2048, 0.0
  %2087 = vadd.xlane.f32.xlu0 %v2086
  %v2088 = vpop.xlane.xlu0 %2087
  %v2089 = vsel %vm71, %v2049, 0.0
  %2090 = vadd.xlane.f32.xlu0 %v2089
  %v2091 = vpop.xlane.xlu0 %2090
  %v2092 = vsel %vm71, %v2050, 0.0
  %2093 = vadd.xlane.f32.xlu0 %v2092
  %v2094 = vpop.xlane.xlu0 %2093
  %v2095 = vsel %vm71, %v2051, 0.0
  %2096 = vadd.xlane.f32.xlu0 %v2095
  %v2097 = vpop.xlane.xlu0 %2096
  %v2098 = vsel %vm71, %v2052, 0.0
  %2099 = vadd.xlane.f32.xlu0 %v2098
  %v2100 = vpop.xlane.xlu0 %2099
  %v2101 = vlaneseq
  %v2102 = vshrl.u32 %v2101, 7
  %v2103 = vsub.s32 2, %v2102
  %v2104 = vrot.slane %v26, %v2103
  %v2105 = vadd.f32 %v2055, %v2104
  %v2106 = vadd.f32 %v2058, %v2104
  %v2107 = vadd.f32 %v2061, %v2104
  %v2108 = vadd.f32 %v2064, %v2104
  %v2109 = vadd.f32 %v2067, %v2104
  %v2110 = vadd.f32 %v2070, %v2104
  %v2111 = vadd.f32 %v2073, %v2104
  %v2112 = vadd.f32 %v2076, %v2104
  %v2113 = vadd.f32 %v2079, %v2104
  %v2114 = vadd.f32 %v2082, %v2104
  %v2115 = vadd.f32 %v2085, %v2104
  %v2116 = vadd.f32 %v2088, %v2104
  %v2117 = vadd.f32 %v2091, %v2104
  %v2118 = vadd.f32 %v2094, %v2104
  %v2119 = vadd.f32 %v2097, %v2104
  %v2120 = vadd.f32 %v2100, %v2104
  %vm2121 = vcmask 7168
  %2122 = vst.msk [vmem:[%s6] sm:$0xff] %vm2121, %v2105
  %2123 = vst.msk [vmem:[%s6 + $0x8] sm:$0xff] %vm2121, %v2106
  %2124 = vst.msk [vmem:[%s6 + $0x10] sm:$0xff] %vm2121, %v2107
  %2125 = vst.msk [vmem:[%s6 + $0x18] sm:$0xff] %vm2121, %v2108
  %2126 = vst.msk [vmem:[%s6 + $0x20] sm:$0xff] %vm2121, %v2109
  %2127 = vst.msk [vmem:[%s6 + $0x28] sm:$0xff] %vm2121, %v2110
  %2128 = vst.msk [vmem:[%s6 + $0x30] sm:$0xff] %vm2121, %v2111
  %2129 = vst.msk [vmem:[%s6 + $0x38] sm:$0xff] %vm2121, %v2112
  %2130 = vst.msk [vmem:[%s6 + $0x40] sm:$0xff] %vm2121, %v2113
  %2131 = vst.msk [vmem:[%s6 + $0x48] sm:$0xff] %vm2121, %v2114
  %2132 = vst.msk [vmem:[%s6 + $0x50] sm:$0xff] %vm2121, %v2115
  %2133 = vst.msk [vmem:[%s6 + $0x58] sm:$0xff] %vm2121, %v2116
  %2134 = vst.msk [vmem:[%s6 + $0x60] sm:$0xff] %vm2121, %v2117
  %2135 = vst.msk [vmem:[%s6 + $0x68] sm:$0xff] %vm2121, %v2118
  %2136 = vst.msk [vmem:[%s6 + $0x70] sm:$0xff] %vm2121, %v2119
  %2137 = vst.msk [vmem:[%s6 + $0x78] sm:$0xff] %vm2121, %v2120
  // Predicated region
  $region26: #{official_nerf_vae_forward.3} parent=0 // pred_check
    _
  $region27: #{official_nerf_vae_forward.3} parent=0 // pred_check_branch
    %2139 = sbr.rel (0) target = $region29
  $region28: #{official_nerf_vae_forward.3} parent=0 // pred_region
    _
  $region29: #{official_nerf_vae_forward.3} parent=0 // pred_fallthru
    _
  // Predicated region
  $region30: #{official_nerf_vae_forward.3} parent=0 // pred_check
    _
  $region31: #{official_nerf_vae_forward.3} parent=0 // pred_check_branch
    %2141 = sbr.rel (0) target = $region33
  $region32: #{official_nerf_vae_forward.3} parent=0 // pred_region
    _
  $region33: #{official_nerf_vae_forward.3} parent=0 // pred_fallthru
    _

// kernel: official_nerf_vae_forward.2
$region0: #{official_nerf_vae_forward.2}
  #allocation0 [shape = 'u32[]', space=smem, size = 0x4, offset = 0x4, fixed_abs, tag = 'smem constant byte address 0x4 - core index']
  #allocation1 [shape = 'u32[144,128]{1,0:T(1,128)}', space=vmem, size = 0x12000, scoped, tag = 'internal scratch']
  %s0 = inlined_call_operand.vmem [shape: bf16[8,3072], index: 0, kind: input, shape index: {}]
  %s1 = inlined_call_operand.vmem [shape: bf16[3072,256], index: 1, kind: input, shape index: {}]
  %s2 = inlined_call_operand.vmem [shape: f32[1,256], index: 2, kind: input, shape index: {}]
  %s3 = inlined_call_operand.vmem [shape: bf16[256,128], index: 3, kind: input, shape index: {}]
  %s4 = inlined_call_operand.vmem [shape: f32[1,128], index: 4, kind: input, shape index: {}]
  %s5 = inlined_call_operand.vmem [shape: bf16[128,64], index: 5, kind: input, shape index: {}]
  %s6 = inlined_call_operand.vmem [shape: f32[1,64], index: 6, kind: input, shape index: {}]
  %s7 = inlined_call_operand.vmem [shape: bf16[64,64], index: 7, kind: input, shape index: {}]
  %s8 = inlined_call_operand.vmem [shape: f32[1,64], index: 8, kind: input, shape index: {}]
  %s9 = inlined_call_operand.vmem [shape: bf16[64,64], index: 9, kind: input, shape index: {}]
  %s10 = inlined_call_operand.vmem [shape: f32[1,64], index: 10, kind: input, shape index: {}]
  %s11 = inlined_call_operand.vmem [shape: f32[8,64], index: 11, kind: output, shape index: {}]
  %s12 = sld [smem:[#allocation0]]
  $region54: #{official_nerf_vae_forward.2} parent=0
    _
  %s14 = ssub.s32 1, %s12
  %s15 = scalar_select 0, %s14, %s12
  // Predicated region
  $region2: #{official_nerf_vae_forward.2} parent=0 // pred_check
    _
  $region3: #{official_nerf_vae_forward.2} parent=0 // pred_check_branch
    %17 = sbr.rel (0) target = $region5
  $region4: #{official_nerf_vae_forward.2} parent=0 // pred_region
    _
  $region5: #{official_nerf_vae_forward.2} parent=0 // pred_fallthru
    _
  // Predicated region
  $region6: #{official_nerf_vae_forward.2} parent=0 // pred_check
    _
  $region7: #{official_nerf_vae_forward.2} parent=0 // pred_check_branch
    %19 = sbr.rel (0) target = $region9
  $region8: #{official_nerf_vae_forward.2} parent=0 // pred_region
    _
  $region9: #{official_nerf_vae_forward.2} parent=0 // pred_fallthru
    _
  // Predicated region
  $region10: #{official_nerf_vae_forward.2} parent=0 // pred_check
    _
  $region11: #{official_nerf_vae_forward.2} parent=0 // pred_check_branch
    %21 = sbr.rel (0) target = $region13
  $region12: #{official_nerf_vae_forward.2} parent=0 // pred_region
    _
  $region13: #{official_nerf_vae_forward.2} parent=0 // pred_fallthru
    _
  // Predicated region
  $region14: #{official_nerf_vae_forward.2} parent=0 // pred_check
    _
  $region15: #{official_nerf_vae_forward.2} parent=0 // pred_check_branch
    %23 = sbr.rel (0) target = $region17
  $region16: #{official_nerf_vae_forward.2} parent=0 // pred_region
    _
  $region17: #{official_nerf_vae_forward.2} parent=0 // pred_fallthru
    _
  // Predicated region
  $region18: #{official_nerf_vae_forward.2} parent=0 // pred_check
    _
  $region19: #{official_nerf_vae_forward.2} parent=0 // pred_check_branch
    %25 = sbr.rel (0) target = $region21
  $region20: #{official_nerf_vae_forward.2} parent=0 // pred_region
    _
  $region21: #{official_nerf_vae_forward.2} parent=0 // pred_fallthru
    _
  // Predicated region
  $region22: #{official_nerf_vae_forward.2} parent=0 // pred_check
    _
  $region23: #{official_nerf_vae_forward.2} parent=0 // pred_check_branch
    %27 = sbr.rel (0) target = $region25
  $region24: #{official_nerf_vae_forward.2} parent=0 // pred_region
    _
  $region25: #{official_nerf_vae_forward.2} parent=0 // pred_fallthru
    _
  // Predicated region
  $region26: #{official_nerf_vae_forward.2} parent=0 // pred_check
    _
  $region27: #{official_nerf_vae_forward.2} parent=0 // pred_check_branch
    %29 = sbr.rel (0) target = $region29
  $region28: #{official_nerf_vae_forward.2} parent=0 // pred_region
    _
  $region29: #{official_nerf_vae_forward.2} parent=0 // pred_fallthru
    _
  // Predicated region
  $region30: #{official_nerf_vae_forward.2} parent=0 // pred_check
    _
  $region31: #{official_nerf_vae_forward.2} parent=0 // pred_check_branch
    %31 = sbr.rel (0) target = $region33
  $region32: #{official_nerf_vae_forward.2} parent=0 // pred_region
    _
  $region33: #{official_nerf_vae_forward.2} parent=0 // pred_fallthru
    _
  // Predicated region
  $region34: #{official_nerf_vae_forward.2} parent=0 // pred_check
    _
  $region35: #{official_nerf_vae_forward.2} parent=0 // pred_check_branch
    %33 = sbr.rel (0) target = $region37
  $region36: #{official_nerf_vae_forward.2} parent=0 // pred_region
    _
  $region37: #{official_nerf_vae_forward.2} parent=0 // pred_fallthru
    _
  // Predicated region
  $region38: #{official_nerf_vae_forward.2} parent=0 // pred_check
    _
  $region39: #{official_nerf_vae_forward.2} parent=0 // pred_check_branch
    %35 = sbr.rel (0) target = $region41
  $region40: #{official_nerf_vae_forward.2} parent=0 // pred_region
    _
  $region41: #{official_nerf_vae_forward.2} parent=0 // pred_fallthru
    _
  // Predicated region
  $region42: #{official_nerf_vae_forward.2} parent=0 // pred_check
    _
  $region43: #{official_nerf_vae_forward.2} parent=0 // pred_check_branch
    %37 = sbr.rel (0) target = $region45
  $region44: #{official_nerf_vae_forward.2} parent=0 // pred_region
    _
  $region45: #{official_nerf_vae_forward.2} parent=0 // pred_fallthru
    _
  %v39 = vld [vmem:[%s0] sm:$0xff]
  %v40 = vld [vmem:[%s0 + $0x8] sm:$0xff]
  %v41 = vld [vmem:[%s0 + $0x10] sm:$0xff]
  %v42 = vld [vmem:[%s0 + $0x18] sm:$0xff]
  %v43 = vld [vmem:[%s0 + $0x20] sm:$0xff]
  %v44 = vld [vmem:[%s0 + $0x28] sm:$0xff]
  %v45 = vld [vmem:[%s0 + $0x30] sm:$0xff]
  %v46 = vld [vmem:[%s0 + $0x38] sm:$0xff]
  %v47 = vld [vmem:[%s0 + $0x40] sm:$0xff]
  %v48 = vld [vmem:[%s0 + $0x48] sm:$0xff]
  %v49 = vld [vmem:[%s0 + $0x50] sm:$0xff]
  %v50 = vld [vmem:[%s0 + $0x58] sm:$0xff]
  %v51 = vld [vmem:[%s1] sm:$0xff]
  %v52 = vld [vmem:[%s1 + $0x8] sm:$0xff]
  %v53 = vld [vmem:[%s1 + $0x10] sm:$0xff]
  %v54 = vld [vmem:[%s1 + $0x18] sm:$0xff]
  %v55 = vld [vmem:[%s1 + $0x20] sm:$0xff]
  %v56 = vld [vmem:[%s1 + $0x28] sm:$0xff]
  %v57 = vld [vmem:[%s1 + $0x30] sm:$0xff]
  %v58 = vld [vmem:[%s1 + $0x38] sm:$0xff]
  %v59 = vld [vmem:[%s1 + $0x40] sm:$0xff]
  %v60 = vld [vmem:[%s1 + $0x48] sm:$0xff]
  %v61 = vld [vmem:[%s1 + $0x50] sm:$0xff]
  %v62 = vld [vmem:[%s1 + $0x58] sm:$0xff]
  %v63 = vld [vmem:[%s1 + $0x60] sm:$0xff]
  %v64 = vld [vmem:[%s1 + $0x68] sm:$0xff]
  %v65 = vld [vmem:[%s1 + $0x70] sm:$0xff]
  %v66 = vld [vmem:[%s1 + $0x78] sm:$0xff]
  %v67 = vld [vmem:[%s1 + $0x80] sm:$0xff]
  %v68 = vld [vmem:[%s1 + $0x88] sm:$0xff]
  %v69 = vld [vmem:[%s1 + $0x90] sm:$0xff]
  %v70 = vld [vmem:[%s1 + $0x98] sm:$0xff]
  %v71 = vld [vmem:[%s1 + $0xa0] sm:$0xff]
  %v72 = vld [vmem:[%s1 + $0xa8] sm:$0xff]
  %v73 = vld [vmem:[%s1 + $0xb0] sm:$0xff]
  %v74 = vld [vmem:[%s1 + $0xb8] sm:$0xff]
  %v75 = vld [vmem:[%s1 + $0xc0] sm:$0xff]
  %v76 = vld [vmem:[%s1 + $0xc8] sm:$0xff]
  %v77 = vld [vmem:[%s1 + $0xd0] sm:$0xff]
  %v78 = vld [vmem:[%s1 + $0xd8] sm:$0xff]
  %v79 = vld [vmem:[%s1 + $0xe0] sm:$0xff]
  %v80 = vld [vmem:[%s1 + $0xe8] sm:$0xff]
  %v81 = vld [vmem:[%s1 + $0xf0] sm:$0xff]
  %v82 = vld [vmem:[%s1 + $0xf8] sm:$0xff]
  %v83 = vld [vmem:[%s1 + $0x100] sm:$0xff]
  %v84 = vld [vmem:[%s1 + $0x108] sm:$0xff]
  %v85 = vld [vmem:[%s1 + $0x110] sm:$0xff]
  %v86 = vld [vmem:[%s1 + $0x118] sm:$0xff]
  %v87 = vld [vmem:[%s1 + $0x120] sm:$0xff]
  %v88 = vld [vmem:[%s1 + $0x128] sm:$0xff]
  %v89 = vld [vmem:[%s1 + $0x130] sm:$0xff]
  %v90 = vld [vmem:[%s1 + $0x138] sm:$0xff]
  %v91 = vld [vmem:[%s1 + $0x140] sm:$0xff]
  %v92 = vld [vmem:[%s1 + $0x148] sm:$0xff]
  %v93 = vld [vmem:[%s1 + $0x150] sm:$0xff]
  %v94 = vld [vmem:[%s1 + $0x158] sm:$0xff]
  %v95 = vld [vmem:[%s1 + $0x160] sm:$0xff]
  %v96 = vld [vmem:[%s1 + $0x168] sm:$0xff]
  %v97 = vld [vmem:[%s1 + $0x170] sm:$0xff]
  %v98 = vld [vmem:[%s1 + $0x178] sm:$0xff]
  %v99 = vld [vmem:[%s1 + $0x180] sm:$0xff]
  %v100 = vld [vmem:[%s1 + $0x188] sm:$0xff]
  %v101 = vld [vmem:[%s1 + $0x190] sm:$0xff]
  %v102 = vld [vmem:[%s1 + $0x198] sm:$0xff]
  %v103 = vld [vmem:[%s1 + $0x1a0] sm:$0xff]
  %v104 = vld [vmem:[%s1 + $0x1a8] sm:$0xff]
  %v105 = vld [vmem:[%s1 + $0x1b0] sm:$0xff]
  %v106 = vld [vmem:[%s1 + $0x1b8] sm:$0xff]
  %v107 = vld [vmem:[%s1 + $0x1c0] sm:$0xff]
  %v108 = vld [vmem:[%s1 + $0x1c8] sm:$0xff]
  %v109 = vld [vmem:[%s1 + $0x1d0] sm:$0xff]
  %v110 = vld [vmem:[%s1 + $0x1d8] sm:$0xff]
  %v111 = vld [vmem:[%s1 + $0x1e0] sm:$0xff]
  %v112 = vld [vmem:[%s1 + $0x1e8] sm:$0xff]
  %v113 = vld [vmem:[%s1 + $0x1f0] sm:$0xff]
  %v114 = vld [vmem:[%s1 + $0x1f8] sm:$0xff]
  %v115 = vld [vmem:[%s1 + $0x200] sm:$0xff]
  %v116 = vld [vmem:[%s1 + $0x208] sm:$0xff]
  %v117 = vld [vmem:[%s1 + $0x210] sm:$0xff]
  %v118 = vld [vmem:[%s1 + $0x218] sm:$0xff]
  %v119 = vld [vmem:[%s1 + $0x220] sm:$0xff]
  %v120 = vld [vmem:[%s1 + $0x228] sm:$0xff]
  %v121 = vld [vmem:[%s1 + $0x230] sm:$0xff]
  %v122 = vld [vmem:[%s1 + $0x238] sm:$0xff]
  %v123 = vld [vmem:[%s1 + $0x240] sm:$0xff]
  %v124 = vld [vmem:[%s1 + $0x248] sm:$0xff]
  %v125 = vld [vmem:[%s1 + $0x250] sm:$0xff]
  %v126 = vld [vmem:[%s1 + $0x258] sm:$0xff]
  %v127 = vld [vmem:[%s1 + $0x260] sm:$0xff]
  %v128 = vld [vmem:[%s1 + $0x268] sm:$0xff]
  %v129 = vld [vmem:[%s1 + $0x270] sm:$0xff]
  %v130 = vld [vmem:[%s1 + $0x278] sm:$0xff]
  %v131 = vld [vmem:[%s1 + $0x280] sm:$0xff]
  %v132 = vld [vmem:[%s1 + $0x288] sm:$0xff]
  %v133 = vld [vmem:[%s1 + $0x290] sm:$0xff]
  %v134 = vld [vmem:[%s1 + $0x298] sm:$0xff]
  %v135 = vld [vmem:[%s1 + $0x2a0] sm:$0xff]
  %v136 = vld [vmem:[%s1 + $0x2a8] sm:$0xff]
  %v137 = vld [vmem:[%s1 + $0x2b0] sm:$0xff]
  %v138 = vld [vmem:[%s1 + $0x2b8] sm:$0xff]
  %v139 = vld [vmem:[%s1 + $0x2c0] sm:$0xff]
  %v140 = vld [vmem:[%s1 + $0x2c8] sm:$0xff]
  %v141 = vld [vmem:[%s1 + $0x2d0] sm:$0xff]
  %v142 = vld [vmem:[%s1 + $0x2d8] sm:$0xff]
  %v143 = vld [vmem:[%s1 + $0x2e0] sm:$0xff]
  %v144 = vld [vmem:[%s1 + $0x2e8] sm:$0xff]
  %v145 = vld [vmem:[%s1 + $0x2f0] sm:$0xff]
  %v146 = vld [vmem:[%s1 + $0x2f8] sm:$0xff]
  %v147 = vld [vmem:[%s1 + $0x300] sm:$0xff]
  %v148 = vld [vmem:[%s1 + $0x308] sm:$0xff]
  %v149 = vld [vmem:[%s1 + $0x310] sm:$0xff]
  %v150 = vld [vmem:[%s1 + $0x318] sm:$0xff]
  %v151 = vld [vmem:[%s1 + $0x320] sm:$0xff]
  %v152 = vld [vmem:[%s1 + $0x328] sm:$0xff]
  %v153 = vld [vmem:[%s1 + $0x330] sm:$0xff]
  %v154 = vld [vmem:[%s1 + $0x338] sm:$0xff]
  %v155 = vld [vmem:[%s1 + $0x340] sm:$0xff]
  %v156 = vld [vmem:[%s1 + $0x348] sm:$0xff]
  %v157 = vld [vmem:[%s1 + $0x350] sm:$0xff]
  %v158 = vld [vmem:[%s1 + $0x358] sm:$0xff]
  %v159 = vld [vmem:[%s1 + $0x360] sm:$0xff]
  %v160 = vld [vmem:[%s1 + $0x368] sm:$0xff]
  %v161 = vld [vmem:[%s1 + $0x370] sm:$0xff]
  %v162 = vld [vmem:[%s1 + $0x378] sm:$0xff]
  %v163 = vld [vmem:[%s1 + $0x380] sm:$0xff]
  %v164 = vld [vmem:[%s1 + $0x388] sm:$0xff]
  %v165 = vld [vmem:[%s1 + $0x390] sm:$0xff]
  %v166 = vld [vmem:[%s1 + $0x398] sm:$0xff]
  %v167 = vld [vmem:[%s1 + $0x3a0] sm:$0xff]
  %v168 = vld [vmem:[%s1 + $0x3a8] sm:$0xff]
  %v169 = vld [vmem:[%s1 + $0x3b0] sm:$0xff]
  %v170 = vld [vmem:[%s1 + $0x3b8] sm:$0xff]
  %v171 = vld [vmem:[%s1 + $0x3c0] sm:$0xff]
  %v172 = vld [vmem:[%s1 + $0x3c8] sm:$0xff]
  %v173 = vld [vmem:[%s1 + $0x3d0] sm:$0xff]
  %v174 = vld [vmem:[%s1 + $0x3d8] sm:$0xff]
  %v175 = vld [vmem:[%s1 + $0x3e0] sm:$0xff]
  %v176 = vld [vmem:[%s1 + $0x3e8] sm:$0xff]
  %v177 = vld [vmem:[%s1 + $0x3f0] sm:$0xff]
  %v178 = vld [vmem:[%s1 + $0x3f8] sm:$0xff]
  %v179 = vld [vmem:[%s1 + $0x400] sm:$0xff]
  %v180 = vld [vmem:[%s1 + $0x408] sm:$0xff]
  %v181 = vld [vmem:[%s1 + $0x410] sm:$0xff]
  %v182 = vld [vmem:[%s1 + $0x418] sm:$0xff]
  %v183 = vld [vmem:[%s1 + $0x420] sm:$0xff]
  %v184 = vld [vmem:[%s1 + $0x428] sm:$0xff]
  %v185 = vld [vmem:[%s1 + $0x430] sm:$0xff]
  %v186 = vld [vmem:[%s1 + $0x438] sm:$0xff]
  %v187 = vld [vmem:[%s1 + $0x440] sm:$0xff]
  %v188 = vld [vmem:[%s1 + $0x448] sm:$0xff]
  %v189 = vld [vmem:[%s1 + $0x450] sm:$0xff]
  %v190 = vld [vmem:[%s1 + $0x458] sm:$0xff]
  %v191 = vld [vmem:[%s1 + $0x460] sm:$0xff]
  %v192 = vld [vmem:[%s1 + $0x468] sm:$0xff]
  %v193 = vld [vmem:[%s1 + $0x470] sm:$0xff]
  %v194 = vld [vmem:[%s1 + $0x478] sm:$0xff]
  %v195 = vld [vmem:[%s1 + $0x480] sm:$0xff]
  %v196 = vld [vmem:[%s1 + $0x488] sm:$0xff]
  %v197 = vld [vmem:[%s1 + $0x490] sm:$0xff]
  %v198 = vld [vmem:[%s1 + $0x498] sm:$0xff]
  %v199 = vld [vmem:[%s1 + $0x4a0] sm:$0xff]
  %v200 = vld [vmem:[%s1 + $0x4a8] sm:$0xff]
  %v201 = vld [vmem:[%s1 + $0x4b0] sm:$0xff]
  %v202 = vld [vmem:[%s1 + $0x4b8] sm:$0xff]
  %v203 = vld [vmem:[%s1 + $0x4c0] sm:$0xff]
  %v204 = vld [vmem:[%s1 + $0x4c8] sm:$0xff]
  %v205 = vld [vmem:[%s1 + $0x4d0] sm:$0xff]
  %v206 = vld [vmem:[%s1 + $0x4d8] sm:$0xff]
  %v207 = vld [vmem:[%s1 + $0x4e0] sm:$0xff]
  %v208 = vld [vmem:[%s1 + $0x4e8] sm:$0xff]
  %v209 = vld [vmem:[%s1 + $0x4f0] sm:$0xff]
  %v210 = vld [vmem:[%s1 + $0x4f8] sm:$0xff]
  %v211 = vld [vmem:[%s1 + $0x500] sm:$0xff]
  %v212 = vld [vmem:[%s1 + $0x508] sm:$0xff]
  %v213 = vld [vmem:[%s1 + $0x510] sm:$0xff]
  %v214 = vld [vmem:[%s1 + $0x518] sm:$0xff]
  %v215 = vld [vmem:[%s1 + $0x520] sm:$0xff]
  %v216 = vld [vmem:[%s1 + $0x528] sm:$0xff]
  %v217 = vld [vmem:[%s1 + $0x530] sm:$0xff]
  %v218 = vld [vmem:[%s1 + $0x538] sm:$0xff]
  %v219 = vld [vmem:[%s1 + $0x540] sm:$0xff]
  %v220 = vld [vmem:[%s1 + $0x548] sm:$0xff]
  %v221 = vld [vmem:[%s1 + $0x550] sm:$0xff]
  %v222 = vld [vmem:[%s1 + $0x558] sm:$0xff]
  %v223 = vld [vmem:[%s1 + $0x560] sm:$0xff]
  %v224 = vld [vmem:[%s1 + $0x568] sm:$0xff]
  %v225 = vld [vmem:[%s1 + $0x570] sm:$0xff]
  %v226 = vld [vmem:[%s1 + $0x578] sm:$0xff]
  %v227 = vld [vmem:[%s1 + $0x580] sm:$0xff]
  %v228 = vld [vmem:[%s1 + $0x588] sm:$0xff]
  %v229 = vld [vmem:[%s1 + $0x590] sm:$0xff]
  %v230 = vld [vmem:[%s1 + $0x598] sm:$0xff]
  %v231 = vld [vmem:[%s1 + $0x5a0] sm:$0xff]
  %v232 = vld [vmem:[%s1 + $0x5a8] sm:$0xff]
  %v233 = vld [vmem:[%s1 + $0x5b0] sm:$0xff]
  %v234 = vld [vmem:[%s1 + $0x5b8] sm:$0xff]
  %v235 = vld [vmem:[%s1 + $0x5c0] sm:$0xff]
  %v236 = vld [vmem:[%s1 + $0x5c8] sm:$0xff]
  %v237 = vld [vmem:[%s1 + $0x5d0] sm:$0xff]
  %v238 = vld [vmem:[%s1 + $0x5d8] sm:$0xff]
  %v239 = vld [vmem:[%s1 + $0x5e0] sm:$0xff]
  %v240 = vld [vmem:[%s1 + $0x5e8] sm:$0xff]
  %v241 = vld [vmem:[%s1 + $0x5f0] sm:$0xff]
  %v242 = vld [vmem:[%s1 + $0x5f8] sm:$0xff]
  %v243 = vld [vmem:[%s1 + $0x600] sm:$0xff]
  %v244 = vld [vmem:[%s1 + $0x608] sm:$0xff]
  %v245 = vld [vmem:[%s1 + $0x610] sm:$0xff]
  %v246 = vld [vmem:[%s1 + $0x618] sm:$0xff]
  %v247 = vld [vmem:[%s1 + $0x620] sm:$0xff]
  %v248 = vld [vmem:[%s1 + $0x628] sm:$0xff]
  %v249 = vld [vmem:[%s1 + $0x630] sm:$0xff]
  %v250 = vld [vmem:[%s1 + $0x638] sm:$0xff]
  %v251 = vld [vmem:[%s1 + $0x640] sm:$0xff]
  %v252 = vld [vmem:[%s1 + $0x648] sm:$0xff]
  %v253 = vld [vmem:[%s1 + $0x650] sm:$0xff]
  %v254 = vld [vmem:[%s1 + $0x658] sm:$0xff]
  %v255 = vld [vmem:[%s1 + $0x660] sm:$0xff]
  %v256 = vld [vmem:[%s1 + $0x668] sm:$0xff]
  %v257 = vld [vmem:[%s1 + $0x670] sm:$0xff]
  %v258 = vld [vmem:[%s1 + $0x678] sm:$0xff]
  %v259 = vld [vmem:[%s1 + $0x680] sm:$0xff]
  %v260 = vld [vmem:[%s1 + $0x688] sm:$0xff]
  %v261 = vld [vmem:[%s1 + $0x690] sm:$0xff]
  %v262 = vld [vmem:[%s1 + $0x698] sm:$0xff]
  %v263 = vld [vmem:[%s1 + $0x6a0] sm:$0xff]
  %v264 = vld [vmem:[%s1 + $0x6a8] sm:$0xff]
  %v265 = vld [vmem:[%s1 + $0x6b0] sm:$0xff]
  %v266 = vld [vmem:[%s1 + $0x6b8] sm:$0xff]
  %v267 = vld [vmem:[%s1 + $0x6c0] sm:$0xff]
  %v268 = vld [vmem:[%s1 + $0x6c8] sm:$0xff]
  %v269 = vld [vmem:[%s1 + $0x6d0] sm:$0xff]
  %v270 = vld [vmem:[%s1 + $0x6d8] sm:$0xff]
  %v271 = vld [vmem:[%s1 + $0x6e0] sm:$0xff]
  %v272 = vld [vmem:[%s1 + $0x6e8] sm:$0xff]
  %v273 = vld [vmem:[%s1 + $0x6f0] sm:$0xff]
  %v274 = vld [vmem:[%s1 + $0x6f8] sm:$0xff]
  %v275 = vld [vmem:[%s1 + $0x700] sm:$0xff]
  %v276 = vld [vmem:[%s1 + $0x708] sm:$0xff]
  %v277 = vld [vmem:[%s1 + $0x710] sm:$0xff]
  %v278 = vld [vmem:[%s1 + $0x718] sm:$0xff]
  %v279 = vld [vmem:[%s1 + $0x720] sm:$0xff]
  %v280 = vld [vmem:[%s1 + $0x728] sm:$0xff]
  %v281 = vld [vmem:[%s1 + $0x730] sm:$0xff]
  %v282 = vld [vmem:[%s1 + $0x738] sm:$0xff]
  %v283 = vld [vmem:[%s1 + $0x740] sm:$0xff]
  %v284 = vld [vmem:[%s1 + $0x748] sm:$0xff]
  %v285 = vld [vmem:[%s1 + $0x750] sm:$0xff]
  %v286 = vld [vmem:[%s1 + $0x758] sm:$0xff]
  %v287 = vld [vmem:[%s1 + $0x760] sm:$0xff]
  %v288 = vld [vmem:[%s1 + $0x768] sm:$0xff]
  %v289 = vld [vmem:[%s1 + $0x770] sm:$0xff]
  %v290 = vld [vmem:[%s1 + $0x778] sm:$0xff]
  %v291 = vld [vmem:[%s1 + $0x780] sm:$0xff]
  %v292 = vld [vmem:[%s1 + $0x788] sm:$0xff]
  %v293 = vld [vmem:[%s1 + $0x790] sm:$0xff]
  %v294 = vld [vmem:[%s1 + $0x798] sm:$0xff]
  %v295 = vld [vmem:[%s1 + $0x7a0] sm:$0xff]
  %v296 = vld [vmem:[%s1 + $0x7a8] sm:$0xff]
  %v297 = vld [vmem:[%s1 + $0x7b0] sm:$0xff]
  %v298 = vld [vmem:[%s1 + $0x7b8] sm:$0xff]
  %v299 = vld [vmem:[%s1 + $0x7c0] sm:$0xff]
  %v300 = vld [vmem:[%s1 + $0x7c8] sm:$0xff]
  %v301 = vld [vmem:[%s1 + $0x7d0] sm:$0xff]
  %v302 = vld [vmem:[%s1 + $0x7d8] sm:$0xff]
  %v303 = vld [vmem:[%s1 + $0x7e0] sm:$0xff]
  %v304 = vld [vmem:[%s1 + $0x7e8] sm:$0xff]
  %v305 = vld [vmem:[%s1 + $0x7f0] sm:$0xff]
  %v306 = vld [vmem:[%s1 + $0x7f8] sm:$0xff]
  %v307 = vld [vmem:[%s1 + $0x800] sm:$0xff]
  %v308 = vld [vmem:[%s1 + $0x808] sm:$0xff]
  %v309 = vld [vmem:[%s1 + $0x810] sm:$0xff]
  %v310 = vld [vmem:[%s1 + $0x818] sm:$0xff]
  %v311 = vld [vmem:[%s1 + $0x820] sm:$0xff]
  %v312 = vld [vmem:[%s1 + $0x828] sm:$0xff]
  %v313 = vld [vmem:[%s1 + $0x830] sm:$0xff]
  %v314 = vld [vmem:[%s1 + $0x838] sm:$0xff]
  %v315 = vld [vmem:[%s1 + $0x840] sm:$0xff]
  %v316 = vld [vmem:[%s1 + $0x848] sm:$0xff]
  %v317 = vld [vmem:[%s1 + $0x850] sm:$0xff]
  %v318 = vld [vmem:[%s1 + $0x858] sm:$0xff]
  %v319 = vld [vmem:[%s1 + $0x860] sm:$0xff]
  %v320 = vld [vmem:[%s1 + $0x868] sm:$0xff]
  %v321 = vld [vmem:[%s1 + $0x870] sm:$0xff]
  %v322 = vld [vmem:[%s1 + $0x878] sm:$0xff]
  %v323 = vld [vmem:[%s1 + $0x880] sm:$0xff]
  %v324 = vld [vmem:[%s1 + $0x888] sm:$0xff]
  %v325 = vld [vmem:[%s1 + $0x890] sm:$0xff]
  %v326 = vld [vmem:[%s1 + $0x898] sm:$0xff]
  %v327 = vld [vmem:[%s1 + $0x8a0] sm:$0xff]
  %v328 = vld [vmem:[%s1 + $0x8a8] sm:$0xff]
  %v329 = vld [vmem:[%s1 + $0x8b0] sm:$0xff]
  %v330 = vld [vmem:[%s1 + $0x8b8] sm:$0xff]
  %v331 = vld [vmem:[%s1 + $0x8c0] sm:$0xff]
  %v332 = vld [vmem:[%s1 + $0x8c8] sm:$0xff]
  %v333 = vld [vmem:[%s1 + $0x8d0] sm:$0xff]
  %v334 = vld [vmem:[%s1 + $0x8d8] sm:$0xff]
  %v335 = vld [vmem:[%s1 + $0x8e0] sm:$0xff]
  %v336 = vld [vmem:[%s1 + $0x8e8] sm:$0xff]
  %v337 = vld [vmem:[%s1 + $0x8f0] sm:$0xff]
  %v338 = vld [vmem:[%s1 + $0x8f8] sm:$0xff]
  %v339 = vld [vmem:[%s1 + $0x900] sm:$0xff]
  %v340 = vld [vmem:[%s1 + $0x908] sm:$0xff]
  %v341 = vld [vmem:[%s1 + $0x910] sm:$0xff]
  %v342 = vld [vmem:[%s1 + $0x918] sm:$0xff]
  %v343 = vld [vmem:[%s1 + $0x920] sm:$0xff]
  %v344 = vld [vmem:[%s1 + $0x928] sm:$0xff]
  %v345 = vld [vmem:[%s1 + $0x930] sm:$0xff]
  %v346 = vld [vmem:[%s1 + $0x938] sm:$0xff]
  %v347 = vld [vmem:[%s1 + $0x940] sm:$0xff]
  %v348 = vld [vmem:[%s1 + $0x948] sm:$0xff]
  %v349 = vld [vmem:[%s1 + $0x950] sm:$0xff]
  %v350 = vld [vmem:[%s1 + $0x958] sm:$0xff]
  %v351 = vld [vmem:[%s1 + $0x960] sm:$0xff]
  %v352 = vld [vmem:[%s1 + $0x968] sm:$0xff]
  %v353 = vld [vmem:[%s1 + $0x970] sm:$0xff]
  %v354 = vld [vmem:[%s1 + $0x978] sm:$0xff]
  %v355 = vld [vmem:[%s1 + $0x980] sm:$0xff]
  %v356 = vld [vmem:[%s1 + $0x988] sm:$0xff]
  %v357 = vld [vmem:[%s1 + $0x990] sm:$0xff]
  %v358 = vld [vmem:[%s1 + $0x998] sm:$0xff]
  %v359 = vld [vmem:[%s1 + $0x9a0] sm:$0xff]
  %v360 = vld [vmem:[%s1 + $0x9a8] sm:$0xff]
  %v361 = vld [vmem:[%s1 + $0x9b0] sm:$0xff]
  %v362 = vld [vmem:[%s1 + $0x9b8] sm:$0xff]
  %v363 = vld [vmem:[%s1 + $0x9c0] sm:$0xff]
  %v364 = vld [vmem:[%s1 + $0x9c8] sm:$0xff]
  %v365 = vld [vmem:[%s1 + $0x9d0] sm:$0xff]
  %v366 = vld [vmem:[%s1 + $0x9d8] sm:$0xff]
  %v367 = vld [vmem:[%s1 + $0x9e0] sm:$0xff]
  %v368 = vld [vmem:[%s1 + $0x9e8] sm:$0xff]
  %v369 = vld [vmem:[%s1 + $0x9f0] sm:$0xff]
  %v370 = vld [vmem:[%s1 + $0x9f8] sm:$0xff]
  %v371 = vld [vmem:[%s1 + $0xa00] sm:$0xff]
  %v372 = vld [vmem:[%s1 + $0xa08] sm:$0xff]
  %v373 = vld [vmem:[%s1 + $0xa10] sm:$0xff]
  %v374 = vld [vmem:[%s1 + $0xa18] sm:$0xff]
  %v375 = vld [vmem:[%s1 + $0xa20] sm:$0xff]
  %v376 = vld [vmem:[%s1 + $0xa28] sm:$0xff]
  %v377 = vld [vmem:[%s1 + $0xa30] sm:$0xff]
  %v378 = vld [vmem:[%s1 + $0xa38] sm:$0xff]
  %v379 = vld [vmem:[%s1 + $0xa40] sm:$0xff]
  %v380 = vld [vmem:[%s1 + $0xa48] sm:$0xff]
  %v381 = vld [vmem:[%s1 + $0xa50] sm:$0xff]
  %v382 = vld [vmem:[%s1 + $0xa58] sm:$0xff]
  %v383 = vld [vmem:[%s1 + $0xa60] sm:$0xff]
  %v384 = vld [vmem:[%s1 + $0xa68] sm:$0xff]
  %v385 = vld [vmem:[%s1 + $0xa70] sm:$0xff]
  %v386 = vld [vmem:[%s1 + $0xa78] sm:$0xff]
  %v387 = vld [vmem:[%s1 + $0xa80] sm:$0xff]
  %v388 = vld [vmem:[%s1 + $0xa88] sm:$0xff]
  %v389 = vld [vmem:[%s1 + $0xa90] sm:$0xff]
  %v390 = vld [vmem:[%s1 + $0xa98] sm:$0xff]
  %v391 = vld [vmem:[%s1 + $0xaa0] sm:$0xff]
  %v392 = vld [vmem:[%s1 + $0xaa8] sm:$0xff]
  %v393 = vld [vmem:[%s1 + $0xab0] sm:$0xff]
  %v394 = vld [vmem:[%s1 + $0xab8] sm:$0xff]
  %v395 = vld [vmem:[%s1 + $0xac0] sm:$0xff]
  %v396 = vld [vmem:[%s1 + $0xac8] sm:$0xff]
  %v397 = vld [vmem:[%s1 + $0xad0] sm:$0xff]
  %v398 = vld [vmem:[%s1 + $0xad8] sm:$0xff]
  %v399 = vld [vmem:[%s1 + $0xae0] sm:$0xff]
  %v400 = vld [vmem:[%s1 + $0xae8] sm:$0xff]
  %v401 = vld [vmem:[%s1 + $0xaf0] sm:$0xff]
  %v402 = vld [vmem:[%s1 + $0xaf8] sm:$0xff]
  %v403 = vld [vmem:[%s1 + $0xb00] sm:$0xff]
  %v404 = vld [vmem:[%s1 + $0xb08] sm:$0xff]
  %v405 = vld [vmem:[%s1 + $0xb10] sm:$0xff]
  %v406 = vld [vmem:[%s1 + $0xb18] sm:$0xff]
  %v407 = vld [vmem:[%s1 + $0xb20] sm:$0xff]
  %v408 = vld [vmem:[%s1 + $0xb28] sm:$0xff]
  %v409 = vld [vmem:[%s1 + $0xb30] sm:$0xff]
  %v410 = vld [vmem:[%s1 + $0xb38] sm:$0xff]
  %v411 = vld [vmem:[%s1 + $0xb40] sm:$0xff]
  %v412 = vld [vmem:[%s1 + $0xb48] sm:$0xff]
  %v413 = vld [vmem:[%s1 + $0xb50] sm:$0xff]
  %v414 = vld [vmem:[%s1 + $0xb58] sm:$0xff]
  %v415 = vld [vmem:[%s1 + $0xb60] sm:$0xff]
  %v416 = vld [vmem:[%s1 + $0xb68] sm:$0xff]
  %v417 = vld [vmem:[%s1 + $0xb70] sm:$0xff]
  %v418 = vld [vmem:[%s1 + $0xb78] sm:$0xff]
  %v419 = vld [vmem:[%s1 + $0xb80] sm:$0xff]
  %v420 = vld [vmem:[%s1 + $0xb88] sm:$0xff]
  %v421 = vld [vmem:[%s1 + $0xb90] sm:$0xff]
  %v422 = vld [vmem:[%s1 + $0xb98] sm:$0xff]
  %v423 = vld [vmem:[%s1 + $0xba0] sm:$0xff]
  %v424 = vld [vmem:[%s1 + $0xba8] sm:$0xff]
  %v425 = vld [vmem:[%s1 + $0xbb0] sm:$0xff]
  %v426 = vld [vmem:[%s1 + $0xbb8] sm:$0xff]
  %v427 = vld [vmem:[%s1 + $0xbc0] sm:$0xff]
  %v428 = vld [vmem:[%s1 + $0xbc8] sm:$0xff]
  %v429 = vld [vmem:[%s1 + $0xbd0] sm:$0xff]
  %v430 = vld [vmem:[%s1 + $0xbd8] sm:$0xff]
  %v431 = vld [vmem:[%s1 + $0xbe0] sm:$0xff]
  %v432 = vld [vmem:[%s1 + $0xbe8] sm:$0xff]
  %v433 = vld [vmem:[%s1 + $0xbf0] sm:$0xff]
  %v434 = vld [vmem:[%s1 + $0xbf8] sm:$0xff]
  %v435 = vld [vmem:[%s2] sm:$0x3]
  %v437 = vlaneseq
  %v438 = vshrl.u32 %v437, 7
  %v439 = vsub.s32 0, %v438
  %v440 = vrot.slane %v435, %v439
  %v441 = vlaneseq
  %v442 = vshrl.u32 %v441, 7
  %v443 = vsub.s32 1, %v442
  %v444 = vrot.slane %v435, %v443
  %v459 = vunpack.c.l.b16 %v39
  %v460 = vunpack.c.h.b16 %v39
  %v461 = vunpack.c.l.b16 %v40
  %v462 = vunpack.c.h.b16 %v40
  %v463 = vunpack.c.l.b16 %v41
  %v464 = vunpack.c.h.b16 %v41
  %v465 = vunpack.c.l.b16 %v42
  %v466 = vunpack.c.h.b16 %v42
  %v467 = vunpack.c.l.b16 %v43
  %v468 = vunpack.c.h.b16 %v43
  %v469 = vunpack.c.l.b16 %v44
  %v470 = vunpack.c.h.b16 %v44
  %v471 = vunpack.c.l.b16 %v45
  %v472 = vunpack.c.h.b16 %v45
  %v473 = vunpack.c.l.b16 %v46
  %v474 = vunpack.c.h.b16 %v46
  %v475 = vunpack.c.l.b16 %v47
  %v476 = vunpack.c.h.b16 %v47
  %v477 = vunpack.c.l.b16 %v48
  %v478 = vunpack.c.h.b16 %v48
  %v479 = vunpack.c.l.b16 %v49
  %v480 = vunpack.c.h.b16 %v49
  %v481 = vunpack.c.l.b16 %v50
  %v482 = vunpack.c.h.b16 %v50
  %v483 = vpack.c.b16 %v459, %v459
  %v484 = vpack.c.b16 %v460, %v460
  %v485 = vpack.c.b16 %v461, %v461
  %v486 = vpack.c.b16 %v462, %v462
  %v487 = vpack.c.b16 %v463, %v463
  %v488 = vpack.c.b16 %v464, %v464
  %v489 = vpack.c.b16 %v465, %v465
  %v490 = vpack.c.b16 %v466, %v466
  %v491 = vpack.c.b16 %v467, %v467
  %v492 = vpack.c.b16 %v468, %v468
  %v493 = vpack.c.b16 %v469, %v469
  %v494 = vpack.c.b16 %v470, %v470
  %v495 = vpack.c.b16 %v471, %v471
  %v496 = vpack.c.b16 %v472, %v472
  %v497 = vpack.c.b16 %v473, %v473
  %v498 = vpack.c.b16 %v474, %v474
  %v499 = vpack.c.b16 %v475, %v475
  %v500 = vpack.c.b16 %v476, %v476
  %v501 = vpack.c.b16 %v477, %v477
  %v502 = vpack.c.b16 %v478, %v478
  %v503 = vpack.c.b16 %v479, %v479
  %v504 = vpack.c.b16 %v480, %v480
  %v505 = vpack.c.b16 %v481, %v481
  %v506 = vpack.c.b16 %v482, %v482
  %v915 = vunpack.c.l.b16 %v51
  %v916 = vunpack.c.h.b16 %v51
  %v917 = vunpack.c.l.b16 %v52
  %v918 = vunpack.c.h.b16 %v52
  %v919 = vunpack.c.l.b16 %v53
  %v920 = vunpack.c.h.b16 %v53
  %v921 = vunpack.c.l.b16 %v54
  %v922 = vunpack.c.h.b16 %v54
  %v923 = vunpack.c.l.b16 %v55
  %v924 = vunpack.c.h.b16 %v55
  %v925 = vunpack.c.l.b16 %v56
  %v926 = vunpack.c.h.b16 %v56
  %v927 = vunpack.c.l.b16 %v57
  %v928 = vunpack.c.h.b16 %v57
  %v929 = vunpack.c.l.b16 %v58
  %v930 = vunpack.c.h.b16 %v58
  %v931 = vunpack.c.l.b16 %v59
  %v932 = vunpack.c.h.b16 %v59
  %v933 = vunpack.c.l.b16 %v60
  %v934 = vunpack.c.h.b16 %v60
  %v935 = vunpack.c.l.b16 %v61
  %v936 = vunpack.c.h.b16 %v61
  %v937 = vunpack.c.l.b16 %v62
  %v938 = vunpack.c.h.b16 %v62
  %v939 = vunpack.c.l.b16 %v63
  %v940 = vunpack.c.h.b16 %v63
  %v941 = vunpack.c.l.b16 %v64
  %v942 = vunpack.c.h.b16 %v64
  %v943 = vunpack.c.l.b16 %v65
  %v944 = vunpack.c.h.b16 %v65
  %v945 = vunpack.c.l.b16 %v66
  %v946 = vunpack.c.h.b16 %v66
  %v947 = vunpack.c.l.b16 %v67
  %v948 = vunpack.c.h.b16 %v67
  %v949 = vunpack.c.l.b16 %v68
  %v950 = vunpack.c.h.b16 %v68
  %v951 = vunpack.c.l.b16 %v69
  %v952 = vunpack.c.h.b16 %v69
  %v953 = vunpack.c.l.b16 %v70
  %v954 = vunpack.c.h.b16 %v70
  %v955 = vunpack.c.l.b16 %v71
  %v956 = vunpack.c.h.b16 %v71
  %v957 = vunpack.c.l.b16 %v72
  %v958 = vunpack.c.h.b16 %v72
  %v959 = vunpack.c.l.b16 %v73
  %v960 = vunpack.c.h.b16 %v73
  %v961 = vunpack.c.l.b16 %v74
  %v962 = vunpack.c.h.b16 %v74
  %v963 = vunpack.c.l.b16 %v75
  %v964 = vunpack.c.h.b16 %v75
  %v965 = vunpack.c.l.b16 %v76
  %v966 = vunpack.c.h.b16 %v76
  %v967 = vunpack.c.l.b16 %v77
  %v968 = vunpack.c.h.b16 %v77
  %v969 = vunpack.c.l.b16 %v78
  %v970 = vunpack.c.h.b16 %v78
  %v971 = vunpack.c.l.b16 %v79
  %v972 = vunpack.c.h.b16 %v79
  %v973 = vunpack.c.l.b16 %v80
  %v974 = vunpack.c.h.b16 %v80
  %v975 = vunpack.c.l.b16 %v81
  %v976 = vunpack.c.h.b16 %v81
  %v977 = vunpack.c.l.b16 %v82
  %v978 = vunpack.c.h.b16 %v82
  %v979 = vunpack.c.l.b16 %v83
  %v980 = vunpack.c.h.b16 %v83
  %v981 = vunpack.c.l.b16 %v84
  %v982 = vunpack.c.h.b16 %v84
  %v983 = vunpack.c.l.b16 %v85
  %v984 = vunpack.c.h.b16 %v85
  %v985 = vunpack.c.l.b16 %v86
  %v986 = vunpack.c.h.b16 %v86
  %v987 = vunpack.c.l.b16 %v87
  %v988 = vunpack.c.h.b16 %v87
  %v989 = vunpack.c.l.b16 %v88
  %v990 = vunpack.c.h.b16 %v88
  %v991 = vunpack.c.l.b16 %v89
  %v992 = vunpack.c.h.b16 %v89
  %v993 = vunpack.c.l.b16 %v90
  %v994 = vunpack.c.h.b16 %v90
  %v995 = vunpack.c.l.b16 %v91
  %v996 = vunpack.c.h.b16 %v91
  %v997 = vunpack.c.l.b16 %v92
  %v998 = vunpack.c.h.b16 %v92
  %v999 = vunpack.c.l.b16 %v93
  %v1000 = vunpack.c.h.b16 %v93
  %v1001 = vunpack.c.l.b16 %v94
  %v1002 = vunpack.c.h.b16 %v94
  %v1003 = vunpack.c.l.b16 %v95
  %v1004 = vunpack.c.h.b16 %v95
  %v1005 = vunpack.c.l.b16 %v96
  %v1006 = vunpack.c.h.b16 %v96
  %v1007 = vunpack.c.l.b16 %v97
  %v1008 = vunpack.c.h.b16 %v97
  %v1009 = vunpack.c.l.b16 %v98
  %v1010 = vunpack.c.h.b16 %v98
  %v1011 = vunpack.c.l.b16 %v99
  %v1012 = vunpack.c.h.b16 %v99
  %v1013 = vunpack.c.l.b16 %v100
  %v1014 = vunpack.c.h.b16 %v100
  %v1015 = vunpack.c.l.b16 %v101
  %v1016 = vunpack.c.h.b16 %v101
  %v1017 = vunpack.c.l.b16 %v102
  %v1018 = vunpack.c.h.b16 %v102
  %v1019 = vunpack.c.l.b16 %v103
  %v1020 = vunpack.c.h.b16 %v103
  %v1021 = vunpack.c.l.b16 %v104
  %v1022 = vunpack.c.h.b16 %v104
  %v1023 = vunpack.c.l.b16 %v105
  %v1024 = vunpack.c.h.b16 %v105
  %v1025 = vunpack.c.l.b16 %v106
  %v1026 = vunpack.c.h.b16 %v106
  %v1027 = vunpack.c.l.b16 %v107
  %v1028 = vunpack.c.h.b16 %v107
  %v1029 = vunpack.c.l.b16 %v108
  %v1030 = vunpack.c.h.b16 %v108
  %v1031 = vunpack.c.l.b16 %v109
  %v1032 = vunpack.c.h.b16 %v109
  %v1033 = vunpack.c.l.b16 %v110
  %v1034 = vunpack.c.h.b16 %v110
  %v1035 = vunpack.c.l.b16 %v111
  %v1036 = vunpack.c.h.b16 %v111
  %v1037 = vunpack.c.l.b16 %v112
  %v1038 = vunpack.c.h.b16 %v112
  %v1039 = vunpack.c.l.b16 %v113
  %v1040 = vunpack.c.h.b16 %v113
  %v1041 = vunpack.c.l.b16 %v114
  %v1042 = vunpack.c.h.b16 %v114
  %v1043 = vunpack.c.l.b16 %v115
  %v1044 = vunpack.c.h.b16 %v115
  %v1045 = vunpack.c.l.b16 %v116
  %v1046 = vunpack.c.h.b16 %v116
  %v1047 = vunpack.c.l.b16 %v117
  %v1048 = vunpack.c.h.b16 %v117
  %v1049 = vunpack.c.l.b16 %v118
  %v1050 = vunpack.c.h.b16 %v118
  %v1051 = vunpack.c.l.b16 %v119
  %v1052 = vunpack.c.h.b16 %v119
  %v1053 = vunpack.c.l.b16 %v120
  %v1054 = vunpack.c.h.b16 %v120
  %v1055 = vunpack.c.l.b16 %v121
  %v1056 = vunpack.c.h.b16 %v121
  %v1057 = vunpack.c.l.b16 %v122
  %v1058 = vunpack.c.h.b16 %v122
  %v1059 = vunpack.c.l.b16 %v123
  %v1060 = vunpack.c.h.b16 %v123
  %v1061 = vunpack.c.l.b16 %v124
  %v1062 = vunpack.c.h.b16 %v124
  %v1063 = vunpack.c.l.b16 %v125
  %v1064 = vunpack.c.h.b16 %v125
  %v1065 = vunpack.c.l.b16 %v126
  %v1066 = vunpack.c.h.b16 %v126
  %v1067 = vunpack.c.l.b16 %v127
  %v1068 = vunpack.c.h.b16 %v127
  %v1069 = vunpack.c.l.b16 %v128
  %v1070 = vunpack.c.h.b16 %v128
  %v1071 = vunpack.c.l.b16 %v129
  %v1072 = vunpack.c.h.b16 %v129
  %v1073 = vunpack.c.l.b16 %v130
  %v1074 = vunpack.c.h.b16 %v130
  %v1075 = vunpack.c.l.b16 %v131
  %v1076 = vunpack.c.h.b16 %v131
  %v1077 = vunpack.c.l.b16 %v132
  %v1078 = vunpack.c.h.b16 %v132
  %v1079 = vunpack.c.l.b16 %v133
  %v1080 = vunpack.c.h.b16 %v133
  %v1081 = vunpack.c.l.b16 %v134
  %v1082 = vunpack.c.h.b16 %v134
  %v1083 = vunpack.c.l.b16 %v135
  %v1084 = vunpack.c.h.b16 %v135
  %v1085 = vunpack.c.l.b16 %v136
  %v1086 = vunpack.c.h.b16 %v136
  %v1087 = vunpack.c.l.b16 %v137
  %v1088 = vunpack.c.h.b16 %v137
  %v1089 = vunpack.c.l.b16 %v138
  %v1090 = vunpack.c.h.b16 %v138
  %v1091 = vunpack.c.l.b16 %v139
  %v1092 = vunpack.c.h.b16 %v139
  %v1093 = vunpack.c.l.b16 %v140
  %v1094 = vunpack.c.h.b16 %v140
  %v1095 = vunpack.c.l.b16 %v141
  %v1096 = vunpack.c.h.b16 %v141
  %v1097 = vunpack.c.l.b16 %v142
  %v1098 = vunpack.c.h.b16 %v142
  %v1099 = vunpack.c.l.b16 %v143
  %v1100 = vunpack.c.h.b16 %v143
  %v1101 = vunpack.c.l.b16 %v144
  %v1102 = vunpack.c.h.b16 %v144
  %v1103 = vunpack.c.l.b16 %v145
  %v1104 = vunpack.c.h.b16 %v145
  %v1105 = vunpack.c.l.b16 %v146
  %v1106 = vunpack.c.h.b16 %v146
  %v1107 = vunpack.c.l.b16 %v147
  %v1108 = vunpack.c.h.b16 %v147
  %v1109 = vunpack.c.l.b16 %v148
  %v1110 = vunpack.c.h.b16 %v148
  %v1111 = vunpack.c.l.b16 %v149
  %v1112 = vunpack.c.h.b16 %v149
  %v1113 = vunpack.c.l.b16 %v150
  %v1114 = vunpack.c.h.b16 %v150
  %v1115 = vunpack.c.l.b16 %v151
  %v1116 = vunpack.c.h.b16 %v151
  %v1117 = vunpack.c.l.b16 %v152
  %v1118 = vunpack.c.h.b16 %v152
  %v1119 = vunpack.c.l.b16 %v153
  %v1120 = vunpack.c.h.b16 %v153
  %v1121 = vunpack.c.l.b16 %v154
  %v1122 = vunpack.c.h.b16 %v154
  %v1123 = vunpack.c.l.b16 %v155
  %v1124 = vunpack.c.h.b16 %v155
  %v1125 = vunpack.c.l.b16 %v156
  %v1126 = vunpack.c.h.b16 %v156
  %v1127 = vunpack.c.l.b16 %v157
  %v1128 = vunpack.c.h.b16 %v157
  %v1129 = vunpack.c.l.b16 %v158
  %v1130 = vunpack.c.h.b16 %v158
  %v1131 = vunpack.c.l.b16 %v159
  %v1132 = vunpack.c.h.b16 %v159
  %v1133 = vunpack.c.l.b16 %v160
  %v1134 = vunpack.c.h.b16 %v160
  %v1135 = vunpack.c.l.b16 %v161
  %v1136 = vunpack.c.h.b16 %v161
  %v1137 = vunpack.c.l.b16 %v162
  %v1138 = vunpack.c.h.b16 %v162
  %v1139 = vunpack.c.l.b16 %v163
  %v1140 = vunpack.c.h.b16 %v163
  %v1141 = vunpack.c.l.b16 %v164
  %v1142 = vunpack.c.h.b16 %v164
  %v1143 = vunpack.c.l.b16 %v165
  %v1144 = vunpack.c.h.b16 %v165
  %v1145 = vunpack.c.l.b16 %v166
  %v1146 = vunpack.c.h.b16 %v166
  %v1147 = vunpack.c.l.b16 %v167
  %v1148 = vunpack.c.h.b16 %v167
  %v1149 = vunpack.c.l.b16 %v168
  %v1150 = vunpack.c.h.b16 %v168
  %v1151 = vunpack.c.l.b16 %v169
  %v1152 = vunpack.c.h.b16 %v169
  %v1153 = vunpack.c.l.b16 %v170
  %v1154 = vunpack.c.h.b16 %v170
  %v1155 = vunpack.c.l.b16 %v171
  %v1156 = vunpack.c.h.b16 %v171
  %v1157 = vunpack.c.l.b16 %v172
  %v1158 = vunpack.c.h.b16 %v172
  %v1159 = vunpack.c.l.b16 %v173
  %v1160 = vunpack.c.h.b16 %v173
  %v1161 = vunpack.c.l.b16 %v174
  %v1162 = vunpack.c.h.b16 %v174
  %v1163 = vunpack.c.l.b16 %v175
  %v1164 = vunpack.c.h.b16 %v175
  %v1165 = vunpack.c.l.b16 %v176
  %v1166 = vunpack.c.h.b16 %v176
  %v1167 = vunpack.c.l.b16 %v177
  %v1168 = vunpack.c.h.b16 %v177
  %v1169 = vunpack.c.l.b16 %v178
  %v1170 = vunpack.c.h.b16 %v178
  %v1171 = vunpack.c.l.b16 %v179
  %v1172 = vunpack.c.h.b16 %v179
  %v1173 = vunpack.c.l.b16 %v180
  %v1174 = vunpack.c.h.b16 %v180
  %v1175 = vunpack.c.l.b16 %v181
  %v1176 = vunpack.c.h.b16 %v181
  %v1177 = vunpack.c.l.b16 %v182
  %v1178 = vunpack.c.h.b16 %v182
  %v1179 = vunpack.c.l.b16 %v183
  %v1180 = vunpack.c.h.b16 %v183
  %v1181 = vunpack.c.l.b16 %v184
  %v1182 = vunpack.c.h.b16 %v184
  %v1183 = vunpack.c.l.b16 %v185
  %v1184 = vunpack.c.h.b16 %v185
  %v1185 = vunpack.c.l.b16 %v186
  %v1186 = vunpack.c.h.b16 %v186
  %v1187 = vunpack.c.l.b16 %v187
  %v1188 = vunpack.c.h.b16 %v187
  %v1189 = vunpack.c.l.b16 %v188
  %v1190 = vunpack.c.h.b16 %v188
  %v1191 = vunpack.c.l.b16 %v189
  %v1192 = vunpack.c.h.b16 %v189
  %v1193 = vunpack.c.l.b16 %v190
  %v1194 = vunpack.c.h.b16 %v190
  %v1195 = vunpack.c.l.b16 %v191
  %v1196 = vunpack.c.h.b16 %v191
  %v1197 = vunpack.c.l.b16 %v192
  %v1198 = vunpack.c.h.b16 %v192
  %v1199 = vunpack.c.l.b16 %v193
  %v1200 = vunpack.c.h.b16 %v193
  %v1201 = vunpack.c.l.b16 %v194
  %v1202 = vunpack.c.h.b16 %v194
  %v1203 = vunpack.c.l.b16 %v195
  %v1204 = vunpack.c.h.b16 %v195
  %v1205 = vunpack.c.l.b16 %v196
  %v1206 = vunpack.c.h.b16 %v196
  %v1207 = vunpack.c.l.b16 %v197
  %v1208 = vunpack.c.h.b16 %v197
  %v1209 = vunpack.c.l.b16 %v198
  %v1210 = vunpack.c.h.b16 %v198
  %v1211 = vunpack.c.l.b16 %v199
  %v1212 = vunpack.c.h.b16 %v199
  %v1213 = vunpack.c.l.b16 %v200
  %v1214 = vunpack.c.h.b16 %v200
  %v1215 = vunpack.c.l.b16 %v201
  %v1216 = vunpack.c.h.b16 %v201
  %v1217 = vunpack.c.l.b16 %v202
  %v1218 = vunpack.c.h.b16 %v202
  %v1219 = vunpack.c.l.b16 %v203
  %v1220 = vunpack.c.h.b16 %v203
  %v1221 = vunpack.c.l.b16 %v204
  %v1222 = vunpack.c.h.b16 %v204
  %v1223 = vunpack.c.l.b16 %v205
  %v1224 = vunpack.c.h.b16 %v205
  %v1225 = vunpack.c.l.b16 %v206
  %v1226 = vunpack.c.h.b16 %v206
  %v1227 = vunpack.c.l.b16 %v207
  %v1228 = vunpack.c.h.b16 %v207
  %v1229 = vunpack.c.l.b16 %v208
  %v1230 = vunpack.c.h.b16 %v208
  %v1231 = vunpack.c.l.b16 %v209
  %v1232 = vunpack.c.h.b16 %v209
  %v1233 = vunpack.c.l.b16 %v210
  %v1234 = vunpack.c.h.b16 %v210
  %v1235 = vunpack.c.l.b16 %v211
  %v1236 = vunpack.c.h.b16 %v211
  %v1237 = vunpack.c.l.b16 %v212
  %v1238 = vunpack.c.h.b16 %v212
  %v1239 = vunpack.c.l.b16 %v213
  %v1240 = vunpack.c.h.b16 %v213
  %v1241 = vunpack.c.l.b16 %v214
  %v1242 = vunpack.c.h.b16 %v214
  %v1243 = vunpack.c.l.b16 %v215
  %v1244 = vunpack.c.h.b16 %v215
  %v1245 = vunpack.c.l.b16 %v216
  %v1246 = vunpack.c.h.b16 %v216
  %v1247 = vunpack.c.l.b16 %v217
  %v1248 = vunpack.c.h.b16 %v217
  %v1249 = vunpack.c.l.b16 %v218
  %v1250 = vunpack.c.h.b16 %v218
  %v1251 = vunpack.c.l.b16 %v219
  %v1252 = vunpack.c.h.b16 %v219
  %v1253 = vunpack.c.l.b16 %v220
  %v1254 = vunpack.c.h.b16 %v220
  %v1255 = vunpack.c.l.b16 %v221
  %v1256 = vunpack.c.h.b16 %v221
  %v1257 = vunpack.c.l.b16 %v222
  %v1258 = vunpack.c.h.b16 %v222
  %v1259 = vunpack.c.l.b16 %v223
  %v1260 = vunpack.c.h.b16 %v223
  %v1261 = vunpack.c.l.b16 %v224
  %v1262 = vunpack.c.h.b16 %v224
  %v1263 = vunpack.c.l.b16 %v225
  %v1264 = vunpack.c.h.b16 %v225
  %v1265 = vunpack.c.l.b16 %v226
  %v1266 = vunpack.c.h.b16 %v226
  %v1267 = vunpack.c.l.b16 %v227
  %v1268 = vunpack.c.h.b16 %v227
  %v1269 = vunpack.c.l.b16 %v228
  %v1270 = vunpack.c.h.b16 %v228
  %v1271 = vunpack.c.l.b16 %v229
  %v1272 = vunpack.c.h.b16 %v229
  %v1273 = vunpack.c.l.b16 %v230
  %v1274 = vunpack.c.h.b16 %v230
  %v1275 = vunpack.c.l.b16 %v231
  %v1276 = vunpack.c.h.b16 %v231
  %v1277 = vunpack.c.l.b16 %v232
  %v1278 = vunpack.c.h.b16 %v232
  %v1279 = vunpack.c.l.b16 %v233
  %v1280 = vunpack.c.h.b16 %v233
  %v1281 = vunpack.c.l.b16 %v234
  %v1282 = vunpack.c.h.b16 %v234
  %v1283 = vunpack.c.l.b16 %v235
  %v1284 = vunpack.c.h.b16 %v235
  %v1285 = vunpack.c.l.b16 %v236
  %v1286 = vunpack.c.h.b16 %v236
  %v1287 = vunpack.c.l.b16 %v237
  %v1288 = vunpack.c.h.b16 %v237
  %v1289 = vunpack.c.l.b16 %v238
  %v1290 = vunpack.c.h.b16 %v238
  %v1291 = vunpack.c.l.b16 %v239
  %v1292 = vunpack.c.h.b16 %v239
  %v1293 = vunpack.c.l.b16 %v240
  %v1294 = vunpack.c.h.b16 %v240
  %v1295 = vunpack.c.l.b16 %v241
  %v1296 = vunpack.c.h.b16 %v241
  %v1297 = vunpack.c.l.b16 %v242
  %v1298 = vunpack.c.h.b16 %v242
  %v1299 = vunpack.c.l.b16 %v243
  %v1300 = vunpack.c.h.b16 %v243
  %v1301 = vunpack.c.l.b16 %v244
  %v1302 = vunpack.c.h.b16 %v244
  %v1303 = vunpack.c.l.b16 %v245
  %v1304 = vunpack.c.h.b16 %v245
  %v1305 = vunpack.c.l.b16 %v246
  %v1306 = vunpack.c.h.b16 %v246
  %v1307 = vunpack.c.l.b16 %v247
  %v1308 = vunpack.c.h.b16 %v247
  %v1309 = vunpack.c.l.b16 %v248
  %v1310 = vunpack.c.h.b16 %v248
  %v1311 = vunpack.c.l.b16 %v249
  %v1312 = vunpack.c.h.b16 %v249
  %v1313 = vunpack.c.l.b16 %v250
  %v1314 = vunpack.c.h.b16 %v250
  %v1315 = vunpack.c.l.b16 %v251
  %v1316 = vunpack.c.h.b16 %v251
  %v1317 = vunpack.c.l.b16 %v252
  %v1318 = vunpack.c.h.b16 %v252
  %v1319 = vunpack.c.l.b16 %v253
  %v1320 = vunpack.c.h.b16 %v253
  %v1321 = vunpack.c.l.b16 %v254
  %v1322 = vunpack.c.h.b16 %v254
  %v1323 = vunpack.c.l.b16 %v255
  %v1324 = vunpack.c.h.b16 %v255
  %v1325 = vunpack.c.l.b16 %v256
  %v1326 = vunpack.c.h.b16 %v256
  %v1327 = vunpack.c.l.b16 %v257
  %v1328 = vunpack.c.h.b16 %v257
  %v1329 = vunpack.c.l.b16 %v258
  %v1330 = vunpack.c.h.b16 %v258
  %v1331 = vunpack.c.l.b16 %v259
  %v1332 = vunpack.c.h.b16 %v259
  %v1333 = vunpack.c.l.b16 %v260
  %v1334 = vunpack.c.h.b16 %v260
  %v1335 = vunpack.c.l.b16 %v261
  %v1336 = vunpack.c.h.b16 %v261
  %v1337 = vunpack.c.l.b16 %v262
  %v1338 = vunpack.c.h.b16 %v262
  %v1339 = vunpack.c.l.b16 %v263
  %v1340 = vunpack.c.h.b16 %v263
  %v1341 = vunpack.c.l.b16 %v264
  %v1342 = vunpack.c.h.b16 %v264
  %v1343 = vunpack.c.l.b16 %v265
  %v1344 = vunpack.c.h.b16 %v265
  %v1345 = vunpack.c.l.b16 %v266
  %v1346 = vunpack.c.h.b16 %v266
  %v1347 = vunpack.c.l.b16 %v267
  %v1348 = vunpack.c.h.b16 %v267
  %v1349 = vunpack.c.l.b16 %v268
  %v1350 = vunpack.c.h.b16 %v268
  %v1351 = vunpack.c.l.b16 %v269
  %v1352 = vunpack.c.h.b16 %v269
  %v1353 = vunpack.c.l.b16 %v270
  %v1354 = vunpack.c.h.b16 %v270
  %v1355 = vunpack.c.l.b16 %v271
  %v1356 = vunpack.c.h.b16 %v271
  %v1357 = vunpack.c.l.b16 %v272
  %v1358 = vunpack.c.h.b16 %v272
  %v1359 = vunpack.c.l.b16 %v273
  %v1360 = vunpack.c.h.b16 %v273
  %v1361 = vunpack.c.l.b16 %v274
  %v1362 = vunpack.c.h.b16 %v274
  %v1363 = vunpack.c.l.b16 %v275
  %v1364 = vunpack.c.h.b16 %v275
  %v1365 = vunpack.c.l.b16 %v276
  %v1366 = vunpack.c.h.b16 %v276
  %v1367 = vunpack.c.l.b16 %v277
  %v1368 = vunpack.c.h.b16 %v277
  %v1369 = vunpack.c.l.b16 %v278
  %v1370 = vunpack.c.h.b16 %v278
  %v1371 = vunpack.c.l.b16 %v279
  %v1372 = vunpack.c.h.b16 %v279
  %v1373 = vunpack.c.l.b16 %v280
  %v1374 = vunpack.c.h.b16 %v280
  %v1375 = vunpack.c.l.b16 %v281
  %v1376 = vunpack.c.h.b16 %v281
  %v1377 = vunpack.c.l.b16 %v282
  %v1378 = vunpack.c.h.b16 %v282
  %v1379 = vunpack.c.l.b16 %v283
  %v1380 = vunpack.c.h.b16 %v283
  %v1381 = vunpack.c.l.b16 %v284
  %v1382 = vunpack.c.h.b16 %v284
  %v1383 = vunpack.c.l.b16 %v285
  %v1384 = vunpack.c.h.b16 %v285
  %v1385 = vunpack.c.l.b16 %v286
  %v1386 = vunpack.c.h.b16 %v286
  %v1387 = vunpack.c.l.b16 %v287
  %v1388 = vunpack.c.h.b16 %v287
  %v1389 = vunpack.c.l.b16 %v288
  %v1390 = vunpack.c.h.b16 %v288
  %v1391 = vunpack.c.l.b16 %v289
  %v1392 = vunpack.c.h.b16 %v289
  %v1393 = vunpack.c.l.b16 %v290
  %v1394 = vunpack.c.h.b16 %v290
  %v1395 = vunpack.c.l.b16 %v291
  %v1396 = vunpack.c.h.b16 %v291
  %v1397 = vunpack.c.l.b16 %v292
  %v1398 = vunpack.c.h.b16 %v292
  %v1399 = vunpack.c.l.b16 %v293
  %v1400 = vunpack.c.h.b16 %v293
  %v1401 = vunpack.c.l.b16 %v294
  %v1402 = vunpack.c.h.b16 %v294
  %v1403 = vunpack.c.l.b16 %v295
  %v1404 = vunpack.c.h.b16 %v295
  %v1405 = vunpack.c.l.b16 %v296
  %v1406 = vunpack.c.h.b16 %v296
  %v1407 = vunpack.c.l.b16 %v297
  %v1408 = vunpack.c.h.b16 %v297
  %v1409 = vunpack.c.l.b16 %v298
  %v1410 = vunpack.c.h.b16 %v298
  %v1411 = vunpack.c.l.b16 %v299
  %v1412 = vunpack.c.h.b16 %v299
  %v1413 = vunpack.c.l.b16 %v300
  %v1414 = vunpack.c.h.b16 %v300
  %v1415 = vunpack.c.l.b16 %v301
  %v1416 = vunpack.c.h.b16 %v301
  %v1417 = vunpack.c.l.b16 %v302
  %v1418 = vunpack.c.h.b16 %v302
  %v1419 = vunpack.c.l.b16 %v303
  %v1420 = vunpack.c.h.b16 %v303
  %v1421 = vunpack.c.l.b16 %v304
  %v1422 = vunpack.c.h.b16 %v304
  %v1423 = vunpack.c.l.b16 %v305
  %v1424 = vunpack.c.h.b16 %v305
  %v1425 = vunpack.c.l.b16 %v306
  %v1426 = vunpack.c.h.b16 %v306
  %v1427 = vunpack.c.l.b16 %v307
  %v1428 = vunpack.c.h.b16 %v307
  %v1429 = vunpack.c.l.b16 %v308
  %v1430 = vunpack.c.h.b16 %v308
  %v1431 = vunpack.c.l.b16 %v309
  %v1432 = vunpack.c.h.b16 %v309
  %v1433 = vunpack.c.l.b16 %v310
  %v1434 = vunpack.c.h.b16 %v310
  %v1435 = vunpack.c.l.b16 %v311
  %v1436 = vunpack.c.h.b16 %v311
  %v1437 = vunpack.c.l.b16 %v312
  %v1438 = vunpack.c.h.b16 %v312
  %v1439 = vunpack.c.l.b16 %v313
  %v1440 = vunpack.c.h.b16 %v313
  %v1441 = vunpack.c.l.b16 %v314
  %v1442 = vunpack.c.h.b16 %v314
  %v1443 = vunpack.c.l.b16 %v315
  %v1444 = vunpack.c.h.b16 %v315
  %v1445 = vunpack.c.l.b16 %v316
  %v1446 = vunpack.c.h.b16 %v316
  %v1447 = vunpack.c.l.b16 %v317
  %v1448 = vunpack.c.h.b16 %v317
  %v1449 = vunpack.c.l.b16 %v318
  %v1450 = vunpack.c.h.b16 %v318
  %v1451 = vunpack.c.l.b16 %v319
  %v1452 = vunpack.c.h.b16 %v319
  %v1453 = vunpack.c.l.b16 %v320
  %v1454 = vunpack.c.h.b16 %v320
  %v1455 = vunpack.c.l.b16 %v321
  %v1456 = vunpack.c.h.b16 %v321
  %v1457 = vunpack.c.l.b16 %v322
  %v1458 = vunpack.c.h.b16 %v322
  %v1459 = vunpack.c.l.b16 %v323
  %v1460 = vunpack.c.h.b16 %v323
  %v1461 = vunpack.c.l.b16 %v324
  %v1462 = vunpack.c.h.b16 %v324
  %v1463 = vunpack.c.l.b16 %v325
  %v1464 = vunpack.c.h.b16 %v325
  %v1465 = vunpack.c.l.b16 %v326
  %v1466 = vunpack.c.h.b16 %v326
  %v1467 = vunpack.c.l.b16 %v327
  %v1468 = vunpack.c.h.b16 %v327
  %v1469 = vunpack.c.l.b16 %v328
  %v1470 = vunpack.c.h.b16 %v328
  %v1471 = vunpack.c.l.b16 %v329
  %v1472 = vunpack.c.h.b16 %v329
  %v1473 = vunpack.c.l.b16 %v330
  %v1474 = vunpack.c.h.b16 %v330
  %v1475 = vunpack.c.l.b16 %v331
  %v1476 = vunpack.c.h.b16 %v331
  %v1477 = vunpack.c.l.b16 %v332
  %v1478 = vunpack.c.h.b16 %v332
  %v1479 = vunpack.c.l.b16 %v333
  %v1480 = vunpack.c.h.b16 %v333
  %v1481 = vunpack.c.l.b16 %v334
  %v1482 = vunpack.c.h.b16 %v334
  %v1483 = vunpack.c.l.b16 %v335
  %v1484 = vunpack.c.h.b16 %v335
  %v1485 = vunpack.c.l.b16 %v336
  %v1486 = vunpack.c.h.b16 %v336
  %v1487 = vunpack.c.l.b16 %v337
  %v1488 = vunpack.c.h.b16 %v337
  %v1489 = vunpack.c.l.b16 %v338
  %v1490 = vunpack.c.h.b16 %v338
  %v1491 = vunpack.c.l.b16 %v339
  %v1492 = vunpack.c.h.b16 %v339
  %v1493 = vunpack.c.l.b16 %v340
  %v1494 = vunpack.c.h.b16 %v340
  %v1495 = vunpack.c.l.b16 %v341
  %v1496 = vunpack.c.h.b16 %v341
  %v1497 = vunpack.c.l.b16 %v342
  %v1498 = vunpack.c.h.b16 %v342
  %v1499 = vunpack.c.l.b16 %v343
  %v1500 = vunpack.c.h.b16 %v343
  %v1501 = vunpack.c.l.b16 %v344
  %v1502 = vunpack.c.h.b16 %v344
  %v1503 = vunpack.c.l.b16 %v345
  %v1504 = vunpack.c.h.b16 %v345
  %v1505 = vunpack.c.l.b16 %v346
  %v1506 = vunpack.c.h.b16 %v346
  %v1507 = vunpack.c.l.b16 %v347
  %v1508 = vunpack.c.h.b16 %v347
  %v1509 = vunpack.c.l.b16 %v348
  %v1510 = vunpack.c.h.b16 %v348
  %v1511 = vunpack.c.l.b16 %v349
  %v1512 = vunpack.c.h.b16 %v349
  %v1513 = vunpack.c.l.b16 %v350
  %v1514 = vunpack.c.h.b16 %v350
  %v1515 = vunpack.c.l.b16 %v351
  %v1516 = vunpack.c.h.b16 %v351
  %v1517 = vunpack.c.l.b16 %v352
  %v1518 = vunpack.c.h.b16 %v352
  %v1519 = vunpack.c.l.b16 %v353
  %v1520 = vunpack.c.h.b16 %v353
  %v1521 = vunpack.c.l.b16 %v354
  %v1522 = vunpack.c.h.b16 %v354
  %v1523 = vunpack.c.l.b16 %v355
  %v1524 = vunpack.c.h.b16 %v355
  %v1525 = vunpack.c.l.b16 %v356
  %v1526 = vunpack.c.h.b16 %v356
  %v1527 = vunpack.c.l.b16 %v357
  %v1528 = vunpack.c.h.b16 %v357
  %v1529 = vunpack.c.l.b16 %v358
  %v1530 = vunpack.c.h.b16 %v358
  %v1531 = vunpack.c.l.b16 %v359
  %v1532 = vunpack.c.h.b16 %v359
  %v1533 = vunpack.c.l.b16 %v360
  %v1534 = vunpack.c.h.b16 %v360
  %v1535 = vunpack.c.l.b16 %v361
  %v1536 = vunpack.c.h.b16 %v361
  %v1537 = vunpack.c.l.b16 %v362
  %v1538 = vunpack.c.h.b16 %v362
  %v1539 = vunpack.c.l.b16 %v363
  %v1540 = vunpack.c.h.b16 %v363
  %v1541 = vunpack.c.l.b16 %v364
  %v1542 = vunpack.c.h.b16 %v364
  %v1543 = vunpack.c.l.b16 %v365
  %v1544 = vunpack.c.h.b16 %v365
  %v1545 = vunpack.c.l.b16 %v366
  %v1546 = vunpack.c.h.b16 %v366
  %v1547 = vunpack.c.l.b16 %v367
  %v1548 = vunpack.c.h.b16 %v367
  %v1549 = vunpack.c.l.b16 %v368
  %v1550 = vunpack.c.h.b16 %v368
  %v1551 = vunpack.c.l.b16 %v369
  %v1552 = vunpack.c.h.b16 %v369
  %v1553 = vunpack.c.l.b16 %v370
  %v1554 = vunpack.c.h.b16 %v370
  %v1555 = vunpack.c.l.b16 %v371
  %v1556 = vunpack.c.h.b16 %v371
  %v1557 = vunpack.c.l.b16 %v372
  %v1558 = vunpack.c.h.b16 %v372
  %v1559 = vunpack.c.l.b16 %v373
  %v1560 = vunpack.c.h.b16 %v373
  %v1561 = vunpack.c.l.b16 %v374
  %v1562 = vunpack.c.h.b16 %v374
  %v1563 = vunpack.c.l.b16 %v375
  %v1564 = vunpack.c.h.b16 %v375
  %v1565 = vunpack.c.l.b16 %v376
  %v1566 = vunpack.c.h.b16 %v376
  %v1567 = vunpack.c.l.b16 %v377
  %v1568 = vunpack.c.h.b16 %v377
  %v1569 = vunpack.c.l.b16 %v378
  %v1570 = vunpack.c.h.b16 %v378
  %v1571 = vunpack.c.l.b16 %v379
  %v1572 = vunpack.c.h.b16 %v379
  %v1573 = vunpack.c.l.b16 %v380
  %v1574 = vunpack.c.h.b16 %v380
  %v1575 = vunpack.c.l.b16 %v381
  %v1576 = vunpack.c.h.b16 %v381
  %v1577 = vunpack.c.l.b16 %v382
  %v1578 = vunpack.c.h.b16 %v382
  %v1579 = vunpack.c.l.b16 %v383
  %v1580 = vunpack.c.h.b16 %v383
  %v1581 = vunpack.c.l.b16 %v384
  %v1582 = vunpack.c.h.b16 %v384
  %v1583 = vunpack.c.l.b16 %v385
  %v1584 = vunpack.c.h.b16 %v385
  %v1585 = vunpack.c.l.b16 %v386
  %v1586 = vunpack.c.h.b16 %v386
  %v1587 = vunpack.c.l.b16 %v387
  %v1588 = vunpack.c.h.b16 %v387
  %v1589 = vunpack.c.l.b16 %v388
  %v1590 = vunpack.c.h.b16 %v388
  %v1591 = vunpack.c.l.b16 %v389
  %v1592 = vunpack.c.h.b16 %v389
  %v1593 = vunpack.c.l.b16 %v390
  %v1594 = vunpack.c.h.b16 %v390
  %v1595 = vunpack.c.l.b16 %v391
  %v1596 = vunpack.c.h.b16 %v391
  %v1597 = vunpack.c.l.b16 %v392
  %v1598 = vunpack.c.h.b16 %v392
  %v1599 = vunpack.c.l.b16 %v393
  %v1600 = vunpack.c.h.b16 %v393
  %v1601 = vunpack.c.l.b16 %v394
  %v1602 = vunpack.c.h.b16 %v394
  %v1603 = vunpack.c.l.b16 %v395
  %v1604 = vunpack.c.h.b16 %v395
  %v1605 = vunpack.c.l.b16 %v396
  %v1606 = vunpack.c.h.b16 %v396
  %v1607 = vunpack.c.l.b16 %v397
  %v1608 = vunpack.c.h.b16 %v397
  %v1609 = vunpack.c.l.b16 %v398
  %v1610 = vunpack.c.h.b16 %v398
  %v1611 = vunpack.c.l.b16 %v399
  %v1612 = vunpack.c.h.b16 %v399
  %v1613 = vunpack.c.l.b16 %v400
  %v1614 = vunpack.c.h.b16 %v400
  %v1615 = vunpack.c.l.b16 %v401
  %v1616 = vunpack.c.h.b16 %v401
  %v1617 = vunpack.c.l.b16 %v402
  %v1618 = vunpack.c.h.b16 %v402
  %v1619 = vunpack.c.l.b16 %v403
  %v1620 = vunpack.c.h.b16 %v403
  %v1621 = vunpack.c.l.b16 %v404
  %v1622 = vunpack.c.h.b16 %v404
  %v1623 = vunpack.c.l.b16 %v405
  %v1624 = vunpack.c.h.b16 %v405
  %v1625 = vunpack.c.l.b16 %v406
  %v1626 = vunpack.c.h.b16 %v406
  %v1627 = vunpack.c.l.b16 %v407
  %v1628 = vunpack.c.h.b16 %v407
  %v1629 = vunpack.c.l.b16 %v408
  %v1630 = vunpack.c.h.b16 %v408
  %v1631 = vunpack.c.l.b16 %v409
  %v1632 = vunpack.c.h.b16 %v409
  %v1633 = vunpack.c.l.b16 %v410
  %v1634 = vunpack.c.h.b16 %v410
  %v1635 = vunpack.c.l.b16 %v411
  %v1636 = vunpack.c.h.b16 %v411
  %v1637 = vunpack.c.l.b16 %v412
  %v1638 = vunpack.c.h.b16 %v412
  %v1639 = vunpack.c.l.b16 %v413
  %v1640 = vunpack.c.h.b16 %v413
  %v1641 = vunpack.c.l.b16 %v414
  %v1642 = vunpack.c.h.b16 %v414
  %v1643 = vunpack.c.l.b16 %v415
  %v1644 = vunpack.c.h.b16 %v415
  %v1645 = vunpack.c.l.b16 %v416
  %v1646 = vunpack.c.h.b16 %v416
  %v1647 = vunpack.c.l.b16 %v417
  %v1648 = vunpack.c.h.b16 %v417
  %v1649 = vunpack.c.l.b16 %v418
  %v1650 = vunpack.c.h.b16 %v418
  %v1651 = vunpack.c.l.b16 %v419
  %v1652 = vunpack.c.h.b16 %v419
  %v1653 = vunpack.c.l.b16 %v420
  %v1654 = vunpack.c.h.b16 %v420
  %v1655 = vunpack.c.l.b16 %v421
  %v1656 = vunpack.c.h.b16 %v421
  %v1657 = vunpack.c.l.b16 %v422
  %v1658 = vunpack.c.h.b16 %v422
  %v1659 = vunpack.c.l.b16 %v423
  %v1660 = vunpack.c.h.b16 %v423
  %v1661 = vunpack.c.l.b16 %v424
  %v1662 = vunpack.c.h.b16 %v424
  %v1663 = vunpack.c.l.b16 %v425
  %v1664 = vunpack.c.h.b16 %v425
  %v1665 = vunpack.c.l.b16 %v426
  %v1666 = vunpack.c.h.b16 %v426
  %v1667 = vunpack.c.l.b16 %v427
  %v1668 = vunpack.c.h.b16 %v427
  %v1669 = vunpack.c.l.b16 %v428
  %v1670 = vunpack.c.h.b16 %v428
  %v1671 = vunpack.c.l.b16 %v429
  %v1672 = vunpack.c.h.b16 %v429
  %v1673 = vunpack.c.l.b16 %v430
  %v1674 = vunpack.c.h.b16 %v430
  %v1675 = vunpack.c.l.b16 %v431
  %v1676 = vunpack.c.h.b16 %v431
  %v1677 = vunpack.c.l.b16 %v432
  %v1678 = vunpack.c.h.b16 %v432
  %v1679 = vunpack.c.l.b16 %v433
  %v1680 = vunpack.c.h.b16 %v433
  %v1681 = vunpack.c.l.b16 %v434
  %v1682 = vunpack.c.h.b16 %v434
  %v1683 = vpack.c.b16 %v917, %v915
  %v1684 = vpack.c.b16 %v918, %v916
  %v1685 = vpack.c.b16 %v921, %v919
  %v1686 = vpack.c.b16 %v922, %v920
  %v1687 = vpack.c.b16 %v925, %v923
  %v1688 = vpack.c.b16 %v926, %v924
  %v1689 = vpack.c.b16 %v929, %v927
  %v1690 = vpack.c.b16 %v930, %v928
  %v1691 = vpack.c.b16 %v933, %v931
  %v1692 = vpack.c.b16 %v934, %v932
  %v1693 = vpack.c.b16 %v937, %v935
  %v1694 = vpack.c.b16 %v938, %v936
  %v1695 = vpack.c.b16 %v941, %v939
  %v1696 = vpack.c.b16 %v942, %v940
  %v1697 = vpack.c.b16 %v945, %v943
  %v1698 = vpack.c.b16 %v946, %v944
  %v1699 = vpack.c.b16 %v949, %v947
  %v1700 = vpack.c.b16 %v950, %v948
  %v1701 = vpack.c.b16 %v953, %v951
  %v1702 = vpack.c.b16 %v954, %v952
  %v1703 = vpack.c.b16 %v957, %v955
  %v1704 = vpack.c.b16 %v958, %v956
  %v1705 = vpack.c.b16 %v961, %v959
  %v1706 = vpack.c.b16 %v962, %v960
  %v1707 = vpack.c.b16 %v965, %v963
  %v1708 = vpack.c.b16 %v966, %v964
  %v1709 = vpack.c.b16 %v969, %v967
  %v1710 = vpack.c.b16 %v970, %v968
  %v1711 = vpack.c.b16 %v973, %v971
  %v1712 = vpack.c.b16 %v974, %v972
  %v1713 = vpack.c.b16 %v977, %v975
  %v1714 = vpack.c.b16 %v978, %v976
  %v1715 = vpack.c.b16 %v981, %v979
  %v1716 = vpack.c.b16 %v982, %v980
  %v1717 = vpack.c.b16 %v985, %v983
  %v1718 = vpack.c.b16 %v986, %v984
  %v1719 = vpack.c.b16 %v989, %v987
  %v1720 = vpack.c.b16 %v990, %v988
  %v1721 = vpack.c.b16 %v993, %v991
  %v1722 = vpack.c.b16 %v994, %v992
  %v1723 = vpack.c.b16 %v997, %v995
  %v1724 = vpack.c.b16 %v998, %v996
  %v1725 = vpack.c.b16 %v1001, %v999
  %v1726 = vpack.c.b16 %v1002, %v1000
  %v1727 = vpack.c.b16 %v1005, %v1003
  %v1728 = vpack.c.b16 %v1006, %v1004
  %v1729 = vpack.c.b16 %v1009, %v1007
  %v1730 = vpack.c.b16 %v1010, %v1008
  %v1731 = vpack.c.b16 %v1013, %v1011
  %v1732 = vpack.c.b16 %v1014, %v1012
  %v1733 = vpack.c.b16 %v1017, %v1015
  %v1734 = vpack.c.b16 %v1018, %v1016
  %v1735 = vpack.c.b16 %v1021, %v1019
  %v1736 = vpack.c.b16 %v1022, %v1020
  %v1737 = vpack.c.b16 %v1025, %v1023
  %v1738 = vpack.c.b16 %v1026, %v1024
  %v1739 = vpack.c.b16 %v1029, %v1027
  %v1740 = vpack.c.b16 %v1030, %v1028
  %v1741 = vpack.c.b16 %v1033, %v1031
  %v1742 = vpack.c.b16 %v1034, %v1032
  %v1743 = vpack.c.b16 %v1037, %v1035
  %v1744 = vpack.c.b16 %v1038, %v1036
  %v1745 = vpack.c.b16 %v1041, %v1039
  %v1746 = vpack.c.b16 %v1042, %v1040
  %v1747 = vpack.c.b16 %v1045, %v1043
  %v1748 = vpack.c.b16 %v1046, %v1044
  %v1749 = vpack.c.b16 %v1049, %v1047
  %v1750 = vpack.c.b16 %v1050, %v1048
  %v1751 = vpack.c.b16 %v1053, %v1051
  %v1752 = vpack.c.b16 %v1054, %v1052
  %v1753 = vpack.c.b16 %v1057, %v1055
  %v1754 = vpack.c.b16 %v1058, %v1056
  %v1755 = vpack.c.b16 %v1061, %v1059
  %v1756 = vpack.c.b16 %v1062, %v1060
  %v1757 = vpack.c.b16 %v1065, %v1063
  %v1758 = vpack.c.b16 %v1066, %v1064
  %v1759 = vpack.c.b16 %v1069, %v1067
  %v1760 = vpack.c.b16 %v1070, %v1068
  %v1761 = vpack.c.b16 %v1073, %v1071
  %v1762 = vpack.c.b16 %v1074, %v1072
  %v1763 = vpack.c.b16 %v1077, %v1075
  %v1764 = vpack.c.b16 %v1078, %v1076
  %v1765 = vpack.c.b16 %v1081, %v1079
  %v1766 = vpack.c.b16 %v1082, %v1080
  %v1767 = vpack.c.b16 %v1085, %v1083
  %v1768 = vpack.c.b16 %v1086, %v1084
  %v1769 = vpack.c.b16 %v1089, %v1087
  %v1770 = vpack.c.b16 %v1090, %v1088
  %v1771 = vpack.c.b16 %v1093, %v1091
  %v1772 = vpack.c.b16 %v1094, %v1092
  %v1773 = vpack.c.b16 %v1097, %v1095
  %v1774 = vpack.c.b16 %v1098, %v1096
  %v1775 = vpack.c.b16 %v1101, %v1099
  %v1776 = vpack.c.b16 %v1102, %v1100
  %v1777 = vpack.c.b16 %v1105, %v1103
  %v1778 = vpack.c.b16 %v1106, %v1104
  %v1779 = vpack.c.b16 %v1109, %v1107
  %v1780 = vpack.c.b16 %v1110, %v1108
  %v1781 = vpack.c.b16 %v1113, %v1111
  %v1782 = vpack.c.b16 %v1114, %v1112
  %v1783 = vpack.c.b16 %v1117, %v1115
  %v1784 = vpack.c.b16 %v1118, %v1116
  %v1785 = vpack.c.b16 %v1121, %v1119
  %v1786 = vpack.c.b16 %v1122, %v1120
  %v1787 = vpack.c.b16 %v1125, %v1123
  %v1788 = vpack.c.b16 %v1126, %v1124
  %v1789 = vpack.c.b16 %v1129, %v1127
  %v1790 = vpack.c.b16 %v1130, %v1128
  %v1791 = vpack.c.b16 %v1133, %v1131
  %v1792 = vpack.c.b16 %v1134, %v1132
  %v1793 = vpack.c.b16 %v1137, %v1135
  %v1794 = vpack.c.b16 %v1138, %v1136
  %v1795 = vpack.c.b16 %v1141, %v1139
  %v1796 = vpack.c.b16 %v1142, %v1140
  %v1797 = vpack.c.b16 %v1145, %v1143
  %v1798 = vpack.c.b16 %v1146, %v1144
  %v1799 = vpack.c.b16 %v1149, %v1147
  %v1800 = vpack.c.b16 %v1150, %v1148
  %v1801 = vpack.c.b16 %v1153, %v1151
  %v1802 = vpack.c.b16 %v1154, %v1152
  %v1803 = vpack.c.b16 %v1157, %v1155
  %v1804 = vpack.c.b16 %v1158, %v1156
  %v1805 = vpack.c.b16 %v1161, %v1159
  %v1806 = vpack.c.b16 %v1162, %v1160
  %v1807 = vpack.c.b16 %v1165, %v1163
  %v1808 = vpack.c.b16 %v1166, %v1164
  %v1809 = vpack.c.b16 %v1169, %v1167
  %v1810 = vpack.c.b16 %v1170, %v1168
  %v1811 = vpack.c.b16 %v1173, %v1171
  %v1812 = vpack.c.b16 %v1174, %v1172
  %v1813 = vpack.c.b16 %v1177, %v1175
  %v1814 = vpack.c.b16 %v1178, %v1176
  %v1815 = vpack.c.b16 %v1181, %v1179
  %v1816 = vpack.c.b16 %v1182, %v1180
  %v1817 = vpack.c.b16 %v1185, %v1183
  %v1818 = vpack.c.b16 %v1186, %v1184
  %v1819 = vpack.c.b16 %v1189, %v1187
  %v1820 = vpack.c.b16 %v1190, %v1188
  %v1821 = vpack.c.b16 %v1193, %v1191
  %v1822 = vpack.c.b16 %v1194, %v1192
  %v1823 = vpack.c.b16 %v1197, %v1195
  %v1824 = vpack.c.b16 %v1198, %v1196
  %v1825 = vpack.c.b16 %v1201, %v1199
  %v1826 = vpack.c.b16 %v1202, %v1200
  %v1827 = vpack.c.b16 %v1205, %v1203
  %v1828 = vpack.c.b16 %v1206, %v1204
  %v1829 = vpack.c.b16 %v1209, %v1207
  %v1830 = vpack.c.b16 %v1210, %v1208
  %v1831 = vpack.c.b16 %v1213, %v1211
  %v1832 = vpack.c.b16 %v1214, %v1212
  %v1833 = vpack.c.b16 %v1217, %v1215
  %v1834 = vpack.c.b16 %v1218, %v1216
  %v1835 = vpack.c.b16 %v1221, %v1219
  %v1836 = vpack.c.b16 %v1222, %v1220
  %v1837 = vpack.c.b16 %v1225, %v1223
  %v1838 = vpack.c.b16 %v1226, %v1224
  %v1839 = vpack.c.b16 %v1229, %v1227
  %v1840 = vpack.c.b16 %v1230, %v1228
  %v1841 = vpack.c.b16 %v1233, %v1231
  %v1842 = vpack.c.b16 %v1234, %v1232
  %v1843 = vpack.c.b16 %v1237, %v1235
  %v1844 = vpack.c.b16 %v1238, %v1236
  %v1845 = vpack.c.b16 %v1241, %v1239
  %v1846 = vpack.c.b16 %v1242, %v1240
  %v1847 = vpack.c.b16 %v1245, %v1243
  %v1848 = vpack.c.b16 %v1246, %v1244
  %v1849 = vpack.c.b16 %v1249, %v1247
  %v1850 = vpack.c.b16 %v1250, %v1248
  %v1851 = vpack.c.b16 %v1253, %v1251
  %v1852 = vpack.c.b16 %v1254, %v1252
  %v1853 = vpack.c.b16 %v1257, %v1255
  %v1854 = vpack.c.b16 %v1258, %v1256
  %v1855 = vpack.c.b16 %v1261, %v1259
  %v1856 = vpack.c.b16 %v1262, %v1260
  %v1857 = vpack.c.b16 %v1265, %v1263
  %v1858 = vpack.c.b16 %v1266, %v1264
  %v1859 = vpack.c.b16 %v1269, %v1267
  %v1860 = vpack.c.b16 %v1270, %v1268
  %v1861 = vpack.c.b16 %v1273, %v1271
  %v1862 = vpack.c.b16 %v1274, %v1272
  %v1863 = vpack.c.b16 %v1277, %v1275
  %v1864 = vpack.c.b16 %v1278, %v1276
  %v1865 = vpack.c.b16 %v1281, %v1279
  %v1866 = vpack.c.b16 %v1282, %v1280
  %v1867 = vpack.c.b16 %v1285, %v1283
  %v1868 = vpack.c.b16 %v1286, %v1284
  %v1869 = vpack.c.b16 %v1289, %v1287
  %v1870 = vpack.c.b16 %v1290, %v1288
  %v1871 = vpack.c.b16 %v1293, %v1291
  %v1872 = vpack.c.b16 %v1294, %v1292
  %v1873 = vpack.c.b16 %v1297, %v1295
  %v1874 = vpack.c.b16 %v1298, %v1296
  %v1875 = vpack.c.b16 %v1301, %v1299
  %v1876 = vpack.c.b16 %v1302, %v1300
  %v1877 = vpack.c.b16 %v1305, %v1303
  %v1878 = vpack.c.b16 %v1306, %v1304
  %v1879 = vpack.c.b16 %v1309, %v1307
  %v1880 = vpack.c.b16 %v1310, %v1308
  %v1881 = vpack.c.b16 %v1313, %v1311
  %v1882 = vpack.c.b16 %v1314, %v1312
  %v1883 = vpack.c.b16 %v1317, %v1315
  %v1884 = vpack.c.b16 %v1318, %v1316
  %v1885 = vpack.c.b16 %v1321, %v1319
  %v1886 = vpack.c.b16 %v1322, %v1320
  %v1887 = vpack.c.b16 %v1325, %v1323
  %v1888 = vpack.c.b16 %v1326, %v1324
  %v1889 = vpack.c.b16 %v1329, %v1327
  %v1890 = vpack.c.b16 %v1330, %v1328
  %v1891 = vpack.c.b16 %v1333, %v1331
  %v1892 = vpack.c.b16 %v1334, %v1332
  %v1893 = vpack.c.b16 %v1337, %v1335
  %v1894 = vpack.c.b16 %v1338, %v1336
  %v1895 = vpack.c.b16 %v1341, %v1339
  %v1896 = vpack.c.b16 %v1342, %v1340
  %v1897 = vpack.c.b16 %v1345, %v1343
  %v1898 = vpack.c.b16 %v1346, %v1344
  %v1899 = vpack.c.b16 %v1349, %v1347
  %v1900 = vpack.c.b16 %v1350, %v1348
  %v1901 = vpack.c.b16 %v1353, %v1351
  %v1902 = vpack.c.b16 %v1354, %v1352
  %v1903 = vpack.c.b16 %v1357, %v1355
  %v1904 = vpack.c.b16 %v1358, %v1356
  %v1905 = vpack.c.b16 %v1361, %v1359
  %v1906 = vpack.c.b16 %v1362, %v1360
  %v1907 = vpack.c.b16 %v1365, %v1363
  %v1908 = vpack.c.b16 %v1366, %v1364
  %v1909 = vpack.c.b16 %v1369, %v1367
  %v1910 = vpack.c.b16 %v1370, %v1368
  %v1911 = vpack.c.b16 %v1373, %v1371
  %v1912 = vpack.c.b16 %v1374, %v1372
  %v1913 = vpack.c.b16 %v1377, %v1375
  %v1914 = vpack.c.b16 %v1378, %v1376
  %v1915 = vpack.c.b16 %v1381, %v1379
  %v1916 = vpack.c.b16 %v1382, %v1380
  %v1917 = vpack.c.b16 %v1385, %v1383
  %v1918 = vpack.c.b16 %v1386, %v1384
  %v1919 = vpack.c.b16 %v1389, %v1387
  %v1920 = vpack.c.b16 %v1390, %v1388
  %v1921 = vpack.c.b16 %v1393, %v1391
  %v1922 = vpack.c.b16 %v1394, %v1392
  %v1923 = vpack.c.b16 %v1397, %v1395
  %v1924 = vpack.c.b16 %v1398, %v1396
  %v1925 = vpack.c.b16 %v1401, %v1399
  %v1926 = vpack.c.b16 %v1402, %v1400
  %v1927 = vpack.c.b16 %v1405, %v1403
  %v1928 = vpack.c.b16 %v1406, %v1404
  %v1929 = vpack.c.b16 %v1409, %v1407
  %v1930 = vpack.c.b16 %v1410, %v1408
  %v1931 = vpack.c.b16 %v1413, %v1411
  %v1932 = vpack.c.b16 %v1414, %v1412
  %v1933 = vpack.c.b16 %v1417, %v1415
  %v1934 = vpack.c.b16 %v1418, %v1416
  %v1935 = vpack.c.b16 %v1421, %v1419
  %v1936 = vpack.c.b16 %v1422, %v1420
  %v1937 = vpack.c.b16 %v1425, %v1423
  %v1938 = vpack.c.b16 %v1426, %v1424
  %v1939 = vpack.c.b16 %v1429, %v1427
  %v1940 = vpack.c.b16 %v1430, %v1428
  %v1941 = vpack.c.b16 %v1433, %v1431
  %v1942 = vpack.c.b16 %v1434, %v1432
  %v1943 = vpack.c.b16 %v1437, %v1435
  %v1944 = vpack.c.b16 %v1438, %v1436
  %v1945 = vpack.c.b16 %v1441, %v1439
  %v1946 = vpack.c.b16 %v1442, %v1440
  %v1947 = vpack.c.b16 %v1445, %v1443
  %v1948 = vpack.c.b16 %v1446, %v1444
  %v1949 = vpack.c.b16 %v1449, %v1447
  %v1950 = vpack.c.b16 %v1450, %v1448
  %v1951 = vpack.c.b16 %v1453, %v1451
  %v1952 = vpack.c.b16 %v1454, %v1452
  %v1953 = vpack.c.b16 %v1457, %v1455
  %v1954 = vpack.c.b16 %v1458, %v1456
  %v1955 = vpack.c.b16 %v1461, %v1459
  %v1956 = vpack.c.b16 %v1462, %v1460
  %v1957 = vpack.c.b16 %v1465, %v1463
  %v1958 = vpack.c.b16 %v1466, %v1464
  %v1959 = vpack.c.b16 %v1469, %v1467
  %v1960 = vpack.c.b16 %v1470, %v1468
  %v1961 = vpack.c.b16 %v1473, %v1471
  %v1962 = vpack.c.b16 %v1474, %v1472
  %v1963 = vpack.c.b16 %v1477, %v1475
  %v1964 = vpack.c.b16 %v1478, %v1476
  %v1965 = vpack.c.b16 %v1481, %v1479
  %v1966 = vpack.c.b16 %v1482, %v1480
  %v1967 = vpack.c.b16 %v1485, %v1483
  %v1968 = vpack.c.b16 %v1486, %v1484
  %v1969 = vpack.c.b16 %v1489, %v1487
  %v1970 = vpack.c.b16 %v1490, %v1488
  %v1971 = vpack.c.b16 %v1493, %v1491
  %v1972 = vpack.c.b16 %v1494, %v1492
  %v1973 = vpack.c.b16 %v1497, %v1495
  %v1974 = vpack.c.b16 %v1498, %v1496
  %v1975 = vpack.c.b16 %v1501, %v1499
  %v1976 = vpack.c.b16 %v1502, %v1500
  %v1977 = vpack.c.b16 %v1505, %v1503
  %v1978 = vpack.c.b16 %v1506, %v1504
  %v1979 = vpack.c.b16 %v1509, %v1507
  %v1980 = vpack.c.b16 %v1510, %v1508
  %v1981 = vpack.c.b16 %v1513, %v1511
  %v1982 = vpack.c.b16 %v1514, %v1512
  %v1983 = vpack.c.b16 %v1517, %v1515
  %v1984 = vpack.c.b16 %v1518, %v1516
  %v1985 = vpack.c.b16 %v1521, %v1519
  %v1986 = vpack.c.b16 %v1522, %v1520
  %v1987 = vpack.c.b16 %v1525, %v1523
  %v1988 = vpack.c.b16 %v1526, %v1524
  %v1989 = vpack.c.b16 %v1529, %v1527
  %v1990 = vpack.c.b16 %v1530, %v1528
  %v1991 = vpack.c.b16 %v1533, %v1531
  %v1992 = vpack.c.b16 %v1534, %v1532
  %v1993 = vpack.c.b16 %v1537, %v1535
  %v1994 = vpack.c.b16 %v1538, %v1536
  %v1995 = vpack.c.b16 %v1541, %v1539
  %v1996 = vpack.c.b16 %v1542, %v1540
  %v1997 = vpack.c.b16 %v1545, %v1543
  %v1998 = vpack.c.b16 %v1546, %v1544
  %v1999 = vpack.c.b16 %v1549, %v1547
  %v2000 = vpack.c.b16 %v1550, %v1548
  %v2001 = vpack.c.b16 %v1553, %v1551
  %v2002 = vpack.c.b16 %v1554, %v1552
  %v2003 = vpack.c.b16 %v1557, %v1555
  %v2004 = vpack.c.b16 %v1558, %v1556
  %v2005 = vpack.c.b16 %v1561, %v1559
  %v2006 = vpack.c.b16 %v1562, %v1560
  %v2007 = vpack.c.b16 %v1565, %v1563
  %v2008 = vpack.c.b16 %v1566, %v1564
  %v2009 = vpack.c.b16 %v1569, %v1567
  %v2010 = vpack.c.b16 %v1570, %v1568
  %v2011 = vpack.c.b16 %v1573, %v1571
  %v2012 = vpack.c.b16 %v1574, %v1572
  %v2013 = vpack.c.b16 %v1577, %v1575
  %v2014 = vpack.c.b16 %v1578, %v1576
  %v2015 = vpack.c.b16 %v1581, %v1579
  %v2016 = vpack.c.b16 %v1582, %v1580
  %v2017 = vpack.c.b16 %v1585, %v1583
  %v2018 = vpack.c.b16 %v1586, %v1584
  %v2019 = vpack.c.b16 %v1589, %v1587
  %v2020 = vpack.c.b16 %v1590, %v1588
  %v2021 = vpack.c.b16 %v1593, %v1591
  %v2022 = vpack.c.b16 %v1594, %v1592
  %v2023 = vpack.c.b16 %v1597, %v1595
  %v2024 = vpack.c.b16 %v1598, %v1596
  %v2025 = vpack.c.b16 %v1601, %v1599
  %v2026 = vpack.c.b16 %v1602, %v1600
  %v2027 = vpack.c.b16 %v1605, %v1603
  %v2028 = vpack.c.b16 %v1606, %v1604
  %v2029 = vpack.c.b16 %v1609, %v1607
  %v2030 = vpack.c.b16 %v1610, %v1608
  %v2031 = vpack.c.b16 %v1613, %v1611
  %v2032 = vpack.c.b16 %v1614, %v1612
  %v2033 = vpack.c.b16 %v1617, %v1615
  %v2034 = vpack.c.b16 %v1618, %v1616
  %v2035 = vpack.c.b16 %v1621, %v1619
  %v2036 = vpack.c.b16 %v1622, %v1620
  %v2037 = vpack.c.b16 %v1625, %v1623
  %v2038 = vpack.c.b16 %v1626, %v1624
  %v2039 = vpack.c.b16 %v1629, %v1627
  %v2040 = vpack.c.b16 %v1630, %v1628
  %v2041 = vpack.c.b16 %v1633, %v1631
  %v2042 = vpack.c.b16 %v1634, %v1632
  %v2043 = vpack.c.b16 %v1637, %v1635
  %v2044 = vpack.c.b16 %v1638, %v1636
  %v2045 = vpack.c.b16 %v1641, %v1639
  %v2046 = vpack.c.b16 %v1642, %v1640
  %v2047 = vpack.c.b16 %v1645, %v1643
  %v2048 = vpack.c.b16 %v1646, %v1644
  %v2049 = vpack.c.b16 %v1649, %v1647
  %v2050 = vpack.c.b16 %v1650, %v1648
  %v2051 = vpack.c.b16 %v1653, %v1651
  %v2052 = vpack.c.b16 %v1654, %v1652
  %v2053 = vpack.c.b16 %v1657, %v1655
  %v2054 = vpack.c.b16 %v1658, %v1656
  %v2055 = vpack.c.b16 %v1661, %v1659
  %v2056 = vpack.c.b16 %v1662, %v1660
  %v2057 = vpack.c.b16 %v1665, %v1663
  %v2058 = vpack.c.b16 %v1666, %v1664
  %v2059 = vpack.c.b16 %v1669, %v1667
  %v2060 = vpack.c.b16 %v1670, %v1668
  %v2061 = vpack.c.b16 %v1673, %v1671
  %v2062 = vpack.c.b16 %v1674, %v1672
  %v2063 = vpack.c.b16 %v1677, %v1675
  %v2064 = vpack.c.b16 %v1678, %v1676
  %v2065 = vpack.c.b16 %v1681, %v1679
  %v2066 = vpack.c.b16 %v1682, %v1680
  %2451 = vmatprep.subr.bf16.mxu0 %v1684
  %2452 = vmatpush1.bf16.msra.mxu0 %v1683
  %2453 = vmatprep.subr.bf16.mxu0 %v1686
  %2454 = vmatpush1.bf16.msra.mxu0 %v1685
  %2455 = vmatprep.subr.bf16.mxu0 %v1688
  %2456 = vmatpush1.bf16.msra.mxu0 %v1687
  %2457 = vmatprep.subr.bf16.mxu0 %v1690
  %2458 = vmatpush1.bf16.msra.mxu0 %v1689
  %2459 = vmatprep.subr.bf16.mxu0 %v1692
  %2460 = vmatpush1.bf16.msra.mxu0 %v1691
  %2461 = vmatprep.subr.bf16.mxu0 %v1694
  %2462 = vmatpush1.bf16.msra.mxu0 %v1693
  %2463 = vmatprep.subr.bf16.mxu0 %v1696
  %2464 = vmatpush1.bf16.msra.mxu0 %v1695
  %2465 = vmatprep.subr.bf16.mxu0 %v1698
  %2466 = vmatpush1.bf16.msra.mxu0 %v1697
  %2467 = vmatprep.subr.bf16.mxu0 %v1700
  %2468 = vmatpush1.bf16.msra.mxu0 %v1699
  %2469 = vmatprep.subr.bf16.mxu0 %v1702
  %2470 = vmatpush1.bf16.msra.mxu0 %v1701
  %2471 = vmatprep.subr.bf16.mxu0 %v1704
  %2472 = vmatpush1.bf16.msra.mxu0 %v1703
  %2473 = vmatprep.subr.bf16.mxu0 %v1706
  %2474 = vmatpush1.bf16.msra.mxu0 %v1705
  %2475 = vmatprep.subr.bf16.mxu0 %v1708
  %2476 = vmatpush1.bf16.msra.mxu0 %v1707
  %2477 = vmatprep.subr.bf16.mxu0 %v1710
  %2478 = vmatpush1.bf16.msra.mxu0 %v1709
  %2479 = vmatprep.subr.bf16.mxu0 %v1712
  %2480 = vmatpush1.bf16.msra.mxu0 %v1711
  %2481 = vmatprep.subr.bf16.mxu0 %v1714
  %2482 = vmatpush1.bf16.msra.mxu0 %v1713
  %2483 = vmatprep.mubr.bf16.mxu0 %v484
  %2484 = vmatmul.mubr.bf16.gmra.mrb[0].mxu0 %v483
  %v2485 = vpop.f32.mrb[0].mxu0
  %v2486 = vadd.f32 %v440, %v2485
  %v2487 = vpop.f32.mrb[0].mxu0
  %v2488 = vadd.f32 %v444, %v2487
  %v2489 = vpop.f32.mrb[0].mxu0
  %v2490 = vpop.f32.mrb[0].mxu0
  %2491 = vdwg.mxu0
  %2492 = vmatprep.subr.bf16.mxu0 %v1716
  %2493 = vmatpush1.bf16.msra.mxu0 %v1715
  %2494 = vmatprep.subr.bf16.mxu0 %v1718
  %2495 = vmatpush1.bf16.msra.mxu0 %v1717
  %2496 = vmatprep.subr.bf16.mxu0 %v1720
  %2497 = vmatpush1.bf16.msra.mxu0 %v1719
  %2498 = vmatprep.subr.bf16.mxu0 %v1722
  %2499 = vmatpush1.bf16.msra.mxu0 %v1721
  %2500 = vmatprep.subr.bf16.mxu0 %v1724
  %2501 = vmatpush1.bf16.msra.mxu0 %v1723
  %2502 = vmatprep.subr.bf16.mxu0 %v1726
  %2503 = vmatpush1.bf16.msra.mxu0 %v1725
  %2504 = vmatprep.subr.bf16.mxu0 %v1728
  %2505 = vmatpush1.bf16.msra.mxu0 %v1727
  %2506 = vmatprep.subr.bf16.mxu0 %v1730
  %2507 = vmatpush1.bf16.msra.mxu0 %v1729
  %2508 = vmatprep.subr.bf16.mxu0 %v1732
  %2509 = vmatpush1.bf16.msra.mxu0 %v1731
  %2510 = vmatprep.subr.bf16.mxu0 %v1734
  %2511 = vmatpush1.bf16.msra.mxu0 %v1733
  %2512 = vmatprep.subr.bf16.mxu0 %v1736
  %2513 = vmatpush1.bf16.msra.mxu0 %v1735
  %2514 = vmatprep.subr.bf16.mxu0 %v1738
  %2515 = vmatpush1.bf16.msra.mxu0 %v1737
  %2516 = vmatprep.subr.bf16.mxu0 %v1740
  %2517 = vmatpush1.bf16.msra.mxu0 %v1739
  %2518 = vmatprep.subr.bf16.mxu0 %v1742
  %2519 = vmatpush1.bf16.msra.mxu0 %v1741
  %2520 = vmatprep.subr.bf16.mxu0 %v1744
  %2521 = vmatpush1.bf16.msra.mxu0 %v1743
  %2522 = vmatprep.subr.bf16.mxu0 %v1746
  %2523 = vmatpush1.bf16.msra.mxu0 %v1745
  %2524 = vmatprep.mubr.bf16.mxu0 %v486
  %2525 = vmatmul.mubr.bf16.gmra.mrb[0].mxu0 %v485
  %v2526 = vpop.f32.mrb[0].mxu0
  %v2527 = vadd.f32 %v2486, %v2526
  %v2528 = vpop.f32.mrb[0].mxu0
  %v2529 = vadd.f32 %v2488, %v2528
  %v2530 = vpop.f32.mrb[0].mxu0
  %v2531 = vpop.f32.mrb[0].mxu0
  %2532 = vdwg.mxu0
  %2533 = vmatprep.subr.bf16.mxu0 %v1748
  %2534 = vmatpush1.bf16.msra.mxu0 %v1747
  %2535 = vmatprep.subr.bf16.mxu0 %v1750
  %2536 = vmatpush1.bf16.msra.mxu0 %v1749
  %2537 = vmatprep.subr.bf16.mxu0 %v1752
  %2538 = vmatpush1.bf16.msra.mxu0 %v1751
  %2539 = vmatprep.subr.bf16.mxu0 %v1754
  %2540 = vmatpush1.bf16.msra.mxu0 %v1753
  %2541 = vmatprep.subr.bf16.mxu0 %v1756
  %2542 = vmatpush1.bf16.msra.mxu0 %v1755
  %2543 = vmatprep.subr.bf16.mxu0 %v1758
  %2544 = vmatpush1.bf16.msra.mxu0 %v1757
  %2545 = vmatprep.subr.bf16.mxu0 %v1760
  %2546 = vmatpush1.bf16.msra.mxu0 %v1759
  %2547 = vmatprep.subr.bf16.mxu0 %v1762
  %2548 = vmatpush1.bf16.msra.mxu0 %v1761
  %2549 = vmatprep.subr.bf16.mxu0 %v1764
  %2550 = vmatpush1.bf16.msra.mxu0 %v1763
  %2551 = vmatprep.subr.bf16.mxu0 %v1766
  %2552 = vmatpush1.bf16.msra.mxu0 %v1765
  %2553 = vmatprep.subr.bf16.mxu0 %v1768
  %2554 = vmatpush1.bf16.msra.mxu0 %v1767
  %2555 = vmatprep.subr.bf16.mxu0 %v1770
  %2556 = vmatpush1.bf16.msra.mxu0 %v1769
  %2557 = vmatprep.subr.bf16.mxu0 %v1772
  %2558 = vmatpush1.bf16.msra.mxu0 %v1771
  %2559 = vmatprep.subr.bf16.mxu0 %v1774
  %2560 = vmatpush1.bf16.msra.mxu0 %v1773
  %2561 = vmatprep.subr.bf16.mxu0 %v1776
  %2562 = vmatpush1.bf16.msra.mxu0 %v1775
  %2563 = vmatprep.subr.bf16.mxu0 %v1778
  %2564 = vmatpush1.bf16.msra.mxu0 %v1777
  %2565 = vmatprep.mubr.bf16.mxu0 %v488
  %2566 = vmatmul.mubr.bf16.gmra.mrb[0].mxu0 %v487
  %v2567 = vpop.f32.mrb[0].mxu0
  %v2568 = vadd.f32 %v2527, %v2567
  %v2569 = vpop.f32.mrb[0].mxu0
  %v2570 = vadd.f32 %v2529, %v2569
  %v2571 = vpop.f32.mrb[0].mxu0
  %v2572 = vpop.f32.mrb[0].mxu0
  %2573 = vdwg.mxu0
  %2574 = vmatprep.subr.bf16.mxu0 %v1780
  %2575 = vmatpush1.bf16.msra.mxu0 %v1779
  %2576 = vmatprep.subr.bf16.mxu0 %v1782
  %2577 = vmatpush1.bf16.msra.mxu0 %v1781
  %2578 = vmatprep.subr.bf16.mxu0 %v1784
  %2579 = vmatpush1.bf16.msra.mxu0 %v1783
  %2580 = vmatprep.subr.bf16.mxu0 %v1786
  %2581 = vmatpush1.bf16.msra.mxu0 %v1785
  %2582 = vmatprep.subr.bf16.mxu0 %v1788
  %2583 = vmatpush1.bf16.msra.mxu0 %v1787
  %2584 = vmatprep.subr.bf16.mxu0 %v1790
  %2585 = vmatpush1.bf16.msra.mxu0 %v1789
  %2586 = vmatprep.subr.bf16.mxu0 %v1792
  %2587 = vmatpush1.bf16.msra.mxu0 %v1791
  %2588 = vmatprep.subr.bf16.mxu0 %v1794
  %2589 = vmatpush1.bf16.msra.mxu0 %v1793
  %2590 = vmatprep.subr.bf16.mxu0 %v1796
  %2591 = vmatpush1.bf16.msra.mxu0 %v1795
  %2592 = vmatprep.subr.bf16.mxu0 %v1798
  %2593 = vmatpush1.bf16.msra.mxu0 %v1797
  %2594 = vmatprep.subr.bf16.mxu0 %v1800
  %2595 = vmatpush1.bf16.msra.mxu0 %v1799
  %2596 = vmatprep.subr.bf16.mxu0 %v1802
  %2597 = vmatpush1.bf16.msra.mxu0 %v1801
  %2598 = vmatprep.subr.bf16.mxu0 %v1804
  %2599 = vmatpush1.bf16.msra.mxu0 %v1803
  %2600 = vmatprep.subr.bf16.mxu0 %v1806
  %2601 = vmatpush1.bf16.msra.mxu0 %v1805
  %2602 = vmatprep.subr.bf16.mxu0 %v1808
  %2603 = vmatpush1.bf16.msra.mxu0 %v1807
  %2604 = vmatprep.subr.bf16.mxu0 %v1810
  %2605 = vmatpush1.bf16.msra.mxu0 %v1809
  %2606 = vmatprep.mubr.bf16.mxu0 %v490
  %2607 = vmatmul.mubr.bf16.gmra.mrb[0].mxu0 %v489
  %v2608 = vpop.f32.mrb[0].mxu0
  %v2609 = vadd.f32 %v2568, %v2608
  %v2610 = vpop.f32.mrb[0].mxu0
  %v2611 = vadd.f32 %v2570, %v2610
  %v2612 = vpop.f32.mrb[0].mxu0
  %v2613 = vpop.f32.mrb[0].mxu0
  %2614 = vdwg.mxu0
  %2615 = vmatprep.subr.bf16.mxu0 %v1812
  %2616 = vmatpush1.bf16.msra.mxu0 %v1811
  %2617 = vmatprep.subr.bf16.mxu0 %v1814
  %2618 = vmatpush1.bf16.msra.mxu0 %v1813
  %2619 = vmatprep.subr.bf16.mxu0 %v1816
  %2620 = vmatpush1.bf16.msra.mxu0 %v1815
  %2621 = vmatprep.subr.bf16.mxu0 %v1818
  %2622 = vmatpush1.bf16.msra.mxu0 %v1817
  %2623 = vmatprep.subr.bf16.mxu0 %v1820
  %2624 = vmatpush1.bf16.msra.mxu0 %v1819
  %2625 = vmatprep.subr.bf16.mxu0 %v1822
  %2626 = vmatpush1.bf16.msra.mxu0 %v1821
  %2627 = vmatprep.subr.bf16.mxu0 %v1824
  %2628 = vmatpush1.bf16.msra.mxu0 %v1823
  %2629 = vmatprep.subr.bf16.mxu0 %v1826
  %2630 = vmatpush1.bf16.msra.mxu0 %v1825
  %2631 = vmatprep.subr.bf16.mxu0 %v1828
  %2632 = vmatpush1.bf16.msra.mxu0 %v1827
  %2633 = vmatprep.subr.bf16.mxu0 %v1830
  %2634 = vmatpush1.bf16.msra.mxu0 %v1829
  %2635 = vmatprep.subr.bf16.mxu0 %v1832
  %2636 = vmatpush1.bf16.msra.mxu0 %v1831
  %2637 = vmatprep.subr.bf16.mxu0 %v1834
  %2638 = vmatpush1.bf16.msra.mxu0 %v1833
  %2639 = vmatprep.subr.bf16.mxu0 %v1836
  %2640 = vmatpush1.bf16.msra.mxu0 %v1835
  %2641 = vmatprep.subr.bf16.mxu0 %v1838
  %2642 = vmatpush1.bf16.msra.mxu0 %v1837
  %2643 = vmatprep.subr.bf16.mxu0 %v1840
  %2644 = vmatpush1.bf16.msra.mxu0 %v1839
  %2645 = vmatprep.subr.bf16.mxu0 %v1842
  %2646 = vmatpush1.bf16.msra.mxu0 %v1841
  %2647 = vmatprep.mubr.bf16.mxu0 %v492
  %2648 = vmatmul.mubr.bf16.gmra.mrb[0].mxu0 %v491
  %v2649 = vpop.f32.mrb[0].mxu0
  %v2650 = vadd.f32 %v2609, %v2649
  %v2651 = vpop.f32.mrb[0].mxu0
  %v2652 = vadd.f32 %v2611, %v2651
  %v2653 = vpop.f32.mrb[0].mxu0
  %v2654 = vpop.f32.mrb[0].mxu0
  %2655 = vdwg.mxu0
  %2656 = vmatprep.subr.bf16.mxu0 %v1844
  %2657 = vmatpush1.bf16.msra.mxu0 %v1843
  %2658 = vmatprep.subr.bf16.mxu0 %v1846
  %2659 = vmatpush1.bf16.msra.mxu0 %v1845
  %2660 = vmatprep.subr.bf16.mxu0 %v1848
  %2661 = vmatpush1.bf16.msra.mxu0 %v1847
  %2662 = vmatprep.subr.bf16.mxu0 %v1850
  %2663 = vmatpush1.bf16.msra.mxu0 %v1849
  %2664 = vmatprep.subr.bf16.mxu0 %v1852
  %2665 = vmatpush1.bf16.msra.mxu0 %v1851
  %2666 = vmatprep.subr.bf16.mxu0 %v1854
  %2667 = vmatpush1.bf16.msra.mxu0 %v1853
  %2668 = vmatprep.subr.bf16.mxu0 %v1856
  %2669 = vmatpush1.bf16.msra.mxu0 %v1855
  %2670 = vmatprep.subr.bf16.mxu0 %v1858
  %2671 = vmatpush1.bf16.msra.mxu0 %v1857
  %2672 = vmatprep.subr.bf16.mxu0 %v1860
  %2673 = vmatpush1.bf16.msra.mxu0 %v1859
  %2674 = vmatprep.subr.bf16.mxu0 %v1862
  %2675 = vmatpush1.bf16.msra.mxu0 %v1861
  %2676 = vmatprep.subr.bf16.mxu0 %v1864
  %2677 = vmatpush1.bf16.msra.mxu0 %v1863
  %2678 = vmatprep.subr.bf16.mxu0 %v1866
  %2679 = vmatpush1.bf16.msra.mxu0 %v1865
  %2680 = vmatprep.subr.bf16.mxu0 %v1868
  %2681 = vmatpush1.bf16.msra.mxu0 %v1867
  %2682 = vmatprep.subr.bf16.mxu0 %v1870
  %2683 = vmatpush1.bf16.msra.mxu0 %v1869
  %2684 = vmatprep.subr.bf16.mxu0 %v1872
  %2685 = vmatpush1.bf16.msra.mxu0 %v1871
  %2686 = vmatprep.subr.bf16.mxu0 %v1874
  %2687 = vmatpush1.bf16.msra.mxu0 %v1873
  %2688 = vmatprep.mubr.bf16.mxu0 %v494
  %2689 = vmatmul.mubr.bf16.gmra.mrb[0].mxu0 %v493
  %v2690 = vpop.f32.mrb[0].mxu0
  %v2691 = vadd.f32 %v2650, %v2690
  %v2692 = vpop.f32.mrb[0].mxu0
  %v2693 = vadd.f32 %v2652, %v2692
  %v2694 = vpop.f32.mrb[0].mxu0
  %v2695 = vpop.f32.mrb[0].mxu0
  %2696 = vdwg.mxu0
  %2697 = vmatprep.subr.bf16.mxu0 %v1876
  %2698 = vmatpush1.bf16.msra.mxu0 %v1875
  %2699 = vmatprep.subr.bf16.mxu0 %v1878
  %2700 = vmatpush1.bf16.msra.mxu0 %v1877
  %2701 = vmatprep.subr.bf16.mxu0 %v1880
  %2702 = vmatpush1.bf16.msra.mxu0 %v1879
  %2703 = vmatprep.subr.bf16.mxu0 %v1882
  %2704 = vmatpush1.bf16.msra.mxu0 %v1881
  %2705 = vmatprep.subr.bf16.mxu0 %v1884
  %2706 = vmatpush1.bf16.msra.mxu0 %v1883
  %2707 = vmatprep.subr.bf16.mxu0 %v1886
  %2708 = vmatpush1.bf16.msra.mxu0 %v1885
  %2709 = vmatprep.subr.bf16.mxu0 %v1888
  %2710 = vmatpush1.bf16.msra.mxu0 %v1887
  %2711 = vmatprep.subr.bf16.mxu0 %v1890
  %2712 = vmatpush1.bf16.msra.mxu0 %v1889
  %2713 = vmatprep.subr.bf16.mxu0 %v1892
  %2714 = vmatpush1.bf16.msra.mxu0 %v1891
  %2715 = vmatprep.subr.bf16.mxu0 %v1894
  %2716 = vmatpush1.bf16.msra.mxu0 %v1893
  %2717 = vmatprep.subr.bf16.mxu0 %v1896
  %2718 = vmatpush1.bf16.msra.mxu0 %v1895
  %2719 = vmatprep.subr.bf16.mxu0 %v1898
  %2720 = vmatpush1.bf16.msra.mxu0 %v1897
  %2721 = vmatprep.subr.bf16.mxu0 %v1900
  %2722 = vmatpush1.bf16.msra.mxu0 %v1899
  %2723 = vmatprep.subr.bf16.mxu0 %v1902
  %2724 = vmatpush1.bf16.msra.mxu0 %v1901
  %2725 = vmatprep.subr.bf16.mxu0 %v1904
  %2726 = vmatpush1.bf16.msra.mxu0 %v1903
  %2727 = vmatprep.subr.bf16.mxu0 %v1906
  %2728 = vmatpush1.bf16.msra.mxu0 %v1905
  %2729 = vmatprep.mubr.bf16.mxu0 %v496
  %2730 = vmatmul.mubr.bf16.gmra.mrb[0].mxu0 %v495
  %v2731 = vpop.f32.mrb[0].mxu0
  %v2732 = vadd.f32 %v2691, %v2731
  %v2733 = vpop.f32.mrb[0].mxu0
  %v2734 = vadd.f32 %v2693, %v2733
  %v2735 = vpop.f32.mrb[0].mxu0
  %v2736 = vpop.f32.mrb[0].mxu0
  %2737 = vdwg.mxu0
  %2738 = vmatprep.subr.bf16.mxu0 %v1908
  %2739 = vmatpush1.bf16.msra.mxu0 %v1907
  %2740 = vmatprep.subr.bf16.mxu0 %v1910
  %2741 = vmatpush1.bf16.msra.mxu0 %v1909
  %2742 = vmatprep.subr.bf16.mxu0 %v1912
  %2743 = vmatpush1.bf16.msra.mxu0 %v1911
  %2744 = vmatprep.subr.bf16.mxu0 %v1914
  %2745 = vmatpush1.bf16.msra.mxu0 %v1913
  %2746 = vmatprep.subr.bf16.mxu0 %v1916
  %2747 = vmatpush1.bf16.msra.mxu0 %v1915
  %2748 = vmatprep.subr.bf16.mxu0 %v1918
  %2749 = vmatpush1.bf16.msra.mxu0 %v1917
  %2750 = vmatprep.subr.bf16.mxu0 %v1920
  %2751 = vmatpush1.bf16.msra.mxu0 %v1919
  %2752 = vmatprep.subr.bf16.mxu0 %v1922
  %2753 = vmatpush1.bf16.msra.mxu0 %v1921
  %2754 = vmatprep.subr.bf16.mxu0 %v1924
  %2755 = vmatpush1.bf16.msra.mxu0 %v1923
  %2756 = vmatprep.subr.bf16.mxu0 %v1926
  %2757 = vmatpush1.bf16.msra.mxu0 %v1925
  %2758 = vmatprep.subr.bf16.mxu0 %v1928
  %2759 = vmatpush1.bf16.msra.mxu0 %v1927
  %2760 = vmatprep.subr.bf16.mxu0 %v1930
  %2761 = vmatpush1.bf16.msra.mxu0 %v1929
  %2762 = vmatprep.subr.bf16.mxu0 %v1932
  %2763 = vmatpush1.bf16.msra.mxu0 %v1931
  %2764 = vmatprep.subr.bf16.mxu0 %v1934
  %2765 = vmatpush1.bf16.msra.mxu0 %v1933
  %2766 = vmatprep.subr.bf16.mxu0 %v1936
  %2767 = vmatpush1.bf16.msra.mxu0 %v1935
  %2768 = vmatprep.subr.bf16.mxu0 %v1938
  %2769 = vmatpush1.bf16.msra.mxu0 %v1937
  %2770 = vmatprep.mubr.bf16.mxu0 %v498
  %2771 = vmatmul.mubr.bf16.gmra.mrb[0].mxu0 %v497
  %v2772 = vpop.f32.mrb[0].mxu0
  %v2773 = vadd.f32 %v2732, %v2772
  %v2774 = vpop.f32.mrb[0].mxu0
  %v2775 = vadd.f32 %v2734, %v2774
  %v2776 = vpop.f32.mrb[0].mxu0
  %v2777 = vpop.f32.mrb[0].mxu0
  %2778 = vdwg.mxu0
  %2779 = vmatprep.subr.bf16.mxu0 %v1940
  %2780 = vmatpush1.bf16.msra.mxu0 %v1939
  %2781 = vmatprep.subr.bf16.mxu0 %v1942
  %2782 = vmatpush1.bf16.msra.mxu0 %v1941
  %2783 = vmatprep.subr.bf16.mxu0 %v1944
  %2784 = vmatpush1.bf16.msra.mxu0 %v1943
  %2785 = vmatprep.subr.bf16.mxu0 %v1946
  %2786 = vmatpush1.bf16.msra.mxu0 %v1945
  %2787 = vmatprep.subr.bf16.mxu0 %v1948
  %2788 = vmatpush1.bf16.msra.mxu0 %v1947
  %2789 = vmatprep.subr.bf16.mxu0 %v1950
  %2790 = vmatpush1.bf16.msra.mxu0 %v1949
  %2791 = vmatprep.subr.bf16.mxu0 %v1952
  %2792 = vmatpush1.bf16.msra.mxu0 %v1951
  %2793 = vmatprep.subr.bf16.mxu0 %v1954
  %2794 = vmatpush1.bf16.msra.mxu0 %v1953
  %2795 = vmatprep.subr.bf16.mxu0 %v1956
  %2796 = vmatpush1.bf16.msra.mxu0 %v1955
  %2797 = vmatprep.subr.bf16.mxu0 %v1958
  %2798 = vmatpush1.bf16.msra.mxu0 %v1957
  %2799 = vmatprep.subr.bf16.mxu0 %v1960
  %2800 = vmatpush1.bf16.msra.mxu0 %v1959
  %2801 = vmatprep.subr.bf16.mxu0 %v1962
  %2802 = vmatpush1.bf16.msra.mxu0 %v1961
  %2803 = vmatprep.subr.bf16.mxu0 %v1964
  %2804 = vmatpush1.bf16.msra.mxu0 %v1963
  %2805 = vmatprep.subr.bf16.mxu0 %v1966
  %2806 = vmatpush1.bf16.msra.mxu0 %v1965
  %2807 = vmatprep.subr.bf16.mxu0 %v1968
  %2808 = vmatpush1.bf16.msra.mxu0 %v1967
  %2809 = vmatprep.subr.bf16.mxu0 %v1970
  %2810 = vmatpush1.bf16.msra.mxu0 %v1969
  %2811 = vmatprep.mubr.bf16.mxu0 %v500
  %2812 = vmatmul.mubr.bf16.gmra.mrb[0].mxu0 %v499
  %v2813 = vpop.f32.mrb[0].mxu0
  %v2814 = vadd.f32 %v2773, %v2813
  %v2815 = vpop.f32.mrb[0].mxu0
  %v2816 = vadd.f32 %v2775, %v2815
  %v2817 = vpop.f32.mrb[0].mxu0
  %v2818 = vpop.f32.mrb[0].mxu0
  %2819 = vdwg.mxu0
  %2820 = vmatprep.subr.bf16.mxu0 %v1972
  %2821 = vmatpush1.bf16.msra.mxu0 %v1971
  %2822 = vmatprep.subr.bf16.mxu0 %v1974
  %2823 = vmatpush1.bf16.msra.mxu0 %v1973
  %2824 = vmatprep.subr.bf16.mxu0 %v1976
  %2825 = vmatpush1.bf16.msra.mxu0 %v1975
  %2826 = vmatprep.subr.bf16.mxu0 %v1978
  %2827 = vmatpush1.bf16.msra.mxu0 %v1977
  %2828 = vmatprep.subr.bf16.mxu0 %v1980
  %2829 = vmatpush1.bf16.msra.mxu0 %v1979
  %2830 = vmatprep.subr.bf16.mxu0 %v1982
  %2831 = vmatpush1.bf16.msra.mxu0 %v1981
  %2832 = vmatprep.subr.bf16.mxu0 %v1984
  %2833 = vmatpush1.bf16.msra.mxu0 %v1983
  %2834 = vmatprep.subr.bf16.mxu0 %v1986
  %2835 = vmatpush1.bf16.msra.mxu0 %v1985
  %2836 = vmatprep.subr.bf16.mxu0 %v1988
  %2837 = vmatpush1.bf16.msra.mxu0 %v1987
  %2838 = vmatprep.subr.bf16.mxu0 %v1990
  %2839 = vmatpush1.bf16.msra.mxu0 %v1989
  %2840 = vmatprep.subr.bf16.mxu0 %v1992
  %2841 = vmatpush1.bf16.msra.mxu0 %v1991
  %2842 = vmatprep.subr.bf16.mxu0 %v1994
  %2843 = vmatpush1.bf16.msra.mxu0 %v1993
  %2844 = vmatprep.subr.bf16.mxu0 %v1996
  %2845 = vmatpush1.bf16.msra.mxu0 %v1995
  %2846 = vmatprep.subr.bf16.mxu0 %v1998
  %2847 = vmatpush1.bf16.msra.mxu0 %v1997
  %2848 = vmatprep.subr.bf16.mxu0 %v2000
  %2849 = vmatpush1.bf16.msra.mxu0 %v1999
  %2850 = vmatprep.subr.bf16.mxu0 %v2002
  %2851 = vmatpush1.bf16.msra.mxu0 %v2001
  %2852 = vmatprep.mubr.bf16.mxu0 %v502
  %2853 = vmatmul.mubr.bf16.gmra.mrb[0].mxu0 %v501
  %v2854 = vpop.f32.mrb[0].mxu0
  %v2855 = vadd.f32 %v2814, %v2854
  %v2856 = vpop.f32.mrb[0].mxu0
  %v2857 = vadd.f32 %v2816, %v2856
  %v2858 = vpop.f32.mrb[0].mxu0
  %v2859 = vpop.f32.mrb[0].mxu0
  %2860 = vdwg.mxu0
  %2861 = vmatprep.subr.bf16.mxu0 %v2004
  %2862 = vmatpush1.bf16.msra.mxu0 %v2003
  %2863 = vmatprep.subr.bf16.mxu0 %v2006
  %2864 = vmatpush1.bf16.msra.mxu0 %v2005
  %2865 = vmatprep.subr.bf16.mxu0 %v2008
  %2866 = vmatpush1.bf16.msra.mxu0 %v2007
  %2867 = vmatprep.subr.bf16.mxu0 %v2010
  %2868 = vmatpush1.bf16.msra.mxu0 %v2009
  %2869 = vmatprep.subr.bf16.mxu0 %v2012
  %2870 = vmatpush1.bf16.msra.mxu0 %v2011
  %2871 = vmatprep.subr.bf16.mxu0 %v2014
  %2872 = vmatpush1.bf16.msra.mxu0 %v2013
  %2873 = vmatprep.subr.bf16.mxu0 %v2016
  %2874 = vmatpush1.bf16.msra.mxu0 %v2015
  %2875 = vmatprep.subr.bf16.mxu0 %v2018
  %2876 = vmatpush1.bf16.msra.mxu0 %v2017
  %2877 = vmatprep.subr.bf16.mxu0 %v2020
  %2878 = vmatpush1.bf16.msra.mxu0 %v2019
  %2879 = vmatprep.subr.bf16.mxu0 %v2022
  %2880 = vmatpush1.bf16.msra.mxu0 %v2021
  %2881 = vmatprep.subr.bf16.mxu0 %v2024
  %2882 = vmatpush1.bf16.msra.mxu0 %v2023
  %2883 = vmatprep.subr.bf16.mxu0 %v2026
  %2884 = vmatpush1.bf16.msra.mxu0 %v2025
  %2885 = vmatprep.subr.bf16.mxu0 %v2028
  %2886 = vmatpush1.bf16.msra.mxu0 %v2027
  %2887 = vmatprep.subr.bf16.mxu0 %v2030
  %2888 = vmatpush1.bf16.msra.mxu0 %v2029
  %2889 = vmatprep.subr.bf16.mxu0 %v2032
  %2890 = vmatpush1.bf16.msra.mxu0 %v2031
  %2891 = vmatprep.subr.bf16.mxu0 %v2034
  %2892 = vmatpush1.bf16.msra.mxu0 %v2033
  %2893 = vmatprep.mubr.bf16.mxu0 %v504
  %2894 = vmatmul.mubr.bf16.gmra.mrb[0].mxu0 %v503
  %v2895 = vpop.f32.mrb[0].mxu0
  %v2896 = vadd.f32 %v2855, %v2895
  %v2897 = vpop.f32.mrb[0].mxu0
  %v2898 = vadd.f32 %v2857, %v2897
  %v2899 = vpop.f32.mrb[0].mxu0
  %v2900 = vpop.f32.mrb[0].mxu0
  %2901 = vdwg.mxu0
  %2902 = vmatprep.subr.bf16.mxu0 %v2036
  %2903 = vmatpush1.bf16.msra.mxu0 %v2035
  %2904 = vmatprep.subr.bf16.mxu0 %v2038
  %2905 = vmatpush1.bf16.msra.mxu0 %v2037
  %2906 = vmatprep.subr.bf16.mxu0 %v2040
  %2907 = vmatpush1.bf16.msra.mxu0 %v2039
  %2908 = vmatprep.subr.bf16.mxu0 %v2042
  %2909 = vmatpush1.bf16.msra.mxu0 %v2041
  %2910 = vmatprep.subr.bf16.mxu0 %v2044
  %2911 = vmatpush1.bf16.msra.mxu0 %v2043
  %2912 = vmatprep.subr.bf16.mxu0 %v2046
  %2913 = vmatpush1.bf16.msra.mxu0 %v2045
  %2914 = vmatprep.subr.bf16.mxu0 %v2048
  %2915 = vmatpush1.bf16.msra.mxu0 %v2047
  %2916 = vmatprep.subr.bf16.mxu0 %v2050
  %2917 = vmatpush1.bf16.msra.mxu0 %v2049
  %2918 = vmatprep.subr.bf16.mxu0 %v2052
  %2919 = vmatpush1.bf16.msra.mxu0 %v2051
  %2920 = vmatprep.subr.bf16.mxu0 %v2054
  %2921 = vmatpush1.bf16.msra.mxu0 %v2053
  %2922 = vmatprep.subr.bf16.mxu0 %v2056
  %2923 = vmatpush1.bf16.msra.mxu0 %v2055
  %2924 = vmatprep.subr.bf16.mxu0 %v2058
  %2925 = vmatpush1.bf16.msra.mxu0 %v2057
  %2926 = vmatprep.subr.bf16.mxu0 %v2060
  %2927 = vmatpush1.bf16.msra.mxu0 %v2059
  %2928 = vmatprep.subr.bf16.mxu0 %v2062
  %2929 = vmatpush1.bf16.msra.mxu0 %v2061
  %2930 = vmatprep.subr.bf16.mxu0 %v2064
  %2931 = vmatpush1.bf16.msra.mxu0 %v2063
  %2932 = vmatprep.subr.bf16.mxu0 %v2066
  %2933 = vmatpush1.bf16.msra.mxu0 %v2065
  %2934 = vmatprep.mubr.bf16.mxu0 %v506
  %2935 = vmatmul.mubr.bf16.gmra.mrb[0].mxu0 %v505
  %v2936 = vpop.f32.mrb[0].mxu0
  %v2937 = vadd.f32 %v2896, %v2936
  %v2938 = vpop.f32.mrb[0].mxu0
  %v2939 = vadd.f32 %v2898, %v2938
  %v2940 = vpop.f32.mrb[0].mxu0
  %v2941 = vpop.f32.mrb[0].mxu0
  %2942 = vdwg.mxu0
  %v2943 = vmax.f32 %v2937, 0.0
  %v2944 = vmax.f32 %v2939, 0.0
  %v2945 = vpack.c.bf16 %v2943, %v2943
  %v2946 = vpack.c.bf16 %v2944, %v2944
  %v2947 = vld [vmem:[%s3] sm:$0xf]
  %v2948 = vld [vmem:[%s3 + $0x4] sm:$0xf]
  %v2949 = vld [vmem:[%s3 + $0x8] sm:$0xf]
  %v2950 = vld [vmem:[%s3 + $0xc] sm:$0xf]
  %v2951 = vld [vmem:[%s3 + $0x10] sm:$0xf]
  %v2952 = vld [vmem:[%s3 + $0x14] sm:$0xf]
  %v2953 = vld [vmem:[%s3 + $0x18] sm:$0xf]
  %v2954 = vld [vmem:[%s3 + $0x1c] sm:$0xf]
  %v2955 = vld [vmem:[%s3 + $0x20] sm:$0xf]
  %v2956 = vld [vmem:[%s3 + $0x24] sm:$0xf]
  %v2957 = vld [vmem:[%s3 + $0x28] sm:$0xf]
  %v2958 = vld [vmem:[%s3 + $0x2c] sm:$0xf]
  %v2959 = vld [vmem:[%s3 + $0x30] sm:$0xf]
  %v2960 = vld [vmem:[%s3 + $0x34] sm:$0xf]
  %v2961 = vld [vmem:[%s3 + $0x38] sm:$0xf]
  %v2962 = vld [vmem:[%s3 + $0x3c] sm:$0xf]
  %v2963 = vld [vmem:[%s3 + $0x40] sm:$0xf]
  %v2964 = vld [vmem:[%s3 + $0x44] sm:$0xf]
  %v2965 = vld [vmem:[%s3 + $0x48] sm:$0xf]
  %v2966 = vld [vmem:[%s3 + $0x4c] sm:$0xf]
  %v2967 = vld [vmem:[%s3 + $0x50] sm:$0xf]
  %v2968 = vld [vmem:[%s3 + $0x54] sm:$0xf]
  %v2969 = vld [vmem:[%s3 + $0x58] sm:$0xf]
  %v2970 = vld [vmem:[%s3 + $0x5c] sm:$0xf]
  %v2971 = vld [vmem:[%s3 + $0x60] sm:$0xf]
  %v2972 = vld [vmem:[%s3 + $0x64] sm:$0xf]
  %v2973 = vld [vmem:[%s3 + $0x68] sm:$0xf]
  %v2974 = vld [vmem:[%s3 + $0x6c] sm:$0xf]
  %v2975 = vld [vmem:[%s3 + $0x70] sm:$0xf]
  %v2976 = vld [vmem:[%s3 + $0x74] sm:$0xf]
  %v2977 = vld [vmem:[%s3 + $0x78] sm:$0xf]
  %v2978 = vld [vmem:[%s3 + $0x7c] sm:$0xf]
  %v2979 = vld [vmem:[%s4] sm:$0x1]
  %v2981 = vlaneseq
  %v2982 = vshrl.u32 %v2981, 7
  %v2983 = vsub.s32 0, %v2982
  %v2984 = vrot.slane %v2979, %v2983
  %v3018 = vunpack.c.l.b16 %v2947
  %v3019 = vunpack.c.l.b16 %v2948
  %v3020 = vunpack.c.l.b16 %v2949
  %v3021 = vunpack.c.l.b16 %v2950
  %v3022 = vunpack.c.l.b16 %v2951
  %v3023 = vunpack.c.l.b16 %v2952
  %v3024 = vunpack.c.l.b16 %v2953
  %v3025 = vunpack.c.l.b16 %v2954
  %v3026 = vunpack.c.l.b16 %v2955
  %v3027 = vunpack.c.l.b16 %v2956
  %v3028 = vunpack.c.l.b16 %v2957
  %v3029 = vunpack.c.l.b16 %v2958
  %v3030 = vunpack.c.l.b16 %v2959
  %v3031 = vunpack.c.l.b16 %v2960
  %v3032 = vunpack.c.l.b16 %v2961
  %v3033 = vunpack.c.l.b16 %v2962
  %v3034 = vunpack.c.l.b16 %v2963
  %v3035 = vunpack.c.l.b16 %v2964
  %v3036 = vunpack.c.l.b16 %v2965
  %v3037 = vunpack.c.l.b16 %v2966
  %v3038 = vunpack.c.l.b16 %v2967
  %v3039 = vunpack.c.l.b16 %v2968
  %v3040 = vunpack.c.l.b16 %v2969
  %v3041 = vunpack.c.l.b16 %v2970
  %v3042 = vunpack.c.l.b16 %v2971
  %v3043 = vunpack.c.l.b16 %v2972
  %v3044 = vunpack.c.l.b16 %v2973
  %v3045 = vunpack.c.l.b16 %v2974
  %v3046 = vunpack.c.l.b16 %v2975
  %v3047 = vunpack.c.l.b16 %v2976
  %v3048 = vunpack.c.l.b16 %v2977
  %v3049 = vunpack.c.l.b16 %v2978
  %v3050 = vpack.c.b16 %v3019, %v3018
  %v3051 = vpack.c.b16 %v3021, %v3020
  %v3052 = vpack.c.b16 %v3023, %v3022
  %v3053 = vpack.c.b16 %v3025, %v3024
  %v3054 = vpack.c.b16 %v3027, %v3026
  %v3055 = vpack.c.b16 %v3029, %v3028
  %v3056 = vpack.c.b16 %v3031, %v3030
  %v3057 = vpack.c.b16 %v3033, %v3032
  %v3058 = vpack.c.b16 %v3035, %v3034
  %v3059 = vpack.c.b16 %v3037, %v3036
  %v3060 = vpack.c.b16 %v3039, %v3038
  %v3061 = vpack.c.b16 %v3041, %v3040
  %v3062 = vpack.c.b16 %v3043, %v3042
  %v3063 = vpack.c.b16 %v3045, %v3044
  %v3064 = vpack.c.b16 %v3047, %v3046
  %v3065 = vpack.c.b16 %v3049, %v3048
  %3082 = vmatprep.subr.bf16.mxu0 0
  %3083 = vmatpush1.bf16.msra.mxu0 %v3050
  %3084 = vmatprep.subr.bf16.mxu0 0
  %3085 = vmatpush1.bf16.msra.mxu0 %v3051
  %3086 = vmatprep.subr.bf16.mxu0 0
  %3087 = vmatpush1.bf16.msra.mxu0 %v3052
  %3088 = vmatprep.subr.bf16.mxu0 0
  %3089 = vmatpush1.bf16.msra.mxu0 %v3053
  %3090 = vmatprep.subr.bf16.mxu0 0
  %3091 = vmatpush1.bf16.msra.mxu0 %v3054
  %3092 = vmatprep.subr.bf16.mxu0 0
  %3093 = vmatpush1.bf16.msra.mxu0 %v3055
  %3094 = vmatprep.subr.bf16.mxu0 0
  %3095 = vmatpush1.bf16.msra.mxu0 %v3056
  %3096 = vmatprep.subr.bf16.mxu0 0
  %3097 = vmatpush1.bf16.msra.mxu0 %v3057
  %3098 = vmatprep.subr.bf16.mxu0 0
  %3099 = vmatpush1.bf16.msra.mxu0 %v3058
  %3100 = vmatprep.subr.bf16.mxu0 0
  %3101 = vmatpush1.bf16.msra.mxu0 %v3059
  %3102 = vmatprep.subr.bf16.mxu0 0
  %3103 = vmatpush1.bf16.msra.mxu0 %v3060
  %3104 = vmatprep.subr.bf16.mxu0 0
  %3105 = vmatpush1.bf16.msra.mxu0 %v3061
  %3106 = vmatprep.subr.bf16.mxu0 0
  %3107 = vmatpush1.bf16.msra.mxu0 %v3062
  %3108 = vmatprep.subr.bf16.mxu0 0
  %3109 = vmatpush1.bf16.msra.mxu0 %v3063
  %3110 = vmatprep.subr.bf16.mxu0 0
  %3111 = vmatpush1.bf16.msra.mxu0 %v3064
  %3112 = vmatprep.subr.bf16.mxu0 0
  %3113 = vmatpush1.bf16.msra.mxu0 %v3065
  %3114 = vmatprep.mubr.bf16.mxu0 %v2946
  %3115 = vmatmul.mubr.bf16.gmra.mrb[0].mxu0 %v2945
  %v3116 = vpop.f32.mrb[0].mxu0
  %v3117 = vadd.f32 %v2984, %v3116
  %v3118 = vpop.f32.mrb[0].mxu0
  %v3119 = vpop.f32.mrb[0].mxu0
  %v3120 = vpop.f32.mrb[0].mxu0
  %3121 = vdwg.mxu0
  %v3122 = vmax.f32 %v3117, 0.0
  %v3123 = vpack.c.bf16 %v3122, %v3122
  %v3124 = vld [vmem:[%s5] sm:$0xf]
  %v3125 = vld [vmem:[%s5 + $0x4] sm:$0xf]
  %v3126 = vld [vmem:[%s5 + $0x8] sm:$0xf]
  %v3127 = vld [vmem:[%s5 + $0xc] sm:$0xf]
  %v3128 = vld [vmem:[%s5 + $0x10] sm:$0xf]
  %v3129 = vld [vmem:[%s5 + $0x14] sm:$0xf]
  %v3130 = vld [vmem:[%s5 + $0x18] sm:$0xf]
  %v3131 = vld [vmem:[%s5 + $0x1c] sm:$0xf]
  %v3132 = vld [vmem:[%s5 + $0x20] sm:$0xf]
  %v3133 = vld [vmem:[%s5 + $0x24] sm:$0xf]
  %v3134 = vld [vmem:[%s5 + $0x28] sm:$0xf]
  %v3135 = vld [vmem:[%s5 + $0x2c] sm:$0xf]
  %v3136 = vld [vmem:[%s5 + $0x30] sm:$0xf]
  %v3137 = vld [vmem:[%s5 + $0x34] sm:$0xf]
  %v3138 = vld [vmem:[%s5 + $0x38] sm:$0xf]
  %v3139 = vld [vmem:[%s5 + $0x3c] sm:$0xf]
  %v3140 = vld [vmem:[%s6] sm:$0x1]
  %v3142 = vlaneseq
  %v3143 = vshrl.u32 %v3142, 7
  %v3144 = vsub.s32 0, %v3143
  %v3145 = vrot.slane %v3140, %v3144
  %v3163 = vunpack.c.l.b16 %v3124
  %v3164 = vunpack.c.l.b16 %v3125
  %v3165 = vunpack.c.l.b16 %v3126
  %v3166 = vunpack.c.l.b16 %v3127
  %v3167 = vunpack.c.l.b16 %v3128
  %v3168 = vunpack.c.l.b16 %v3129
  %v3169 = vunpack.c.l.b16 %v3130
  %v3170 = vunpack.c.l.b16 %v3131
  %v3171 = vunpack.c.l.b16 %v3132
  %v3172 = vunpack.c.l.b16 %v3133
  %v3173 = vunpack.c.l.b16 %v3134
  %v3174 = vunpack.c.l.b16 %v3135
  %v3175 = vunpack.c.l.b16 %v3136
  %v3176 = vunpack.c.l.b16 %v3137
  %v3177 = vunpack.c.l.b16 %v3138
  %v3178 = vunpack.c.l.b16 %v3139
  %v3179 = vpack.c.b16 %v3164, %v3163
  %v3180 = vpack.c.b16 %v3166, %v3165
  %v3181 = vpack.c.b16 %v3168, %v3167
  %v3182 = vpack.c.b16 %v3170, %v3169
  %v3183 = vpack.c.b16 %v3172, %v3171
  %v3184 = vpack.c.b16 %v3174, %v3173
  %v3185 = vpack.c.b16 %v3176, %v3175
  %v3186 = vpack.c.b16 %v3178, %v3177
  %3195 = vmatprep.subr.bf16.mxu0 0
  %3196 = vmatpush1.bf16.msra.mxu0 %v3179
  %3197 = vmatprep.subr.bf16.mxu0 0
  %3198 = vmatpush1.bf16.msra.mxu0 %v3180
  %3199 = vmatprep.subr.bf16.mxu0 0
  %3200 = vmatpush1.bf16.msra.mxu0 %v3181
  %3201 = vmatprep.subr.bf16.mxu0 0
  %3202 = vmatpush1.bf16.msra.mxu0 %v3182
  %3203 = vmatprep.subr.bf16.mxu0 0
  %3204 = vmatpush1.bf16.msra.mxu0 %v3183
  %3205 = vmatprep.subr.bf16.mxu0 0
  %3206 = vmatpush1.bf16.msra.mxu0 %v3184
  %3207 = vmatprep.subr.bf16.mxu0 0
  %3208 = vmatpush1.bf16.msra.mxu0 %v3185
  %3209 = vmatprep.subr.bf16.mxu0 0
  %3210 = vmatpush1.bf16.msra.mxu0 %v3186
  %3211 = vmatprep.subr.bf16.mxu0 0
  %3212 = vmatpush1.bf16.msra.mxu0 0
  %3213 = vmatprep.subr.bf16.mxu0 0
  %3214 = vmatpush1.bf16.msra.mxu0 0
  %3215 = vmatprep.subr.bf16.mxu0 0
  %3216 = vmatpush1.bf16.msra.mxu0 0
  %3217 = vmatprep.subr.bf16.mxu0 0
  %3218 = vmatpush1.bf16.msra.mxu0 0
  %3219 = vmatprep.subr.bf16.mxu0 0
  %3220 = vmatpush1.bf16.msra.mxu0 0
  %3221 = vmatprep.subr.bf16.mxu0 0
  %3222 = vmatpush1.bf16.msra.mxu0 0
  %3223 = vmatprep.subr.bf16.mxu0 0
  %3224 = vmatpush1.bf16.msra.mxu0 0
  %3225 = vmatprep.subr.bf16.mxu0 0
  %3226 = vmatpush1.bf16.msra.mxu0 0
  %3227 = vmatprep.mubr.bf16.mxu0 0
  %3228 = vmatmul.mubr.bf16.gmra.mrb[0].mxu0 %v3123
  %v3229 = vpop.f32.mrb[0].mxu0
  %v3230 = vadd.f32 %v3145, %v3229
  %v3231 = vpop.f32.mrb[0].mxu0
  %v3232 = vpop.f32.mrb[0].mxu0
  %v3233 = vpop.f32.mrb[0].mxu0
  %3234 = vdwg.mxu0
  %v3235 = vmax.f32 %v3230, 0.0
  %v3236 = vpack.c.bf16 %v3235, %v3235
  %v3237 = vld [vmem:[%s7] sm:$0xf]
  %v3238 = vld [vmem:[%s7 + $0x4] sm:$0xf]
  %v3239 = vld [vmem:[%s7 + $0x8] sm:$0xf]
  %v3240 = vld [vmem:[%s7 + $0xc] sm:$0xf]
  %v3241 = vld [vmem:[%s7 + $0x10] sm:$0xf]
  %v3242 = vld [vmem:[%s7 + $0x14] sm:$0xf]
  %v3243 = vld [vmem:[%s7 + $0x18] sm:$0xf]
  %v3244 = vld [vmem:[%s7 + $0x1c] sm:$0xf]
  %v3245 = vld [vmem:[%s8] sm:$0x1]
  %v3247 = vlaneseq
  %v3248 = vshrl.u32 %v3247, 7
  %v3249 = vsub.s32 0, %v3248
  %v3250 = vrot.slane %v3245, %v3249
  %v3260 = vunpack.c.l.b16 %v3237
  %v3261 = vunpack.c.l.b16 %v3238
  %v3262 = vunpack.c.l.b16 %v3239
  %v3263 = vunpack.c.l.b16 %v3240
  %v3264 = vunpack.c.l.b16 %v3241
  %v3265 = vunpack.c.l.b16 %v3242
  %v3266 = vunpack.c.l.b16 %v3243
  %v3267 = vunpack.c.l.b16 %v3244
  %v3268 = vpack.c.b16 %v3261, %v3260
  %v3269 = vpack.c.b16 %v3263, %v3262
  %v3270 = vpack.c.b16 %v3265, %v3264
  %v3271 = vpack.c.b16 %v3267, %v3266
  %vm3276 = vcmask 523264
  %v3278 = vsel %vm3276, %v3236, 0
  %3280 = vmatprep.subr.bf16.mxu0 0
  %3281 = vmatpush1.bf16.msra.mxu0 %v3268
  %3282 = vmatprep.subr.bf16.mxu0 0
  %3283 = vmatpush1.bf16.msra.mxu0 %v3269
  %3284 = vmatprep.subr.bf16.mxu0 0
  %3285 = vmatpush1.bf16.msra.mxu0 %v3270
  %3286 = vmatprep.subr.bf16.mxu0 0
  %3287 = vmatpush1.bf16.msra.mxu0 %v3271
  %3288 = vmatprep.subr.bf16.mxu0 0
  %3289 = vmatpush1.bf16.msra.mxu0 0
  %3290 = vmatprep.subr.bf16.mxu0 0
  %3291 = vmatpush1.bf16.msra.mxu0 0
  %3292 = vmatprep.subr.bf16.mxu0 0
  %3293 = vmatpush1.bf16.msra.mxu0 0
  %3294 = vmatprep.subr.bf16.mxu0 0
  %3295 = vmatpush1.bf16.msra.mxu0 0
  %3296 = vmatprep.subr.bf16.mxu0 0
  %3297 = vmatpush1.bf16.msra.mxu0 0
  %3298 = vmatprep.subr.bf16.mxu0 0
  %3299 = vmatpush1.bf16.msra.mxu0 0
  %3300 = vmatprep.subr.bf16.mxu0 0
  %3301 = vmatpush1.bf16.msra.mxu0 0
  %3302 = vmatprep.subr.bf16.mxu0 0
  %3303 = vmatpush1.bf16.msra.mxu0 0
  %3304 = vmatprep.subr.bf16.mxu0 0
  %3305 = vmatpush1.bf16.msra.mxu0 0
  %3306 = vmatprep.subr.bf16.mxu0 0
  %3307 = vmatpush1.bf16.msra.mxu0 0
  %3308 = vmatprep.subr.bf16.mxu0 0
  %3309 = vmatpush1.bf16.msra.mxu0 0
  %3310 = vmatprep.subr.bf16.mxu0 0
  %3311 = vmatpush1.bf16.msra.mxu0 0
  %3312 = vmatprep.mubr.bf16.mxu0 0
  %3313 = vmatmul.mubr.bf16.gmra.mrb[0].mxu0 %v3278
  %v3314 = vpop.f32.mrb[0].mxu0
  %v3315 = vadd.f32 %v3250, %v3314
  %v3316 = vpop.f32.mrb[0].mxu0
  %v3317 = vpop.f32.mrb[0].mxu0
  %v3318 = vpop.f32.mrb[0].mxu0
  %3319 = vdwg.mxu0
  %v3320 = vmax.f32 %v3315, 0.0
  %v3321 = vpack.c.bf16 %v3320, %v3320
  %v3322 = vld [vmem:[%s9] sm:$0xf]
  %v3323 = vld [vmem:[%s9 + $0x4] sm:$0xf]
  %v3324 = vld [vmem:[%s9 + $0x8] sm:$0xf]
  %v3325 = vld [vmem:[%s9 + $0xc] sm:$0xf]
  %v3326 = vld [vmem:[%s9 + $0x10] sm:$0xf]
  %v3327 = vld [vmem:[%s9 + $0x14] sm:$0xf]
  %v3328 = vld [vmem:[%s9 + $0x18] sm:$0xf]
  %v3329 = vld [vmem:[%s9 + $0x1c] sm:$0xf]
  %v3330 = vld [vmem:[%s10] sm:$0x1]
  %v3332 = vlaneseq
  %v3333 = vshrl.u32 %v3332, 7
  %v3334 = vsub.s32 0, %v3333
  %v3335 = vrot.slane %v3330, %v3334
  %v3345 = vunpack.c.l.b16 %v3322
  %v3346 = vunpack.c.l.b16 %v3323
  %v3347 = vunpack.c.l.b16 %v3324
  %v3348 = vunpack.c.l.b16 %v3325
  %v3349 = vunpack.c.l.b16 %v3326
  %v3350 = vunpack.c.l.b16 %v3327
  %v3351 = vunpack.c.l.b16 %v3328
  %v3352 = vunpack.c.l.b16 %v3329
  %v3353 = vpack.c.b16 %v3346, %v3345
  %v3354 = vpack.c.b16 %v3348, %v3347
  %v3355 = vpack.c.b16 %v3350, %v3349
  %v3356 = vpack.c.b16 %v3352, %v3351
  %v3362 = vsel %vm3276, %v3321, 0
  %3364 = vmatprep.subr.bf16.mxu0 0
  %3365 = vmatpush1.bf16.msra.mxu0 %v3353
  %3366 = vmatprep.subr.bf16.mxu0 0
  %3367 = vmatpush1.bf16.msra.mxu0 %v3354
  %3368 = vmatprep.subr.bf16.mxu0 0
  %3369 = vmatpush1.bf16.msra.mxu0 %v3355
  %3370 = vmatprep.subr.bf16.mxu0 0
  %3371 = vmatpush1.bf16.msra.mxu0 %v3356
  %3372 = vmatprep.subr.bf16.mxu0 0
  %3373 = vmatpush1.bf16.msra.mxu0 0
  %3374 = vmatprep.subr.bf16.mxu0 0
  %3375 = vmatpush1.bf16.msra.mxu0 0
  %3376 = vmatprep.subr.bf16.mxu0 0
  %3377 = vmatpush1.bf16.msra.mxu0 0
  %3378 = vmatprep.subr.bf16.mxu0 0
  %3379 = vmatpush1.bf16.msra.mxu0 0
  %3380 = vmatprep.subr.bf16.mxu0 0
  %3381 = vmatpush1.bf16.msra.mxu0 0
  %3382 = vmatprep.subr.bf16.mxu0 0
  %3383 = vmatpush1.bf16.msra.mxu0 0
  %3384 = vmatprep.subr.bf16.mxu0 0
  %3385 = vmatpush1.bf16.msra.mxu0 0
  %3386 = vmatprep.subr.bf16.mxu0 0
  %3387 = vmatpush1.bf16.msra.mxu0 0
  %3388 = vmatprep.subr.bf16.mxu0 0
  %3389 = vmatpush1.bf16.msra.mxu0 0
  %3390 = vmatprep.subr.bf16.mxu0 0
  %3391 = vmatpush1.bf16.msra.mxu0 0
  %3392 = vmatprep.subr.bf16.mxu0 0
  %3393 = vmatpush1.bf16.msra.mxu0 0
  %3394 = vmatprep.subr.bf16.mxu0 0
  %3395 = vmatpush1.bf16.msra.mxu0 0
  %3396 = vmatprep.mubr.bf16.mxu0 0
  %3397 = vmatmul.mubr.bf16.gmra.mrb[0].mxu0 %v3362
  %v3398 = vpop.f32.mrb[0].mxu0
  %v3399 = vadd.f32 %v3335, %v3398
  %v3400 = vpop.f32.mrb[0].mxu0
  %v3401 = vpop.f32.mrb[0].mxu0
  %v3402 = vpop.f32.mrb[0].mxu0
  %3403 = vdwg.mxu0
  %3404 = vst.msk [vmem:[%s11] sm:$0xff] %vm3276, %v3399
  // Predicated region
  $region46: #{official_nerf_vae_forward.2} parent=0 // pred_check
    _
  $region47: #{official_nerf_vae_forward.2} parent=0 // pred_check_branch
    %3406 = sbr.rel (0) target = $region49
  $region48: #{official_nerf_vae_forward.2} parent=0 // pred_region
    _
  $region49: #{official_nerf_vae_forward.2} parent=0 // pred_fallthru
    _
  // Predicated region
  $region50: #{official_nerf_vae_forward.2} parent=0 // pred_check
    _
  $region51: #{official_nerf_vae_forward.2} parent=0 // pred_check_branch
    %3408 = sbr.rel (0) target = $region53
  $region52: #{official_nerf_vae_forward.2} parent=0 // pred_region
    _
  $region53: #{official_nerf_vae_forward.2} parent=0 // pred_fallthru
    _

</llo_original>
